<compile_context>
chip_gen: v6e
topology: v6e:2x2x1
jax: 0.10.0
libtpu: 0.0.40
codegen_flags: <defaults>
</compile_context>

<pallas_src>
import math

import jax
import jax.numpy as jnp
from jax.experimental import pallas as pl
from jax.experimental.pallas import tpu as pltpu

# ----- model dims (small, synthetic) ---------------------------------------
PW = 32          # property_width
SW = 32          # smiles encoder hidden_size
EMBED = 32       # embed_dim (contrastive projection dim)
QUEUE = 8        # queue_size (multiple of batch)
VOCAB = 64       # smiles vocab for the LM head stub
LN_EPS = 1e-12   # BERT layer_norm_eps

F32 = jnp.float32
BF16 = jnp.bfloat16
VMEM = pl.BlockSpec(memory_space=pltpu.MemorySpace.VMEM)
SMEM = pl.BlockSpec(memory_space=pltpu.MemorySpace.SMEM)
SCALAR = jax.ShapeDtypeStruct((1, 1), F32)   # fully in-kernel-reduced loss


def _round_up(x, m):
    return ((x + m - 1) // m) * m


def _padded_tokens(t, b):
    # smallest t_pad >= t with (b * t_pad) % 8 == 0 (sublane-aligned token rows)
    g = math.gcd(b, 8)
    return _round_up(t, 8 // g)


# ======================= Pallas kernels =====================================
def _dual_branch_kernel(xp_ref, xs_ref,
                        pcls_p_ref, pmean_p_ref, pcls_s_ref, pmean_s_ref,
                        ewp_ref, ebp_ref, ews_ref, ebs_ref,
                        pwp_ref, pbp_ref, pws_ref, pbs_ref,
                        encp_ref, slab_p_ref, slab_s_ref):
    """Both encoder branches + pooling + ganged (online|momentum) projection."""
    # encoder stubs: tanh(x @ W + b) over flattened tokens (bf16 MXU, f32 acc)
    encp = jnp.tanh(jnp.dot(xp_ref[...], ewp_ref[...],
                            preferred_element_type=F32) + ebp_ref[...])
    encp_ref[...] = encp.astype(BF16)        # needed downstream by NPP (bf16 slab)
    encs = jnp.tanh(jnp.dot(xs_ref[...], ews_ref[...],
                            preferred_element_type=F32) + ebs_ref[...])

    def branch_slab(enc, pcls, pmean, pw, pb):
        enc_b = enc.astype(BF16)
        cls = jnp.dot(pcls, enc_b, preferred_element_type=F32)      # (B, H)
        ctx = jnp.dot(pmean, enc_b, preferred_element_type=F32)     # (B, H)
        # ganged projection: [W_online | W_momentum] -> one MXU call
        proj = jnp.dot(cls.astype(BF16), pw,
                       preferred_element_type=F32) + pb             # (B, 2E)
        e = proj.shape[1] // 2
        on = (jax.lax.broadcasted_iota(jnp.int32, proj.shape, 1) < e).astype(F32)
        sq = proj * proj
        n_on = jnp.sum(sq * on, axis=-1, keepdims=True)
        n_mo = jnp.sum(sq * (1.0 - on), axis=-1, keepdims=True)
        inv = (on * jax.lax.rsqrt(jnp.maximum(n_on, 1e-24))
               + (1.0 - on) * jax.lax.rsqrt(jnp.maximum(n_mo, 1e-24)))
        feat = proj * inv                                            # per-half L2-norm
        # lane-dense (B, 128) slab: [cls | ctx | feat_online | feat_momentum]
        return jnp.concatenate([cls, ctx, feat], axis=-1)

    slab_p_ref[...] = branch_slab(encp, pcls_p_ref[...], pmean_p_ref[...],
                                  pwp_ref[...], pbp_ref[...])
    slab_s_ref[...] = branch_slab(encs, pcls_s_ref[...], pmean_s_ref[...],
                                  pws_ref[...], pbs_ref[...])


def pallas_dual_branch(xp, xs, pcls_p, pmean_p, pcls_s, pmean_s,
                       ewp, ebp, ews, ebs, pwp, pbp, pws, pbs):
    n_p, h = xp.shape
    b = pcls_p.shape[0]
    slab_w = 2 * h + pwp.shape[1]            # 32 + 32 + 64 = 128 lanes
    return pl.pallas_call(
        _dual_branch_kernel,
        out_shape=(jax.ShapeDtypeStruct((n_p, h), BF16),     # enc_property tokens
                   jax.ShapeDtypeStruct((b, slab_w), F32),   # property slab
                   jax.ShapeDtypeStruct((b, slab_w), F32)),  # smiles slab
        in_specs=[VMEM] * 14,
        out_specs=(VMEM, VMEM, VMEM),
    )(xp, xs, pcls_p, pmean_p, pcls_s, pmean_s,
      ewp, ebp, ews, ebs, pwp, pbp, pws, pbs)


def _contrastive_kernel(feats_ref, pall_ref, sall_ref, alpha_ref, invt_ref,
                        loss_ref, w_ref):
    inv_t = invt_ref[0, 0]
    alpha = alpha_ref[0, 0]
    A = feats_ref[...]                                   # (4B, E): [pf; sf; pfm; sfm]
    b = A.shape[0] // 4
    Sp = jnp.dot(A, pall_ref[...], preferred_element_type=F32) * inv_t   # (4B, B+Q)
    Ss = jnp.dot(A, sall_ref[...], preferred_element_type=F32) * inv_t
    n = Sp.shape[1]

    rows_n = jax.lax.broadcasted_iota(jnp.int32, (4 * b, n), 0)
    cols_n = jax.lax.broadcasted_iota(jnp.int32, (4 * b, n), 1)
    # per-block identity for the online rows only (no // or % ops)
    eye = (((cols_n == rows_n) & (rows_n < b))
           | ((cols_n == rows_n - b) & (rows_n >= b) & (rows_n < 2 * b))).astype(F32)
    rows4 = jax.lax.broadcasted_iota(jnp.int32, (4 * b, 4 * b), 0)
    cols4 = jax.lax.broadcasted_iota(jnp.int32, (4 * b, 4 * b), 1)
    pair = (cols4 == rows4 + 2 * b).astype(F32)          # picks (r, r+2B) for r < 2B

    def loss_sum(M):
        m = jnp.max(M, axis=-1, keepdims=True)
        e = jnp.exp(M - m)
        s = jnp.sum(e, axis=-1, keepdims=True)
        lp = (M - m) - jnp.log(s)                        # log-softmax, all rows
        sm = e / s                                       # exact softmax (targets)
        # G[r, c] = <logsoftmax(row r), softmax(row c)>; cross term = G[r, r+2B]
        G = jax.lax.dot_general(lp, sm, (((1,), (1,)), ((), ())),
                                preferred_element_type=F32)          # (4B, 4B)
        cross = jnp.sum(jnp.sum(G * pair, axis=-1, keepdims=True),
                        axis=0, keepdims=True)
        diag = jnp.sum(jnp.sum(lp * eye, axis=-1, keepdims=True),
                       axis=0, keepdims=True)
        return -(alpha * cross + (1.0 - alpha) * diag)

    loss_ref[...] = (loss_sum(Sp) + loss_sum(Ss)) / (2.0 * b)

    # hard-negative sampling weights: softmax over the first B columns, diag zeroed
    def softmax(x):
        e = jnp.exp(x - jnp.max(x, axis=-1, keepdims=True))
        return e / jnp.sum(e, axis=-1, keepdims=True)

    base_s = Ss[:, :b]          # rows 0:B are sim_p2s
    base_p = Sp[:, :b]          # rows B:2B are sim_s2p
    rows_b = jax.lax.broadcasted_iota(jnp.int32, (4 * b, b), 0)
    cols_b = jax.lax.broadcasted_iota(jnp.int32, (4 * b, b), 1)
    no_diag = 1.0 - ((cols_b == rows_b) | (cols_b == rows_b - b)).astype(F32)
    w_ref[...] = jnp.where(rows_b < b, softmax(base_s), softmax(base_p)) * no_diag


def pallas_contrastive(feat_stack, prop_all, smi_all, alpha_s, inv_t):
    fourb = feat_stack.shape[0]
    b = fourb // 4
    return pl.pallas_call(
        _contrastive_kernel,
        out_shape=(SCALAR, jax.ShapeDtypeStruct((fourb, b), F32)),
        in_specs=[VMEM, VMEM, VMEM, SMEM, SMEM],
        out_specs=(VMEM, VMEM),
    )(feat_stack, prop_all, smi_all, alpha_s, inv_t)


def _psm_kernel(ps_ref, srcp_ref, srcs_ref, wbd_ref, fb2_ref, hw_ref, hb_ref,
                loss_ref):
    ps = ps_ref[...]                                   # (B, 128) = [pcls|sctx|scls|pctx]
    b = ps.shape[0]
    n_pad = srcp_ref.shape[0]                          # padded 3B
    h = ps.shape[1] // 4

    # in-kernel hard-negative row gather via one-hot source-row selectors
    sel_cols = jax.lax.broadcasted_iota(jnp.int32, (n_pad, b), 1)
    sel_p = (sel_cols == srcp_ref[...]).astype(F32)    # property-side source rows
    sel_s = (sel_cols == srcs_ref[...]).astype(F32)    # smiles-side source rows
    xa = jnp.dot(sel_p, ps, preferred_element_type=F32)
    xb = jnp.dot(sel_s, ps, preferred_element_type=F32)
    lanes = jax.lax.broadcasted_iota(jnp.int32, xa.shape, 1)
    prop_lane = (lanes < h) | (lanes >= 3 * h)         # prop_cls / prop_ctx lane groups
    x_both = jnp.where(prop_lane, xa, xb)              # (3B_pad, 128)

    # ONE 128-wide fusion matmul against diag([Ws;Wc],[Ws;Wc]) -> [op | osm]
    hdn = jnp.tanh(jnp.dot(x_both.astype(BF16), wbd_ref[...],
                           preferred_element_type=F32) + fb2_ref[...])   # (3B_pad, 64)
    logits = jnp.dot(hdn.astype(BF16), hw_ref[...],
                     preferred_element_type=F32) + hb_ref[...]           # (3B_pad, 2)

    c = logits.shape[1]
    rows = jax.lax.broadcasted_iota(jnp.int32, (n_pad, c), 0)
    cols = jax.lax.broadcasted_iota(jnp.int32, (n_pad, c), 1)
    labels = (rows < b).astype(jnp.int32)              # [1]*B + [0]*2B (+ pad)
    onehot = (cols == labels).astype(F32)
    m = jnp.max(logits, axis=-1, keepdims=True)
    lse = jnp.log(jnp.sum(jnp.exp(logits - m), axis=-1, keepdims=True)) + m
    picked = jnp.sum(logits * onehot, axis=-1, keepdims=True)
    rows1 = jax.lax.broadcasted_iota(jnp.int32, (n_pad, 1), 0)
    row_valid = (rows1 < 3 * b).astype(F32)
    loss_ref[...] = jnp.sum((lse - picked) * row_valid,
                            axis=0, keepdims=True) / (3.0 * b)


def pallas_psm(ps, srcp, srcs, wbd, fb2, hw, hb):
    return pl.pallas_call(
        _psm_kernel,
        out_shape=SCALAR,
        in_specs=[VMEM] * 7,
        out_specs=VMEM,
    )(ps, srcp, srcs, wbd, fb2, hw, hb)


def _nsp_kernel(x_ref, ctx_ref, dws_ref, dwc_ref, db_ref, lw_ref, lb_ref,
                lbl_ref, valid_ref, alpha_ref, loss_ref):
    ns = x_ref.shape[0]
    b = ctx_ref.shape[0]
    s_len = ns // b
    # ctx @ Wc computed once per batch row, broadcast to tokens via one-hot expand
    cvec = jnp.dot(ctx_ref[...], dwc_ref[...], preferred_element_type=F32)   # (B, SW)
    rows = jax.lax.broadcasted_iota(jnp.int32, (ns, b), 0)
    cols = jax.lax.broadcasted_iota(jnp.int32, (ns, b), 1)
    expand = ((rows >= cols * s_len) & (rows < (cols + 1) * s_len)).astype(F32)
    cb = jnp.dot(expand, cvec, preferred_element_type=F32)                   # (BS, SW)
    h = jnp.tanh(jnp.dot(x_ref[...], dws_ref[...], preferred_element_type=F32)
                 + cb + db_ref[...])
    logits = jnp.dot(h.astype(BF16), lw_ref[...],
                     preferred_element_type=F32) + lb_ref[...]               # (BS, V)
    n, v = logits.shape
    lbl = lbl_ref[...]
    valid = valid_ref[...]
    colsv = jax.lax.broadcasted_iota(jnp.int32, (n, v), 1)
    onehot = (colsv == lbl).astype(F32)
    m = jnp.max(logits, axis=-1, keepdims=True)
    e = jnp.exp(logits - m)
    denom = jnp.sum(e, axis=-1, keepdims=True)
    lse = jnp.log(denom) + m
    # NOTE: like torch's default CrossEntropyLoss (no ignore_index), pad-token
    # labels still count; 'valid' only drops the shifted-off / padded positions.
    ce_rows = lse - jnp.sum(logits * onehot, axis=-1, keepdims=True)
    loss_ce = (jnp.sum(ce_rows * valid, axis=0, keepdims=True)
               / jnp.maximum(jnp.sum(valid, axis=0, keepdims=True), 1.0))
    # momentum decoder == online decoder after copy_params(): reuse logits as teacher
    logp = logits - lse
    p_t = e / denom                                      # exact teacher distribution
    dist_rows = -jnp.sum(logp * p_t, axis=-1, keepdims=True)
    w = valid * (lbl != 0).astype(F32)
    loss_dist = (jnp.sum(dist_rows * w, axis=0, keepdims=True)
                 / jnp.maximum(jnp.sum(w, axis=0, keepdims=True), 1.0))
    a = alpha_ref[0, 0]
    loss_ref[...] = (1.0 - a) * loss_ce + a * loss_dist


def pallas_nsp(x_tok, ctx, dws, dwc, db, lwt, lb, labels, valid, alpha_s):
    return pl.pallas_call(
        _nsp_kernel,
        out_shape=SCALAR,
        in_specs=[VMEM] * 9 + [SMEM],
        out_specs=VMEM,
    )(x_tok, ctx, dws, dwc, db, lwt, lb, labels, valid, alpha_s)


def _npp_kernel(x_ref, ctx_ref, fws_ref, fwc_ref, fb_ref, w1_ref, b1_ref,
                g_ref, be_ref, w2_ref, b2_ref, tgt_ref, msk_ref, loss_ref):
    nt = x_ref.shape[0]
    b = ctx_ref.shape[0]
    t_len = nt // b
    cvec = jnp.dot(ctx_ref[...], fwc_ref[...], preferred_element_type=F32)   # (B, PW)
    rows = jax.lax.broadcasted_iota(jnp.int32, (nt, b), 0)
    cols = jax.lax.broadcasted_iota(jnp.int32, (nt, b), 1)
    expand = ((rows >= cols * t_len) & (rows < (cols + 1) * t_len)).astype(F32)
    cb = jnp.dot(expand, cvec, preferred_element_type=F32)
    h = jnp.tanh(jnp.dot(x_ref[...], fws_ref[...], preferred_element_type=F32)
                 + cb + fb_ref[...])                                         # (Nt, PW)
    h1 = jnp.dot(h.astype(BF16), w1_ref[...], preferred_element_type=F32) + b1_ref[...]
    h1 = 0.5 * h1 * (1.0 + jax.lax.erf(h1 * 0.7071067811865476))             # exact GELU
    mu = jnp.mean(h1, axis=-1, keepdims=True)
    var = jnp.mean((h1 - mu) ** 2, axis=-1, keepdims=True)
    h1 = (h1 - mu) * jax.lax.rsqrt(var + LN_EPS) * g_ref[...] + be_ref[...]
    pred = jnp.sum(h1 * w2_ref[...], axis=-1, keepdims=True) + b2_ref[...]   # (Nt, 1)
    msk = msk_ref[...]
    se = (pred - tgt_ref[...]) ** 2 * msk
    loss_ref[...] = (jnp.sum(se, axis=0, keepdims=True)
                     / jnp.maximum(jnp.sum(msk, axis=0, keepdims=True), 1.0))


def pallas_npp(x_tok, ctx, fws, fwc, fb, w1t, b1, gamma, beta, w2row, b2,
               target, mask):
    return pl.pallas_call(
        _npp_kernel,
        out_shape=SCALAR,
        in_specs=[VMEM] * 13,
        out_specs=VMEM,
    )(x_tok, ctx, fws, fwc, fb, w1t, b1, gamma, beta, w2row, b2, target, mask)


# ======================= JAX glue ===========================================
def _make_pools(mask):
    # Dense (B, B*T) CLS-selector and masked-mean pooling matrices (bf16 MXU operands).
    b, t = mask.shape
    eye = jnp.eye(b, dtype=F32)
    t0 = jnp.zeros((t,), F32).at[0].set(1.0)
    cls_pool = (eye[:, :, None] * t0[None, None, :]).reshape(b, b * t)
    mnorm = mask / jnp.maximum(jnp.sum(mask, axis=1, keepdims=True), 1.0)
    mean_pool = (eye[:, :, None] * mnorm[:, None, :]).reshape(b, b * t)
    return cls_pool.astype(BF16), mean_pool.astype(BF16)


# ======================= parameters (pre-transposed [in, out]) ==============
def init_params(key):
    ks = iter(jax.random.split(key, 32))

    def rn(shape, scale=0.05, dtype=F32):
        return (scale * jax.random.normal(next(ks), shape, F32)).astype(dtype)

    p = {}
    p["propertyEmbed_w"] = rn((PW,))
    p["propertyEmbed_b"] = rn((PW,))
    p["property_CLS"] = jnp.zeros((PW,), F32)
    p["property_MASK"] = jnp.zeros((PW,), F32)
    # projection heads pre-transposed [in, out]; momentum copies (copy_params())
    # ganged along the output axis -> one matmul per branch.
    prop_proj, prop_proj_b = rn((PW, EMBED)), rn((EMBED,))
    smi_proj, smi_proj_b = rn((SW, EMBED)), rn((EMBED,))
    p["prop_proj_wt"] = jnp.concatenate([prop_proj, prop_proj], axis=1).astype(BF16)
    p["prop_proj_b"] = jnp.concatenate([prop_proj_b, prop_proj_b]).reshape(1, 2 * EMBED)
    p["smiles_proj_wt"] = jnp.concatenate([smi_proj, smi_proj], axis=1).astype(BF16)
    p["smiles_proj_b"] = jnp.concatenate([smi_proj_b, smi_proj_b]).reshape(1, 2 * EMBED)
    # TODO(synk): BertForMaskedLM encoders replaced by single-layer linear+tanh stubs.
    p["prop_enc_wt"] = rn((PW, PW), dtype=BF16)
    p["prop_enc_b"] = rn((PW,)).reshape(1, PW)
    p["smiles_embed_table"] = rn((VOCAB, SW), 0.1)
    p["smiles_enc_wt"] = rn((SW, SW), dtype=BF16)
    p["smiles_enc_b"] = rn((SW,)).reshape(1, SW)
    # fusion stub (shared by PSM cross-fusion and NPP token fusion): self/cross halves
    fus_ws, fus_wc = rn((SW, SW)), rn((SW, SW))
    p["fusion_ws"] = fus_ws.astype(BF16)
    p["fusion_wc"] = fus_wc.astype(BF16)
    p["fusion_b"] = rn((SW,)).reshape(1, SW)
    # PSM block-diagonal ganged fusion weight (128, 64): one MXU pass over [xa|ca|xb|cb]
    fcat = jnp.concatenate([fus_ws, fus_wc], axis=0)                 # (64, 32)
    zcat = jnp.zeros_like(fcat)
    p["psm_fusion_wbd"] = jnp.concatenate(
        [jnp.concatenate([fcat, zcat], axis=1),
         jnp.concatenate([zcat, fcat], axis=1)], axis=0).astype(BF16)  # (128, 64)
    p["psm_fusion_b2"] = jnp.concatenate([p["fusion_b"], p["fusion_b"]], axis=1)
    p["psm_wt"] = rn((PW + SW, 2), dtype=BF16)
    p["psm_b"] = rn((2,)).reshape(1, 2)
    # decoder stub (NSP)
    p["dec_ws"] = rn((SW, SW), dtype=BF16)
    p["dec_wc"] = rn((SW, SW), dtype=BF16)
    p["dec_b"] = rn((SW,)).reshape(1, SW)
    p["lm_wt"] = rn((SW, VOCAB), dtype=BF16)
    p["lm_b"] = rn((VOCAB,)).reshape(1, VOCAB)
    # target_reg: Linear -> GELU -> LayerNorm -> Linear(PW, 1)
    p["tr_w1t"] = rn((PW, PW), dtype=BF16)
    p["tr_b1"] = rn((PW,)).reshape(1, PW)
    p["tr_gamma"] = jnp.ones((1, PW), F32)
    p["tr_beta"] = jnp.zeros((1, PW), F32)
    p["tr_w2row"] = rn((PW,)).reshape(1, PW)
    p["tr_b2"] = rn((1,)).reshape(1, 1)
    p["temp"] = jnp.asarray(0.07, F32)
    pq = jax.random.normal(next(ks), (EMBED, QUEUE), F32)
    p["property_queue"] = pq / jnp.linalg.norm(pq, axis=0, keepdims=True)
    sq = jax.random.normal(next(ks), (EMBED, QUEUE), F32)
    p["smiles_queue"] = sq / jnp.linalg.norm(sq, axis=0, keepdims=True)
    return p


# ======================= forward =============================================
def spmm_forward(params, prop, smiles_ids, smiles_mask, alpha, rng):
    B, P = prop.shape
    _, S = smiles_ids.shape
    Tp = P + 1
    Tp_pad = _padded_tokens(Tp, B)
    S_pad = _padded_tokens(S, B)

    temp = jnp.clip(params["temp"], 0.01, 0.5)
    inv_t = (1.0 / temp).reshape(1, 1)
    alpha_s = jnp.full((1, 1), alpha, F32)

    # property value embedding + bernoulli half-mask + CLS prepend (cheap XLA glue)
    rng, kb = jax.random.split(rng)
    half_mask = jax.random.bernoulli(kb, 0.5, (B, P)).astype(F32)
    emb = (prop[:, :, None] * params["propertyEmbed_w"][None, None, :]
           + params["propertyEmbed_b"][None, None, :])
    hm = half_mask[:, :, None]
    masked_prop = emb * (1.0 - hm) + params["property_MASK"][None, None, :] * hm
    cls_tok = jnp.broadcast_to(params["property_CLS"][None, None, :], (B, 1, PW))
    input_property = jnp.concatenate([cls_tok, masked_prop], axis=1)       # (B, Tp, PW)
    input_property = jnp.pad(input_property, ((0, 0), (0, Tp_pad - Tp), (0, 0)))
    prop_atts = jnp.pad(jnp.ones((B, Tp), F32), ((0, 0), (0, Tp_pad - Tp)))

    ids_pad = jnp.pad(smiles_ids, ((0, 0), (0, S_pad - S)))
    smi_mask_pad = jnp.pad(smiles_mask, ((0, 0), (0, S_pad - S)))
    smiles_embed = params["smiles_embed_table"][ids_pad]                   # (B, S_pad, SW)

    pcls_p, pmean_p = _make_pools(prop_atts)
    pcls_s, pmean_s = _make_pools(smi_mask_pad)

    # --- ONE fused dual-branch kernel (both encoders + pooling + projections) ---
    enc_prop, slab_p, slab_s = pallas_dual_branch(
        input_property.reshape(B * Tp_pad, PW).astype(BF16),
        smiles_embed.reshape(B * S_pad, SW).astype(BF16),
        pcls_p, pmean_p, pcls_s, pmean_s,
        params["prop_enc_wt"], params["prop_enc_b"],
        params["smiles_enc_wt"], params["smiles_enc_b"],
        params["prop_proj_wt"], params["prop_proj_b"],
        params["smiles_proj_wt"], params["smiles_proj_b"])

    prop_cls, prop_ctx = slab_p[:, :PW], slab_p[:, PW:2 * PW]
    prop_feat, prop_feat_m = slab_p[:, 2 * PW:2 * PW + EMBED], slab_p[:, 2 * PW + EMBED:]
    smi_cls, smi_ctx = slab_s[:, :SW], slab_s[:, SW:2 * SW]
    smi_feat, smi_feat_m = slab_s[:, 2 * SW:2 * SW + EMBED], slab_s[:, 2 * SW + EMBED:]

    # --- contrastive: all four losses + neg-sampling weights in ONE kernel -------
    feat_stack = jnp.concatenate([prop_feat, smi_feat, prop_feat_m, smi_feat_m], axis=0)
    prop_all = jnp.concatenate([prop_feat_m.T, params["property_queue"]], axis=1)
    smi_all = jnp.concatenate([smi_feat_m.T, params["smiles_queue"]], axis=1)
    loss_psc, w_all = pallas_contrastive(
        feat_stack.astype(BF16), prop_all.astype(BF16), smi_all.astype(BF16),
        alpha_s, inv_t)
    loss_psc = loss_psc[0, 0]
    w_p2s, w_s2p = w_all[:B], w_all[B:2 * B]

    # TODO(synk): _dequeue_and_enqueue / queue_ptr mutate registered buffers in-place;
    # the functional queue update is not threaded back through this forward.

    # --- hard-negative sampling (torch.multinomial -> jax.random.categorical) ----
    rng, k1, k2 = jax.random.split(rng, 3)
    neg_p_idx = jax.random.categorical(
        k1, jnp.where(w_s2p > 0, jnp.log(w_s2p), -jnp.inf), axis=1)
    neg_s_idx = jax.random.categorical(
        k2, jnp.where(w_p2s > 0, jnp.log(w_p2s), -jnp.inf), axis=1)

    # --- PSM: only tiny int source-row vectors cross the boundary; the gather,
    #     fusion, head and CE all happen in-kernel on a single 128-wide matmul ----
    ar = jnp.arange(B, dtype=jnp.int32)
    n_psm = _round_up(3 * B, 8)
    pad0 = jnp.zeros((n_psm - 3 * B,), jnp.int32)
    srcp = jnp.concatenate([ar, neg_p_idx.astype(jnp.int32), ar, pad0]).reshape(n_psm, 1)
    srcs = jnp.concatenate([ar, ar, neg_s_idx.astype(jnp.int32), pad0]).reshape(n_psm, 1)
    ps_slab = jnp.concatenate([prop_cls, smi_ctx, smi_cls, prop_ctx], axis=1)  # (B, 128)
    loss_psm = pallas_psm(ps_slab, srcp, srcs,
                          params["psm_fusion_wbd"], params["psm_fusion_b2"],
                          params["psm_wt"], params["psm_b"])[0, 0]

    # --- NSP: decoder fusion + LM head + CE + distillation (ctx broadcast in-kernel)
    labels = jnp.concatenate([ids_pad[:, 1:], jnp.zeros((B, 1), jnp.int32)], axis=1)
    valid = (jnp.arange(S_pad)[None, :] < (S - 1)).astype(F32) * jnp.ones((B, 1), F32)
    loss_nsp = pallas_nsp(
        smiles_embed.reshape(B * S_pad, SW).astype(BF16), prop_ctx.astype(BF16),
        params["dec_ws"], params["dec_wc"], params["dec_b"],
        params["lm_wt"], params["lm_b"],
        labels.reshape(B * S_pad, 1), valid.reshape(B * S_pad, 1), alpha_s)[0, 0]

    # --- NPP: cross-fusion + target_reg + masked MSE (ctx broadcast in-kernel) ---
    # enc_property_masked is a bit-identical recompute of enc_property -> reuse.
    npp_target = jnp.pad(prop, ((0, 0), (0, Tp_pad - P)))
    npp_mask = jnp.pad(1.0 - half_mask, ((0, 0), (0, Tp_pad - P)))
    loss_npp = pallas_npp(
        enc_prop, smi_ctx.astype(BF16),
        params["fusion_ws"], params["fusion_wc"], params["fusion_b"],
        params["tr_w1t"], params["tr_b1"], params["tr_gamma"], params["tr_beta"],
        params["tr_w2row"], params["tr_b2"],
        npp_target.reshape(B * Tp_pad, 1), npp_mask.reshape(B * Tp_pad, 1))[0, 0]

    return loss_psc, loss_psm * 10.0, loss_nsp, loss_npp


# ======================= driver =============================================
if __name__ == "__main__":
    B, P, S = 2, 8, 8
    key = jax.random.PRNGKey(0)
    k_init, k_prop, k_ids, k_fwd = jax.random.split(key, 4)

    params = init_params(k_init)
    prop = jax.random.normal(k_prop, (B, P), F32)
    smiles_ids = jax.random.randint(k_ids, (B, S), 1, VOCAB).astype(jnp.int32)
    smiles_ids = smiles_ids.at[:, 0].set(1)          # CLS-like first token
    smiles_ids = smiles_ids.at[1, S - 2:].set(0)     # padding on one row
    smiles_mask = (smiles_ids != 0).astype(F32)
    alpha = 0.4

    fwd = jax.jit(spmm_forward)
    losses = fwd(params, prop, smiles_ids, smiles_mask, alpha, k_fwd)
    losses = jax.block_until_ready(losses)
    for name, v in zip(("loss_psc", "loss_psm", "loss_nsp", "loss_npp"), losses):
        assert bool(jnp.isfinite(v)), name
    print("KERNEL_OK")
</pallas_src>

<mosaic_0001>
module attributes {stable_mosaic.version = 11 : i64} {
  func.func @_dual_branch_kernel(%arg0: memref<24x32xbf16, #tpu.memory_space<vmem>>, %arg1: memref<16x32xbf16, #tpu.memory_space<vmem>>, %arg2: memref<2x24xbf16, #tpu.memory_space<vmem>>, %arg3: memref<2x24xbf16, #tpu.memory_space<vmem>>, %arg4: memref<2x16xbf16, #tpu.memory_space<vmem>>, %arg5: memref<2x16xbf16, #tpu.memory_space<vmem>>, %arg6: memref<32x32xbf16, #tpu.memory_space<vmem>>, %arg7: memref<1x32xf32, #tpu.memory_space<vmem>>, %arg8: memref<32x32xbf16, #tpu.memory_space<vmem>>, %arg9: memref<1x32xf32, #tpu.memory_space<vmem>>, %arg10: memref<32x64xbf16, #tpu.memory_space<vmem>>, %arg11: memref<1x64xf32, #tpu.memory_space<vmem>>, %arg12: memref<32x64xbf16, #tpu.memory_space<vmem>>, %arg13: memref<1x64xf32, #tpu.memory_space<vmem>>, %arg14: memref<24x32xbf16, #tpu.memory_space<vmem>>, %arg15: memref<2x128xf32, #tpu.memory_space<vmem>>, %arg16: memref<2x128xf32, #tpu.memory_space<vmem>>) attributes {dimension_semantics = [], scalar_prefetch = 0 : i64, scratch_operands = 0 : i64, tpu.core_type = #tpu.core_type<tc>} {
    %c0 = arith.constant 0 : index
    %c0_0 = arith.constant 0 : index
    %0 = vector.load %arg0[%c0, %c0_0] : memref<24x32xbf16, #tpu.memory_space<vmem>>, vector<24x32xbf16>
    %c0_1 = arith.constant 0 : index
    %c0_2 = arith.constant 0 : index
    %1 = vector.load %arg6[%c0_1, %c0_2] : memref<32x32xbf16, #tpu.memory_space<vmem>>, vector<32x32xbf16>
    %cst = arith.constant dense<0.000000e+00> : vector<24x32xf32>
    %2 = tpu.matmul %0, %1, %cst {dimension_numbers = #tpu.dot_dimension_numbers<[1], [0], [0], [1], [0, 0, 1, 1], [], []>} : vector<24x32xbf16>, vector<32x32xbf16>, vector<24x32xf32> -> vector<24x32xf32>
    %c0_3 = arith.constant 0 : index
    %c0_4 = arith.constant 0 : index
    %3 = vector.load %arg7[%c0_3, %c0_4] : memref<1x32xf32, #tpu.memory_space<vmem>>, vector<1x32xf32>
    %4 = vector.broadcast %3 : vector<1x32xf32> to vector<24x32xf32>
    %5 = arith.addf %2, %4 : vector<24x32xf32>
    %6 = math.tanh %5 : vector<24x32xf32>
    %7 = arith.truncf %6 : vector<24x32xf32> to vector<24x32xbf16>
    %c0_5 = arith.constant 0 : index
    %c0_6 = arith.constant 0 : index
    %8 = vector.load %arg14[%c0_5, %c0_6] : memref<24x32xbf16, #tpu.memory_space<vmem>>, vector<24x32xbf16>
    tpu.vector_store %arg14[%c0_5, %c0_6], %7 {strides = array<i32>} : memref<24x32xbf16, #tpu.memory_space<vmem>>, vector<24x32xbf16>,
    %c0_7 = arith.constant 0 : index
    %c0_8 = arith.constant 0 : index
    %9 = vector.load %arg1[%c0_7, %c0_8] : memref<16x32xbf16, #tpu.memory_space<vmem>>, vector<16x32xbf16>
    %c0_9 = arith.constant 0 : index
    %c0_10 = arith.constant 0 : index
    %10 = vector.load %arg8[%c0_9, %c0_10] : memref<32x32xbf16, #tpu.memory_space<vmem>>, vector<32x32xbf16>
    %cst_11 = arith.constant dense<0.000000e+00> : vector<16x32xf32>
    %11 = tpu.matmul %9, %10, %cst_11 {dimension_numbers = #tpu.dot_dimension_numbers<[1], [0], [0], [1], [0, 0, 1, 1], [], []>} : vector<16x32xbf16>, vector<32x32xbf16>, vector<16x32xf32> -> vector<16x32xf32>
    %c0_12 = arith.constant 0 : index
    %c0_13 = arith.constant 0 : index
    %12 = vector.load %arg9[%c0_12, %c0_13] : memref<1x32xf32, #tpu.memory_space<vmem>>, vector<1x32xf32>
    %13 = vector.broadcast %12 : vector<1x32xf32> to vector<16x32xf32>
    %14 = arith.addf %11, %13 : vector<16x32xf32>
    %15 = math.tanh %14 : vector<16x32xf32>
    %c0_14 = arith.constant 0 : index
    %c0_15 = arith.constant 0 : index
    %16 = vector.load %arg2[%c0_14, %c0_15] : memref<2x24xbf16, #tpu.memory_space<vmem>>, vector<2x24xbf16>
    %c0_16 = arith.constant 0 : index
    %c0_17 = arith.constant 0 : index
    %17 = vector.load %arg3[%c0_16, %c0_17] : memref<2x24xbf16, #tpu.memory_space<vmem>>, vector<2x24xbf16>
    %c0_18 = arith.constant 0 : index
    %c0_19 = arith.constant 0 : index
    %18 = vector.load %arg10[%c0_18, %c0_19] : memref<32x64xbf16, #tpu.memory_space<vmem>>, vector<32x64xbf16>
    %c0_20 = arith.constant 0 : index
    %c0_21 = arith.constant 0 : index
    %19 = vector.load %arg11[%c0_20, %c0_21] : memref<1x64xf32, #tpu.memory_space<vmem>>, vector<1x64xf32>
    %20 = arith.truncf %6 : vector<24x32xf32> to vector<24x32xbf16>
    %cst_22 = arith.constant dense<0.000000e+00> : vector<2x32xf32>
    %21 = tpu.matmul %16, %20, %cst_22 {dimension_numbers = #tpu.dot_dimension_numbers<[1], [0], [0], [1], [0, 0, 1, 1], [], []>} : vector<2x24xbf16>, vector<24x32xbf16>, vector<2x32xf32> -> vector<2x32xf32>
    %cst_23 = arith.constant dense<0.000000e+00> : vector<2x32xf32>
    %22 = tpu.matmul %17, %20, %cst_23 {dimension_numbers = #tpu.dot_dimension_numbers<[1], [0], [0], [1], [0, 0, 1, 1], [], []>} : vector<2x24xbf16>, vector<24x32xbf16>, vector<2x32xf32> -> vector<2x32xf32>
    %23 = arith.truncf %21 : vector<2x32xf32> to vector<2x32xbf16>
    %cst_24 = arith.constant dense<0.000000e+00> : vector<2x64xf32>
    %24 = tpu.matmul %23, %18, %cst_24 {dimension_numbers = #tpu.dot_dimension_numbers<[1], [0], [0], [1], [0, 0, 1, 1], [], []>} : vector<2x32xbf16>, vector<32x64xbf16>, vector<2x64xf32> -> vector<2x64xf32>
    %25 = vector.broadcast %19 : vector<1x64xf32> to vector<2x64xf32>
    %26 = arith.addf %24, %25 : vector<2x64xf32>
    %27 = tpu.iota {dimensions = array<i32: 1>} : vector<2x64xi32>
    %c32_i32 = arith.constant 32 : i32
    %28 = vector.broadcast %c32_i32 : i32 to vector<2x64xi32>
    %29 = arith.cmpi slt, %27, %28 : vector<2x64xi32>
    %30 = arith.extui %29 : vector<2x64xi1> to vector<2x64xi32>
    %31 = arith.sitofp %30 : vector<2x64xi32> to vector<2x64xf32>
    %32 = arith.mulf %26, %26 : vector<2x64xf32>
    %33 = arith.mulf %32, %31 : vector<2x64xf32>
    %cst_25 = arith.constant dense<0.000000e+00> : vector<2xf32>
    %34 = vector.multi_reduction <add>, %33, %cst_25 [1] : vector<2x64xf32> to vector<2xf32>
    %35 = vector.shape_cast %34 : vector<2xf32> to vector<2x1xf32>
    %cst_26 = arith.constant 1.000000e+00 : f32
    %36 = vector.broadcast %cst_26 : f32 to vector<2x64xf32>
    %37 = arith.subf %36, %31 : vector<2x64xf32>
    %38 = arith.mulf %32, %37 : vector<2x64xf32>
    %cst_27 = arith.constant dense<0.000000e+00> : vector<2xf32>
    %39 = vector.multi_reduction <add>, %38, %cst_27 [1] : vector<2x64xf32> to vector<2xf32>
    %40 = vector.shape_cast %39 : vector<2xf32> to vector<2x1xf32>
    %cst_28 = arith.constant 1.000000e-24 : f32
    %41 = vector.broadcast %cst_28 : f32 to vector<2x1xf32>
    %42 = arith.maximumf %35, %41 : vector<2x1xf32>
    %43 = math.rsqrt %42 : vector<2x1xf32>
    %44 = vector.broadcast %43 : vector<2x1xf32> to vector<2x64xf32>
    %45 = arith.mulf %31, %44 : vector<2x64xf32>
    %cst_29 = arith.constant 1.000000e+00 : f32
    %46 = vector.broadcast %cst_29 : f32 to vector<2x64xf32>
    %47 = arith.subf %46, %31 : vector<2x64xf32>
    %cst_30 = arith.constant 1.000000e-24 : f32
    %48 = vector.broadcast %cst_30 : f32 to vector<2x1xf32>
    %49 = arith.maximumf %40, %48 : vector<2x1xf32>
    %50 = math.rsqrt %49 : vector<2x1xf32>
    %51 = vector.broadcast %50 : vector<2x1xf32> to vector<2x64xf32>
    %52 = arith.mulf %47, %51 : vector<2x64xf32>
    %53 = arith.addf %45, %52 : vector<2x64xf32>
    %54 = arith.mulf %26, %53 : vector<2x64xf32>
    %55 = tpu.concatenate %21, %22, %54 in 1 : vector<2x32xf32>, vector<2x32xf32>, vector<2x64xf32> -> vector<2x128xf32>
    %c0_31 = arith.constant 0 : index
    %c0_32 = arith.constant 0 : index
    %56 = vector.load %arg15[%c0_31, %c0_32] : memref<2x128xf32, #tpu.memory_space<vmem>>, vector<2x128xf32>
    tpu.vector_store %arg15[%c0_31, %c0_32], %55 {strides = array<i32>} : memref<2x128xf32, #tpu.memory_space<vmem>>, vector<2x128xf32>,
    %c0_33 = arith.constant 0 : index
    %c0_34 = arith.constant 0 : index
    %57 = vector.load %arg4[%c0_33, %c0_34] : memref<2x16xbf16, #tpu.memory_space<vmem>>, vector<2x16xbf16>
    %c0_35 = arith.constant 0 : index
    %c0_36 = arith.constant 0 : index
    %58 = vector.load %arg5[%c0_35, %c0_36] : memref<2x16xbf16, #tpu.memory_space<vmem>>, vector<2x16xbf16>
    %c0_37 = arith.constant 0 : index
    %c0_38 = arith.constant 0 : index
    %59 = vector.load %arg12[%c0_37, %c0_38] : memref<32x64xbf16, #tpu.memory_space<vmem>>, vector<32x64xbf16>
    %c0_39 = arith.constant 0 : index
    %c0_40 = arith.constant 0 : index
    %60 = vector.load %arg13[%c0_39, %c0_40] : memref<1x64xf32, #tpu.memory_space<vmem>>, vector<1x64xf32>
    %61 = arith.truncf %15 : vector<16x32xf32> to vector<16x32xbf16>
    %cst_41 = arith.constant dense<0.000000e+00> : vector<2x32xf32>
    %62 = tpu.matmul %57, %61, %cst_41 {dimension_numbers = #tpu.dot_dimension_numbers<[1], [0], [0], [1], [0, 0, 1, 1], [], []>} : vector<2x16xbf16>, vector<16x32xbf16>, vector<2x32xf32> -> vector<2x32xf32>
    %cst_42 = arith.constant dense<0.000000e+00> : vector<2x32xf32>
    %63 = tpu.matmul %58, %61, %cst_42 {dimension_numbers = #tpu.dot_dimension_numbers<[1], [0], [0], [1], [0, 0, 1, 1], [], []>} : vector<2x16xbf16>, vector<16x32xbf16>, vector<2x32xf32> -> vector<2x32xf32>
    %64 = arith.truncf %62 : vector<2x32xf32> to vector<2x32xbf16>
    %cst_43 = arith.constant dense<0.000000e+00> : vector<2x64xf32>
    %65 = tpu.matmul %64, %59, %cst_43 {dimension_numbers = #tpu.dot_dimension_numbers<[1], [0], [0], [1], [0, 0, 1, 1], [], []>} : vector<2x32xbf16>, vector<32x64xbf16>, vector<2x64xf32> -> vector<2x64xf32>
    %66 = vector.broadcast %60 : vector<1x64xf32> to vector<2x64xf32>
    %67 = arith.addf %65, %66 : vector<2x64xf32>
    %68 = tpu.iota {dimensions = array<i32: 1>} : vector<2x64xi32>
    %c32_i32_44 = arith.constant 32 : i32
    %69 = vector.broadcast %c32_i32_44 : i32 to vector<2x64xi32>
    %70 = arith.cmpi slt, %68, %69 : vector<2x64xi32>
    %71 = arith.extui %70 : vector<2x64xi1> to vector<2x64xi32>
    %72 = arith.sitofp %71 : vector<2x64xi32> to vector<2x64xf32>
    %73 = arith.mulf %67, %67 : vector<2x64xf32>
    %74 = arith.mulf %73, %72 : vector<2x64xf32>
    %cst_45 = arith.constant dense<0.000000e+00> : vector<2xf32>
    %75 = vector.multi_reduction <add>, %74, %cst_45 [1] : vector<2x64xf32> to vector<2xf32>
    %76 = vector.shape_cast %75 : vector<2xf32> to vector<2x1xf32>
    %cst_46 = arith.constant 1.000000e+00 : f32
    %77 = vector.broadcast %cst_46 : f32 to vector<2x64xf32>
    %78 = arith.subf %77, %72 : vector<2x64xf32>
    %79 = arith.mulf %73, %78 : vector<2x64xf32>
    %cst_47 = arith.constant dense<0.000000e+00> : vector<2xf32>
    %80 = vector.multi_reduction <add>, %79, %cst_47 [1] : vector<2x64xf32> to vector<2xf32>
    %81 = vector.shape_cast %80 : vector<2xf32> to vector<2x1xf32>
    %cst_48 = arith.constant 1.000000e-24 : f32
    %82 = vector.broadcast %cst_48 : f32 to vector<2x1xf32>
    %83 = arith.maximumf %76, %82 : vector<2x1xf32>
    %84 = math.rsqrt %83 : vector<2x1xf32>
    %85 = vector.broadcast %84 : vector<2x1xf32> to vector<2x64xf32>
    %86 = arith.mulf %72, %85 : vector<2x64xf32>
    %cst_49 = arith.constant 1.000000e+00 : f32
    %87 = vector.broadcast %cst_49 : f32 to vector<2x64xf32>
    %88 = arith.subf %87, %72 : vector<2x64xf32>
    %cst_50 = arith.constant 1.000000e-24 : f32
    %89 = vector.broadcast %cst_50 : f32 to vector<2x1xf32>
    %90 = arith.maximumf %81, %89 : vector<2x1xf32>
    %91 = math.rsqrt %90 : vector<2x1xf32>
    %92 = vector.broadcast %91 : vector<2x1xf32> to vector<2x64xf32>
    %93 = arith.mulf %88, %92 : vector<2x64xf32>
    %94 = arith.addf %86, %93 : vector<2x64xf32>
    %95 = arith.mulf %67, %94 : vector<2x64xf32>
    %96 = tpu.concatenate %62, %63, %95 in 1 : vector<2x32xf32>, vector<2x32xf32>, vector<2x64xf32> -> vector<2x128xf32>
    %c0_51 = arith.constant 0 : index
    %c0_52 = arith.constant 0 : index
    %97 = vector.load %arg16[%c0_51, %c0_52] : memref<2x128xf32, #tpu.memory_space<vmem>>, vector<2x128xf32>
    tpu.vector_store %arg16[%c0_51, %c0_52], %96 {strides = array<i32>} : memref<2x128xf32, #tpu.memory_space<vmem>>, vector<2x128xf32>,
    return
  }
}

module attributes {stable_mosaic.version = 11 : i64} {
  func.func @_contrastive_kernel(%arg0: memref<8x32xbf16, #tpu.memory_space<vmem>>, %arg1: memref<32x10xbf16, #tpu.memory_space<vmem>>, %arg2: memref<32x10xbf16, #tpu.memory_space<vmem>>, %arg3: memref<1x1xf32, #tpu.memory_space<smem>>, %arg4: memref<1x1xf32, #tpu.memory_space<smem>>, %arg5: memref<1x1xf32, #tpu.memory_space<vmem>>, %arg6: memref<8x2xf32, #tpu.memory_space<vmem>>) attributes {dimension_semantics = [], scalar_prefetch = 0 : i64, scratch_operands = 0 : i64, tpu.core_type = #tpu.core_type<tc>} {
    %c0 = arith.constant 0 : index
    %c0_0 = arith.constant 0 : index
    %0 = memref.load %arg4[%c0, %c0_0] : memref<1x1xf32, #tpu.memory_space<smem>>
    %c0_1 = arith.constant 0 : index
    %c0_2 = arith.constant 0 : index
    %1 = memref.load %arg3[%c0_1, %c0_2] : memref<1x1xf32, #tpu.memory_space<smem>>
    %c0_3 = arith.constant 0 : index
    %c0_4 = arith.constant 0 : index
    %2 = vector.load %arg0[%c0_3, %c0_4] : memref<8x32xbf16, #tpu.memory_space<vmem>>, vector<8x32xbf16>
    %c0_5 = arith.constant 0 : index
    %c0_6 = arith.constant 0 : index
    %3 = vector.load %arg1[%c0_5, %c0_6] : memref<32x10xbf16, #tpu.memory_space<vmem>>, vector<32x10xbf16>
    %cst = arith.constant dense<0.000000e+00> : vector<8x10xf32>
    %4 = tpu.matmul %2, %3, %cst {dimension_numbers = #tpu.dot_dimension_numbers<[1], [0], [0], [1], [0, 0, 1, 1], [], []>} : vector<8x32xbf16>, vector<32x10xbf16>, vector<8x10xf32> -> vector<8x10xf32>
    %5 = vector.broadcast %0 : f32 to vector<8x10xf32>
    %6 = arith.mulf %4, %5 : vector<8x10xf32>
    %c0_7 = arith.constant 0 : index
    %c0_8 = arith.constant 0 : index
    %7 = vector.load %arg2[%c0_7, %c0_8] : memref<32x10xbf16, #tpu.memory_space<vmem>>, vector<32x10xbf16>
    %cst_9 = arith.constant dense<0.000000e+00> : vector<8x10xf32>
    %8 = tpu.matmul %2, %7, %cst_9 {dimension_numbers = #tpu.dot_dimension_numbers<[1], [0], [0], [1], [0, 0, 1, 1], [], []>} : vector<8x32xbf16>, vector<32x10xbf16>, vector<8x10xf32> -> vector<8x10xf32>
    %9 = vector.broadcast %0 : f32 to vector<8x10xf32>
    %10 = arith.mulf %8, %9 : vector<8x10xf32>
    %11 = tpu.iota {dimensions = array<i32: 0>} : vector<8x10xi32>
    %12 = tpu.iota {dimensions = array<i32: 1>} : vector<8x10xi32>
    %13 = arith.cmpi eq, %12, %11 : vector<8x10xi32>
    %c2_i32 = arith.constant 2 : i32
    %14 = vector.broadcast %c2_i32 : i32 to vector<8x10xi32>
    %15 = arith.cmpi slt, %11, %14 : vector<8x10xi32>
    %16 = arith.andi %13, %15 : vector<8x10xi1>
    %c2_i32_10 = arith.constant 2 : i32
    %17 = vector.broadcast %c2_i32_10 : i32 to vector<8x10xi32>
    %18 = arith.subi %11, %17 : vector<8x10xi32>
    %19 = arith.cmpi eq, %12, %18 : vector<8x10xi32>
    %c2_i32_11 = arith.constant 2 : i32
    %20 = vector.broadcast %c2_i32_11 : i32 to vector<8x10xi32>
    %21 = arith.cmpi sge, %11, %20 : vector<8x10xi32>
    %22 = arith.andi %19, %21 : vector<8x10xi1>
    %c4_i32 = arith.constant 4 : i32
    %23 = vector.broadcast %c4_i32 : i32 to vector<8x10xi32>
    %24 = arith.cmpi slt, %11, %23 : vector<8x10xi32>
    %25 = arith.andi %22, %24 : vector<8x10xi1>
    %26 = arith.ori %16, %25 : vector<8x10xi1>
    %27 = arith.extui %26 : vector<8x10xi1> to vector<8x10xi32>
    %28 = arith.sitofp %27 : vector<8x10xi32> to vector<8x10xf32>
    %29 = tpu.iota {dimensions = array<i32: 0>} : vector<8x8xi32>
    %30 = tpu.iota {dimensions = array<i32: 1>} : vector<8x8xi32>
    %c4_i32_12 = arith.constant 4 : i32
    %31 = vector.broadcast %c4_i32_12 : i32 to vector<8x8xi32>
    %32 = arith.addi %29, %31 : vector<8x8xi32>
    %33 = arith.cmpi eq, %30, %32 : vector<8x8xi32>
    %34 = arith.extui %33 : vector<8x8xi1> to vector<8x8xi32>
    %35 = arith.sitofp %34 : vector<8x8xi32> to vector<8x8xf32>
    %cst_13 = arith.constant dense<0xFF800000> : vector<8xf32>
    %36 = vector.multi_reduction <maximumf>, %6, %cst_13 [1] : vector<8x10xf32> to vector<8xf32>
    %37 = vector.shape_cast %36 : vector<8xf32> to vector<8x1xf32>
    %38 = vector.broadcast %37 : vector<8x1xf32> to vector<8x10xf32>
    %39 = arith.subf %6, %38 : vector<8x10xf32>
    %40 = math.exp %39 : vector<8x10xf32>
    %cst_14 = arith.constant dense<0.000000e+00> : vector<8xf32>
    %41 = vector.multi_reduction <add>, %40, %cst_14 [1] : vector<8x10xf32> to vector<8xf32>
    %42 = vector.shape_cast %41 : vector<8xf32> to vector<8x1xf32>
    %43 = vector.broadcast %37 : vector<8x1xf32> to vector<8x10xf32>
    %44 = arith.subf %6, %43 : vector<8x10xf32>
    %45 = math.log %42 : vector<8x1xf32>
    %46 = vector.broadcast %45 : vector<8x1xf32> to vector<8x10xf32>
    %47 = arith.subf %44, %46 : vector<8x10xf32>
    %48 = vector.broadcast %42 : vector<8x1xf32> to vector<8x10xf32>
    %49 = arith.divf %40, %48 : vector<8x10xf32>
    %cst_15 = arith.constant dense<0.000000e+00> : vector<8x8xf32>
    %50 = tpu.matmul %47, %49, %cst_15 {dimension_numbers = #tpu.dot_dimension_numbers<[1], [1], [0], [0], [0, 0, 1, 0], [], []>} : vector<8x10xf32>, vector<8x10xf32>, vector<8x8xf32> -> vector<8x8xf32>
    %51 = arith.mulf %50, %35 : vector<8x8xf32>
    %cst_16 = arith.constant dense<0.000000e+00> : vector<8xf32>
    %52 = vector.multi_reduction <add>, %51, %cst_16 [1] : vector<8x8xf32> to vector<8xf32>
    %53 = vector.shape_cast %52 : vector<8xf32> to vector<8x1xf32>
    %cst_17 = arith.constant dense<0.000000e+00> : vector<1xf32>
    %54 = vector.multi_reduction <add>, %53, %cst_17 [0] : vector<8x1xf32> to vector<1xf32>
    %55 = vector.shape_cast %54 : vector<1xf32> to vector<1x1xf32>
    %56 = arith.mulf %47, %28 : vector<8x10xf32>
    %cst_18 = arith.constant dense<0.000000e+00> : vector<8xf32>
    %57 = vector.multi_reduction <add>, %56, %cst_18 [1] : vector<8x10xf32> to vector<8xf32>
    %58 = vector.shape_cast %57 : vector<8xf32> to vector<8x1xf32>
    %cst_19 = arith.constant dense<0.000000e+00> : vector<1xf32>
    %59 = vector.multi_reduction <add>, %58, %cst_19 [0] : vector<8x1xf32> to vector<1xf32>
    %60 = vector.shape_cast %59 : vector<1xf32> to vector<1x1xf32>
    %61 = vector.broadcast %1 : f32 to vector<1x1xf32>
    %62 = arith.mulf %61, %55 : vector<1x1xf32>
    %cst_20 = arith.constant 1.000000e+00 : f32
    %63 = arith.subf %cst_20, %1 : f32
    %64 = vector.broadcast %63 : f32 to vector<1x1xf32>
    %65 = arith.mulf %64, %60 : vector<1x1xf32>
    %66 = arith.addf %62, %65 : vector<1x1xf32>
    %cst_21 = arith.constant 0.000000e+00 : f32
    %67 = vector.broadcast %cst_21 : f32 to vector<1x1xf32>
    %68 = arith.subf %67, %66 : vector<1x1xf32>
    %cst_22 = arith.constant dense<0xFF800000> : vector<8xf32>
    %69 = vector.multi_reduction <maximumf>, %10, %cst_22 [1] : vector<8x10xf32> to vector<8xf32>
    %70 = vector.shape_cast %69 : vector<8xf32> to vector<8x1xf32>
    %71 = vector.broadcast %70 : vector<8x1xf32> to vector<8x10xf32>
    %72 = arith.subf %10, %71 : vector<8x10xf32>
    %73 = math.exp %72 : vector<8x10xf32>
    %cst_23 = arith.constant dense<0.000000e+00> : vector<8xf32>
    %74 = vector.multi_reduction <add>, %73, %cst_23 [1] : vector<8x10xf32> to vector<8xf32>
    %75 = vector.shape_cast %74 : vector<8xf32> to vector<8x1xf32>
    %76 = vector.broadcast %70 : vector<8x1xf32> to vector<8x10xf32>
    %77 = arith.subf %10, %76 : vector<8x10xf32>
    %78 = math.log %75 : vector<8x1xf32>
    %79 = vector.broadcast %78 : vector<8x1xf32> to vector<8x10xf32>
    %80 = arith.subf %77, %79 : vector<8x10xf32>
    %81 = vector.broadcast %75 : vector<8x1xf32> to vector<8x10xf32>
    %82 = arith.divf %73, %81 : vector<8x10xf32>
    %cst_24 = arith.constant dense<0.000000e+00> : vector<8x8xf32>
    %83 = tpu.matmul %80, %82, %cst_24 {dimension_numbers = #tpu.dot_dimension_numbers<[1], [1], [0], [0], [0, 0, 1, 0], [], []>} : vector<8x10xf32>, vector<8x10xf32>, vector<8x8xf32> -> vector<8x8xf32>
    %84 = arith.mulf %83, %35 : vector<8x8xf32>
    %cst_25 = arith.constant dense<0.000000e+00> : vector<8xf32>
    %85 = vector.multi_reduction <add>, %84, %cst_25 [1] : vector<8x8xf32> to vector<8xf32>
    %86 = vector.shape_cast %85 : vector<8xf32> to vector<8x1xf32>
    %cst_26 = arith.constant dense<0.000000e+00> : vector<1xf32>
    %87 = vector.multi_reduction <add>, %86, %cst_26 [0] : vector<8x1xf32> to vector<1xf32>
    %88 = vector.shape_cast %87 : vector<1xf32> to vector<1x1xf32>
    %89 = arith.mulf %80, %28 : vector<8x10xf32>
    %cst_27 = arith.constant dense<0.000000e+00> : vector<8xf32>
    %90 = vector.multi_reduction <add>, %89, %cst_27 [1] : vector<8x10xf32> to vector<8xf32>
    %91 = vector.shape_cast %90 : vector<8xf32> to vector<8x1xf32>
    %cst_28 = arith.constant dense<0.000000e+00> : vector<1xf32>
    %92 = vector.multi_reduction <add>, %91, %cst_28 [0] : vector<8x1xf32> to vector<1xf32>
    %93 = vector.shape_cast %92 : vector<1xf32> to vector<1x1xf32>
    %94 = vector.broadcast %1 : f32 to vector<1x1xf32>
    %95 = arith.mulf %94, %88 : vector<1x1xf32>
    %cst_29 = arith.constant 1.000000e+00 : f32
    %96 = arith.subf %cst_29, %1 : f32
    %97 = vector.broadcast %96 : f32 to vector<1x1xf32>
    %98 = arith.mulf %97, %93 : vector<1x1xf32>
    %99 = arith.addf %95, %98 : vector<1x1xf32>
    %cst_30 = arith.constant 0.000000e+00 : f32
    %100 = vector.broadcast %cst_30 : f32 to vector<1x1xf32>
    %101 = arith.subf %100, %99 : vector<1x1xf32>
    %102 = arith.addf %68, %101 : vector<1x1xf32>
    %cst_31 = arith.constant 4.000000e+00 : f32
    %103 = vector.broadcast %cst_31 : f32 to vector<1x1xf32>
    %104 = arith.divf %102, %103 : vector<1x1xf32>
    %c0_32 = arith.constant 0 : index
    %c0_33 = arith.constant 0 : index
    %105 = vector.load %arg5[%c0_32, %c0_33] : memref<1x1xf32, #tpu.memory_space<vmem>>, vector<1x1xf32>
    tpu.vector_store %arg5[%c0_32, %c0_33], %104 {strides = array<i32>} : memref<1x1xf32, #tpu.memory_space<vmem>>, vector<1x1xf32>,
    %106 = vector.extract_strided_slice %10 {offsets = [0, 0], sizes = [8, 2], strides = [1, 1]} : vector<8x10xf32> to vector<8x2xf32>
    %107 = vector.extract_strided_slice %6 {offsets = [0, 0], sizes = [8, 2], strides = [1, 1]} : vector<8x10xf32> to vector<8x2xf32>
    %108 = tpu.iota {dimensions = array<i32: 0>} : vector<8x2xi32>
    %109 = tpu.iota {dimensions = array<i32: 1>} : vector<8x2xi32>
    %110 = arith.cmpi eq, %109, %108 : vector<8x2xi32>
    %c2_i32_34 = arith.constant 2 : i32
    %111 = vector.broadcast %c2_i32_34 : i32 to vector<8x2xi32>
    %112 = arith.subi %108, %111 : vector<8x2xi32>
    %113 = arith.cmpi eq, %109, %112 : vector<8x2xi32>
    %114 = arith.ori %110, %113 : vector<8x2xi1>
    %115 = arith.extui %114 : vector<8x2xi1> to vector<8x2xi32>
    %116 = arith.sitofp %115 : vector<8x2xi32> to vector<8x2xf32>
    %cst_35 = arith.constant 1.000000e+00 : f32
    %117 = vector.broadcast %cst_35 : f32 to vector<8x2xf32>
    %118 = arith.subf %117, %116 : vector<8x2xf32>
    %c2_i32_36 = arith.constant 2 : i32
    %119 = vector.broadcast %c2_i32_36 : i32 to vector<8x2xi32>
    %120 = arith.cmpi slt, %108, %119 : vector<8x2xi32>
    %cst_37 = arith.constant dense<0xFF800000> : vector<8xf32>
    %121 = vector.multi_reduction <maximumf>, %106, %cst_37 [1] : vector<8x2xf32> to vector<8xf32>
    %122 = vector.shape_cast %121 : vector<8xf32> to vector<8x1xf32>
    %123 = vector.broadcast %122 : vector<8x1xf32> to vector<8x2xf32>
    %124 = arith.subf %106, %123 : vector<8x2xf32>
    %125 = math.exp %124 : vector<8x2xf32>
    %cst_38 = arith.constant dense<0.000000e+00> : vector<8xf32>
    %126 = vector.multi_reduction <add>, %125, %cst_38 [1] : vector<8x2xf32> to vector<8xf32>
    %127 = vector.shape_cast %126 : vector<8xf32> to vector<8x1xf32>
    %128 = vector.broadcast %127 : vector<8x1xf32> to vector<8x2xf32>
    %129 = arith.divf %125, %128 : vector<8x2xf32>
    %cst_39 = arith.constant dense<0xFF800000> : vector<8xf32>
    %130 = vector.multi_reduction <maximumf>, %107, %cst_39 [1] : vector<8x2xf32> to vector<8xf32>
    %131 = vector.shape_cast %130 : vector<8xf32> to vector<8x1xf32>
    %132 = vector.broadcast %131 : vector<8x1xf32> to vector<8x2xf32>
    %133 = arith.subf %107, %132 : vector<8x2xf32>
    %134 = math.exp %133 : vector<8x2xf32>
    %cst_40 = arith.constant dense<0.000000e+00> : vector<8xf32>
    %135 = vector.multi_reduction <add>, %134, %cst_40 [1] : vector<8x2xf32> to vector<8xf32>
    %136 = vector.shape_cast %135 : vector<8xf32> to vector<8x1xf32>
    %137 = vector.broadcast %136 : vector<8x1xf32> to vector<8x2xf32>
    %138 = arith.divf %134, %137 : vector<8x2xf32>
    %139 = arith.select %120, %129, %138 : vector<8x2xi1>, vector<8x2xf32>
    %140 = arith.mulf %139, %118 : vector<8x2xf32>
    %c0_41 = arith.constant 0 : index
    %c0_42 = arith.constant 0 : index
    %141 = vector.load %arg6[%c0_41, %c0_42] : memref<8x2xf32, #tpu.memory_space<vmem>>, vector<8x2xf32>
    tpu.vector_store %arg6[%c0_41, %c0_42], %140 {strides = array<i32>} : memref<8x2xf32, #tpu.memory_space<vmem>>, vector<8x2xf32>,
    return
  }
}

module attributes {stable_mosaic.version = 11 : i64} {
  func.func @_psm_kernel(%arg0: memref<2x128xf32, #tpu.memory_space<vmem>>, %arg1: memref<8x1xi32, #tpu.memory_space<vmem>>, %arg2: memref<8x1xi32, #tpu.memory_space<vmem>>, %arg3: memref<128x64xbf16, #tpu.memory_space<vmem>>, %arg4: memref<1x64xf32, #tpu.memory_space<vmem>>, %arg5: memref<64x2xbf16, #tpu.memory_space<vmem>>, %arg6: memref<1x2xf32, #tpu.memory_space<vmem>>, %arg7: memref<1x1xf32, #tpu.memory_space<vmem>>) attributes {dimension_semantics = [], scalar_prefetch = 0 : i64, scratch_operands = 0 : i64, tpu.core_type = #tpu.core_type<tc>} {
    %c0 = arith.constant 0 : index
    %c0_0 = arith.constant 0 : index
    %0 = vector.load %arg0[%c0, %c0_0] : memref<2x128xf32, #tpu.memory_space<vmem>>, vector<2x128xf32>
    %1 = tpu.iota {dimensions = array<i32: 1>} : vector<8x2xi32>
    %c0_1 = arith.constant 0 : index
    %c0_2 = arith.constant 0 : index
    %2 = vector.load %arg1[%c0_1, %c0_2] : memref<8x1xi32, #tpu.memory_space<vmem>>, vector<8x1xi32>
    %3 = vector.broadcast %2 : vector<8x1xi32> to vector<8x2xi32>
    %4 = arith.cmpi eq, %1, %3 : vector<8x2xi32>
    %5 = arith.extui %4 : vector<8x2xi1> to vector<8x2xi32>
    %6 = arith.sitofp %5 : vector<8x2xi32> to vector<8x2xf32>
    %c0_3 = arith.constant 0 : index
    %c0_4 = arith.constant 0 : index
    %7 = vector.load %arg2[%c0_3, %c0_4] : memref<8x1xi32, #tpu.memory_space<vmem>>, vector<8x1xi32>
    %8 = vector.broadcast %7 : vector<8x1xi32> to vector<8x2xi32>
    %9 = arith.cmpi eq, %1, %8 : vector<8x2xi32>
    %10 = arith.extui %9 : vector<8x2xi1> to vector<8x2xi32>
    %11 = arith.sitofp %10 : vector<8x2xi32> to vector<8x2xf32>
    %cst = arith.constant dense<0.000000e+00> : vector<8x128xf32>
    %12 = tpu.matmul %6, %0, %cst {dimension_numbers = #tpu.dot_dimension_numbers<[1], [0], [0], [1], [0, 0, 1, 1], [], []>} : vector<8x2xf32>, vector<2x128xf32>, vector<8x128xf32> -> vector<8x128xf32>
    %cst_5 = arith.constant dense<0.000000e+00> : vector<8x128xf32>
    %13 = tpu.matmul %11, %0, %cst_5 {dimension_numbers = #tpu.dot_dimension_numbers<[1], [0], [0], [1], [0, 0, 1, 1], [], []>} : vector<8x2xf32>, vector<2x128xf32>, vector<8x128xf32> -> vector<8x128xf32>
    %14 = tpu.iota {dimensions = array<i32: 1>} : vector<8x128xi32>
    %c32_i32 = arith.constant 32 : i32
    %15 = vector.broadcast %c32_i32 : i32 to vector<8x128xi32>
    %16 = arith.cmpi slt, %14, %15 : vector<8x128xi32>
    %c96_i32 = arith.constant 96 : i32
    %17 = vector.broadcast %c96_i32 : i32 to vector<8x128xi32>
    %18 = arith.cmpi sge, %14, %17 : vector<8x128xi32>
    %19 = arith.ori %16, %18 : vector<8x128xi1>
    %20 = arith.select %19, %12, %13 : vector<8x128xi1>, vector<8x128xf32>
    %21 = arith.truncf %20 : vector<8x128xf32> to vector<8x128xbf16>
    %c0_6 = arith.constant 0 : index
    %c0_7 = arith.constant 0 : index
    %22 = vector.load %arg3[%c0_6, %c0_7] : memref<128x64xbf16, #tpu.memory_space<vmem>>, vector<128x64xbf16>
    %cst_8 = arith.constant dense<0.000000e+00> : vector<8x64xf32>
    %23 = tpu.matmul %21, %22, %cst_8 {dimension_numbers = #tpu.dot_dimension_numbers<[1], [0], [0], [1], [0, 0, 1, 1], [], []>} : vector<8x128xbf16>, vector<128x64xbf16>, vector<8x64xf32> -> vector<8x64xf32>
    %c0_9 = arith.constant 0 : index
    %c0_10 = arith.constant 0 : index
    %24 = vector.load %arg4[%c0_9, %c0_10] : memref<1x64xf32, #tpu.memory_space<vmem>>, vector<1x64xf32>
    %25 = vector.broadcast %24 : vector<1x64xf32> to vector<8x64xf32>
    %26 = arith.addf %23, %25 : vector<8x64xf32>
    %27 = math.tanh %26 : vector<8x64xf32>
    %28 = arith.truncf %27 : vector<8x64xf32> to vector<8x64xbf16>
    %c0_11 = arith.constant 0 : index
    %c0_12 = arith.constant 0 : index
    %29 = vector.load %arg5[%c0_11, %c0_12] : memref<64x2xbf16, #tpu.memory_space<vmem>>, vector<64x2xbf16>
    %cst_13 = arith.constant dense<0.000000e+00> : vector<8x2xf32>
    %30 = tpu.matmul %28, %29, %cst_13 {dimension_numbers = #tpu.dot_dimension_numbers<[1], [0], [0], [1], [0, 0, 1, 1], [], []>} : vector<8x64xbf16>, vector<64x2xbf16>, vector<8x2xf32> -> vector<8x2xf32>
    %c0_14 = arith.constant 0 : index
    %c0_15 = arith.constant 0 : index
    %31 = vector.load %arg6[%c0_14, %c0_15] : memref<1x2xf32, #tpu.memory_space<vmem>>, vector<1x2xf32>
    %32 = vector.broadcast %31 : vector<1x2xf32> to vector<8x2xf32>
    %33 = arith.addf %30, %32 : vector<8x2xf32>
    %34 = tpu.iota {dimensions = array<i32: 0>} : vector<8x2xi32>
    %35 = tpu.iota {dimensions = array<i32: 1>} : vector<8x2xi32>
    %c2_i32 = arith.constant 2 : i32
    %36 = vector.broadcast %c2_i32 : i32 to vector<8x2xi32>
    %37 = arith.cmpi slt, %34, %36 : vector<8x2xi32>
    %38 = arith.extui %37 : vector<8x2xi1> to vector<8x2xi32>
    %39 = arith.cmpi eq, %35, %38 : vector<8x2xi32>
    %40 = arith.extui %39 : vector<8x2xi1> to vector<8x2xi32>
    %41 = arith.sitofp %40 : vector<8x2xi32> to vector<8x2xf32>
    %cst_16 = arith.constant dense<0xFF800000> : vector<8xf32>
    %42 = vector.multi_reduction <maximumf>, %33, %cst_16 [1] : vector<8x2xf32> to vector<8xf32>
    %43 = vector.shape_cast %42 : vector<8xf32> to vector<8x1xf32>
    %44 = vector.broadcast %43 : vector<8x1xf32> to vector<8x2xf32>
    %45 = arith.subf %33, %44 : vector<8x2xf32>
    %46 = math.exp %45 : vector<8x2xf32>
    %cst_17 = arith.constant dense<0.000000e+00> : vector<8xf32>
    %47 = vector.multi_reduction <add>, %46, %cst_17 [1] : vector<8x2xf32> to vector<8xf32>
    %48 = vector.shape_cast %47 : vector<8xf32> to vector<8x1xf32>
    %49 = math.log %48 : vector<8x1xf32>
    %50 = arith.addf %49, %43 : vector<8x1xf32>
    %51 = arith.mulf %33, %41 : vector<8x2xf32>
    %cst_18 = arith.constant dense<0.000000e+00> : vector<8xf32>
    %52 = vector.multi_reduction <add>, %51, %cst_18 [1] : vector<8x2xf32> to vector<8xf32>
    %53 = vector.shape_cast %52 : vector<8xf32> to vector<8x1xf32>
    %54 = tpu.iota {dimensions = array<i32: 0>} : vector<8x1xi32>
    %c6_i32 = arith.constant 6 : i32
    %55 = vector.broadcast %c6_i32 : i32 to vector<8x1xi32>
    %56 = arith.cmpi slt, %54, %55 : vector<8x1xi32>
    %57 = arith.extui %56 : vector<8x1xi1> to vector<8x1xi32>
    %58 = arith.sitofp %57 : vector<8x1xi32> to vector<8x1xf32>
    %59 = arith.subf %50, %53 : vector<8x1xf32>
    %60 = arith.mulf %59, %58 : vector<8x1xf32>
    %cst_19 = arith.constant dense<0.000000e+00> : vector<1xf32>
    %61 = vector.multi_reduction <add>, %60, %cst_19 [0] : vector<8x1xf32> to vector<1xf32>
    %62 = vector.shape_cast %61 : vector<1xf32> to vector<1x1xf32>
    %cst_20 = arith.constant 6.000000e+00 : f32
    %63 = vector.broadcast %cst_20 : f32 to vector<1x1xf32>
    %64 = arith.divf %62, %63 : vector<1x1xf32>
    %c0_21 = arith.constant 0 : index
    %c0_22 = arith.constant 0 : index
    %65 = vector.load %arg7[%c0_21, %c0_22] : memref<1x1xf32, #tpu.memory_space<vmem>>, vector<1x1xf32>
    tpu.vector_store %arg7[%c0_21, %c0_22], %64 {strides = array<i32>} : memref<1x1xf32, #tpu.memory_space<vmem>>, vector<1x1xf32>,
    return
  }
}

module attributes {stable_mosaic.version = 11 : i64} {
  func.func @_npp_kernel(%arg0: memref<24x32xbf16, #tpu.memory_space<vmem>>, %arg1: memref<2x32xbf16, #tpu.memory_space<vmem>>, %arg2: memref<32x32xbf16, #tpu.memory_space<vmem>>, %arg3: memref<32x32xbf16, #tpu.memory_space<vmem>>, %arg4: memref<1x32xf32, #tpu.memory_space<vmem>>, %arg5: memref<32x32xbf16, #tpu.memory_space<vmem>>, %arg6: memref<1x32xf32, #tpu.memory_space<vmem>>, %arg7: memref<1x32xf32, #tpu.memory_space<vmem>>, %arg8: memref<1x32xf32, #tpu.memory_space<vmem>>, %arg9: memref<1x32xf32, #tpu.memory_space<vmem>>, %arg10: memref<1x1xf32, #tpu.memory_space<vmem>>, %arg11: memref<24x1xf32, #tpu.memory_space<vmem>>, %arg12: memref<24x1xf32, #tpu.memory_space<vmem>>, %arg13: memref<1x1xf32, #tpu.memory_space<vmem>>) attributes {dimension_semantics = [], scalar_prefetch = 0 : i64, scratch_operands = 0 : i64, tpu.core_type = #tpu.core_type<tc>} {
    %c0 = arith.constant 0 : index
    %c0_0 = arith.constant 0 : index
    %0 = vector.load %arg1[%c0, %c0_0] : memref<2x32xbf16, #tpu.memory_space<vmem>>, vector<2x32xbf16>
    %c0_1 = arith.constant 0 : index
    %c0_2 = arith.constant 0 : index
    %1 = vector.load %arg3[%c0_1, %c0_2] : memref<32x32xbf16, #tpu.memory_space<vmem>>, vector<32x32xbf16>
    %cst = arith.constant dense<0.000000e+00> : vector<2x32xf32>
    %2 = tpu.matmul %0, %1, %cst {dimension_numbers = #tpu.dot_dimension_numbers<[1], [0], [0], [1], [0, 0, 1, 1], [], []>} : vector<2x32xbf16>, vector<32x32xbf16>, vector<2x32xf32> -> vector<2x32xf32>
    %3 = tpu.iota {dimensions = array<i32: 0>} : vector<24x2xi32>
    %4 = tpu.iota {dimensions = array<i32: 1>} : vector<24x2xi32>
    %c12_i32 = arith.constant 12 : i32
    %5 = vector.broadcast %c12_i32 : i32 to vector<24x2xi32>
    %6 = arith.muli %4, %5 : vector<24x2xi32>
    %7 = arith.cmpi sge, %3, %6 : vector<24x2xi32>
    %c1_i32 = arith.constant 1 : i32
    %8 = vector.broadcast %c1_i32 : i32 to vector<24x2xi32>
    %9 = arith.addi %4, %8 : vector<24x2xi32>
    %c12_i32_3 = arith.constant 12 : i32
    %10 = vector.broadcast %c12_i32_3 : i32 to vector<24x2xi32>
    %11 = arith.muli %9, %10 : vector<24x2xi32>
    %12 = arith.cmpi slt, %3, %11 : vector<24x2xi32>
    %13 = arith.andi %7, %12 : vector<24x2xi1>
    %14 = arith.extui %13 : vector<24x2xi1> to vector<24x2xi32>
    %15 = arith.sitofp %14 : vector<24x2xi32> to vector<24x2xf32>
    %cst_4 = arith.constant dense<0.000000e+00> : vector<24x32xf32>
    %16 = tpu.matmul %15, %2, %cst_4 {dimension_numbers = #tpu.dot_dimension_numbers<[1], [0], [0], [1], [0, 0, 1, 1], [], []>} : vector<24x2xf32>, vector<2x32xf32>, vector<24x32xf32> -> vector<24x32xf32>
    %c0_5 = arith.constant 0 : index
    %c0_6 = arith.constant 0 : index
    %17 = vector.load %arg0[%c0_5, %c0_6] : memref<24x32xbf16, #tpu.memory_space<vmem>>, vector<24x32xbf16>
    %c0_7 = arith.constant 0 : index
    %c0_8 = arith.constant 0 : index
    %18 = vector.load %arg2[%c0_7, %c0_8] : memref<32x32xbf16, #tpu.memory_space<vmem>>, vector<32x32xbf16>
    %cst_9 = arith.constant dense<0.000000e+00> : vector<24x32xf32>
    %19 = tpu.matmul %17, %18, %cst_9 {dimension_numbers = #tpu.dot_dimension_numbers<[1], [0], [0], [1], [0, 0, 1, 1], [], []>} : vector<24x32xbf16>, vector<32x32xbf16>, vector<24x32xf32> -> vector<24x32xf32>
    %20 = arith.addf %19, %16 : vector<24x32xf32>
    %c0_10 = arith.constant 0 : index
    %c0_11 = arith.constant 0 : index
    %21 = vector.load %arg4[%c0_10, %c0_11] : memref<1x32xf32, #tpu.memory_space<vmem>>, vector<1x32xf32>
    %22 = vector.broadcast %21 : vector<1x32xf32> to vector<24x32xf32>
    %23 = arith.addf %20, %22 : vector<24x32xf32>
    %24 = math.tanh %23 : vector<24x32xf32>
    %25 = arith.truncf %24 : vector<24x32xf32> to vector<24x32xbf16>
    %c0_12 = arith.constant 0 : index
    %c0_13 = arith.constant 0 : index
    %26 = vector.load %arg5[%c0_12, %c0_13] : memref<32x32xbf16, #tpu.memory_space<vmem>>, vector<32x32xbf16>
    %cst_14 = arith.constant dense<0.000000e+00> : vector<24x32xf32>
    %27 = tpu.matmul %25, %26, %cst_14 {dimension_numbers = #tpu.dot_dimension_numbers<[1], [0], [0], [1], [0, 0, 1, 1], [], []>} : vector<24x32xbf16>, vector<32x32xbf16>, vector<24x32xf32> -> vector<24x32xf32>
    %c0_15 = arith.constant 0 : index
    %c0_16 = arith.constant 0 : index
    %28 = vector.load %arg6[%c0_15, %c0_16] : memref<1x32xf32, #tpu.memory_space<vmem>>, vector<1x32xf32>
    %29 = vector.broadcast %28 : vector<1x32xf32> to vector<24x32xf32>
    %30 = arith.addf %27, %29 : vector<24x32xf32>
    %cst_17 = arith.constant 5.000000e-01 : f32
    %31 = vector.broadcast %cst_17 : f32 to vector<24x32xf32>
    %32 = arith.mulf %31, %30 : vector<24x32xf32>
    %cst_18 = arith.constant 0.707106769 : f32
    %33 = vector.broadcast %cst_18 : f32 to vector<24x32xf32>
    %34 = arith.mulf %30, %33 : vector<24x32xf32>
    %35 = math.erf %34 : vector<24x32xf32>
    %cst_19 = arith.constant 1.000000e+00 : f32
    %36 = vector.broadcast %cst_19 : f32 to vector<24x32xf32>
    %37 = arith.addf %36, %35 : vector<24x32xf32>
    %38 = arith.mulf %32, %37 : vector<24x32xf32>
    %cst_20 = arith.constant dense<0.000000e+00> : vector<24xf32>
    %39 = vector.multi_reduction <add>, %38, %cst_20 [1] : vector<24x32xf32> to vector<24xf32>
    %40 = vector.shape_cast %39 : vector<24xf32> to vector<24x1xf32>
    %cst_21 = arith.constant 3.200000e+01 : f32
    %41 = vector.broadcast %cst_21 : f32 to vector<24x1xf32>
    %42 = arith.divf %40, %41 : vector<24x1xf32>
    %43 = vector.broadcast %42 : vector<24x1xf32> to vector<24x32xf32>
    %44 = arith.subf %38, %43 : vector<24x32xf32>
    %45 = arith.mulf %44, %44 : vector<24x32xf32>
    %cst_22 = arith.constant dense<0.000000e+00> : vector<24xf32>
    %46 = vector.multi_reduction <add>, %45, %cst_22 [1] : vector<24x32xf32> to vector<24xf32>
    %47 = vector.shape_cast %46 : vector<24xf32> to vector<24x1xf32>
    %cst_23 = arith.constant 3.200000e+01 : f32
    %48 = vector.broadcast %cst_23 : f32 to vector<24x1xf32>
    %49 = arith.divf %47, %48 : vector<24x1xf32>
    %50 = vector.broadcast %42 : vector<24x1xf32> to vector<24x32xf32>
    %51 = arith.subf %38, %50 : vector<24x32xf32>
    %cst_24 = arith.constant 9.99999996E-13 : f32
    %52 = vector.broadcast %cst_24 : f32 to vector<24x1xf32>
    %53 = arith.addf %49, %52 : vector<24x1xf32>
    %54 = math.rsqrt %53 : vector<24x1xf32>
    %55 = vector.broadcast %54 : vector<24x1xf32> to vector<24x32xf32>
    %56 = arith.mulf %51, %55 : vector<24x32xf32>
    %c0_25 = arith.constant 0 : index
    %c0_26 = arith.constant 0 : index
    %57 = vector.load %arg7[%c0_25, %c0_26] : memref<1x32xf32, #tpu.memory_space<vmem>>, vector<1x32xf32>
    %58 = vector.broadcast %57 : vector<1x32xf32> to vector<24x32xf32>
    %59 = arith.mulf %56, %58 : vector<24x32xf32>
    %c0_27 = arith.constant 0 : index
    %c0_28 = arith.constant 0 : index
    %60 = vector.load %arg8[%c0_27, %c0_28] : memref<1x32xf32, #tpu.memory_space<vmem>>, vector<1x32xf32>
    %61 = vector.broadcast %60 : vector<1x32xf32> to vector<24x32xf32>
    %62 = arith.addf %59, %61 : vector<24x32xf32>
    %c0_29 = arith.constant 0 : index
    %c0_30 = arith.constant 0 : index
    %63 = vector.load %arg9[%c0_29, %c0_30] : memref<1x32xf32, #tpu.memory_space<vmem>>, vector<1x32xf32>
    %64 = vector.broadcast %63 : vector<1x32xf32> to vector<24x32xf32>
    %65 = arith.mulf %62, %64 : vector<24x32xf32>
    %cst_31 = arith.constant dense<0.000000e+00> : vector<24xf32>
    %66 = vector.multi_reduction <add>, %65, %cst_31 [1] : vector<24x32xf32> to vector<24xf32>
    %67 = vector.shape_cast %66 : vector<24xf32> to vector<24x1xf32>
    %c0_32 = arith.constant 0 : index
    %c0_33 = arith.constant 0 : index
    %68 = vector.load %arg10[%c0_32, %c0_33] : memref<1x1xf32, #tpu.memory_space<vmem>>, vector<1x1xf32>
    %69 = vector.broadcast %68 : vector<1x1xf32> to vector<24x1xf32>
    %70 = arith.addf %67, %69 : vector<24x1xf32>
    %c0_34 = arith.constant 0 : index
    %c0_35 = arith.constant 0 : index
    %71 = vector.load %arg12[%c0_34, %c0_35] : memref<24x1xf32, #tpu.memory_space<vmem>>, vector<24x1xf32>
    %c0_36 = arith.constant 0 : index
    %c0_37 = arith.constant 0 : index
    %72 = vector.load %arg11[%c0_36, %c0_37] : memref<24x1xf32, #tpu.memory_space<vmem>>, vector<24x1xf32>
    %73 = arith.subf %70, %72 : vector<24x1xf32>
    %74 = arith.mulf %73, %73 : vector<24x1xf32>
    %75 = arith.mulf %74, %71 : vector<24x1xf32>
    %cst_38 = arith.constant dense<0.000000e+00> : vector<1xf32>
    %76 = vector.multi_reduction <add>, %75, %cst_38 [0] : vector<24x1xf32> to vector<1xf32>
    %77 = vector.shape_cast %76 : vector<1xf32> to vector<1x1xf32>
    %cst_39 = arith.constant dense<0.000000e+00> : vector<1xf32>
    %78 = vector.multi_reduction <add>, %71, %cst_39 [0] : vector<24x1xf32> to vector<1xf32>
    %79 = vector.shape_cast %78 : vector<1xf32> to vector<1x1xf32>
    %cst_40 = arith.constant 1.000000e+00 : f32
    %80 = vector.broadcast %cst_40 : f32 to vector<1x1xf32>
    %81 = arith.maximumf %79, %80 : vector<1x1xf32>
    %82 = arith.divf %77, %81 : vector<1x1xf32>
    %c0_41 = arith.constant 0 : index
    %c0_42 = arith.constant 0 : index
    %83 = vector.load %arg13[%c0_41, %c0_42] : memref<1x1xf32, #tpu.memory_space<vmem>>, vector<1x1xf32>
    tpu.vector_store %arg13[%c0_41, %c0_42], %82 {strides = array<i32>} : memref<1x1xf32, #tpu.memory_space<vmem>>, vector<1x1xf32>,
    return
  }
}

module attributes {stable_mosaic.version = 11 : i64} {
  func.func @_nsp_kernel(%arg0: memref<16x32xbf16, #tpu.memory_space<vmem>>, %arg1: memref<2x32xbf16, #tpu.memory_space<vmem>>, %arg2: memref<32x32xbf16, #tpu.memory_space<vmem>>, %arg3: memref<32x32xbf16, #tpu.memory_space<vmem>>, %arg4: memref<1x32xf32, #tpu.memory_space<vmem>>, %arg5: memref<32x64xbf16, #tpu.memory_space<vmem>>, %arg6: memref<1x64xf32, #tpu.memory_space<vmem>>, %arg7: memref<16x1xi32, #tpu.memory_space<vmem>>, %arg8: memref<16x1xf32, #tpu.memory_space<vmem>>, %arg9: memref<1x1xf32, #tpu.memory_space<smem>>, %arg10: memref<1x1xf32, #tpu.memory_space<vmem>>) attributes {dimension_semantics = [], scalar_prefetch = 0 : i64, scratch_operands = 0 : i64, tpu.core_type = #tpu.core_type<tc>} {
    %c0 = arith.constant 0 : index
    %c0_0 = arith.constant 0 : index
    %0 = vector.load %arg1[%c0, %c0_0] : memref<2x32xbf16, #tpu.memory_space<vmem>>, vector<2x32xbf16>
    %c0_1 = arith.constant 0 : index
    %c0_2 = arith.constant 0 : index
    %1 = vector.load %arg3[%c0_1, %c0_2] : memref<32x32xbf16, #tpu.memory_space<vmem>>, vector<32x32xbf16>
    %cst = arith.constant dense<0.000000e+00> : vector<2x32xf32>
    %2 = tpu.matmul %0, %1, %cst {dimension_numbers = #tpu.dot_dimension_numbers<[1], [0], [0], [1], [0, 0, 1, 1], [], []>} : vector<2x32xbf16>, vector<32x32xbf16>, vector<2x32xf32> -> vector<2x32xf32>
    %3 = tpu.iota {dimensions = array<i32: 0>} : vector<16x2xi32>
    %4 = tpu.iota {dimensions = array<i32: 1>} : vector<16x2xi32>
    %c8_i32 = arith.constant 8 : i32
    %5 = vector.broadcast %c8_i32 : i32 to vector<16x2xi32>
    %6 = arith.muli %4, %5 : vector<16x2xi32>
    %7 = arith.cmpi sge, %3, %6 : vector<16x2xi32>
    %c1_i32 = arith.constant 1 : i32
    %8 = vector.broadcast %c1_i32 : i32 to vector<16x2xi32>
    %9 = arith.addi %4, %8 : vector<16x2xi32>
    %c8_i32_3 = arith.constant 8 : i32
    %10 = vector.broadcast %c8_i32_3 : i32 to vector<16x2xi32>
    %11 = arith.muli %9, %10 : vector<16x2xi32>
    %12 = arith.cmpi slt, %3, %11 : vector<16x2xi32>
    %13 = arith.andi %7, %12 : vector<16x2xi1>
    %14 = arith.extui %13 : vector<16x2xi1> to vector<16x2xi32>
    %15 = arith.sitofp %14 : vector<16x2xi32> to vector<16x2xf32>
    %cst_4 = arith.constant dense<0.000000e+00> : vector<16x32xf32>
    %16 = tpu.matmul %15, %2, %cst_4 {dimension_numbers = #tpu.dot_dimension_numbers<[1], [0], [0], [1], [0, 0, 1, 1], [], []>} : vector<16x2xf32>, vector<2x32xf32>, vector<16x32xf32> -> vector<16x32xf32>
    %c0_5 = arith.constant 0 : index
    %c0_6 = arith.constant 0 : index
    %17 = vector.load %arg0[%c0_5, %c0_6] : memref<16x32xbf16, #tpu.memory_space<vmem>>, vector<16x32xbf16>
    %c0_7 = arith.constant 0 : index
    %c0_8 = arith.constant 0 : index
    %18 = vector.load %arg2[%c0_7, %c0_8] : memref<32x32xbf16, #tpu.memory_space<vmem>>, vector<32x32xbf16>
    %cst_9 = arith.constant dense<0.000000e+00> : vector<16x32xf32>
    %19 = tpu.matmul %17, %18, %cst_9 {dimension_numbers = #tpu.dot_dimension_numbers<[1], [0], [0], [1], [0, 0, 1, 1], [], []>} : vector<16x32xbf16>, vector<32x32xbf16>, vector<16x32xf32> -> vector<16x32xf32>
    %20 = arith.addf %19, %16 : vector<16x32xf32>
    %c0_10 = arith.constant 0 : index
    %c0_11 = arith.constant 0 : index
    %21 = vector.load %arg4[%c0_10, %c0_11] : memref<1x32xf32, #tpu.memory_space<vmem>>, vector<1x32xf32>
    %22 = vector.broadcast %21 : vector<1x32xf32> to vector<16x32xf32>
    %23 = arith.addf %20, %22 : vector<16x32xf32>
    %24 = math.tanh %23 : vector<16x32xf32>
    %25 = arith.truncf %24 : vector<16x32xf32> to vector<16x32xbf16>
    %c0_12 = arith.constant 0 : index
    %c0_13 = arith.constant 0 : index
    %26 = vector.load %arg5[%c0_12, %c0_13] : memref<32x64xbf16, #tpu.memory_space<vmem>>, vector<32x64xbf16>
    %cst_14 = arith.constant dense<0.000000e+00> : vector<16x64xf32>
    %27 = tpu.matmul %25, %26, %cst_14 {dimension_numbers = #tpu.dot_dimension_numbers<[1], [0], [0], [1], [0, 0, 1, 1], [], []>} : vector<16x32xbf16>, vector<32x64xbf16>, vector<16x64xf32> -> vector<16x64xf32>
    %c0_15 = arith.constant 0 : index
    %c0_16 = arith.constant 0 : index
    %28 = vector.load %arg6[%c0_15, %c0_16] : memref<1x64xf32, #tpu.memory_space<vmem>>, vector<1x64xf32>
    %29 = vector.broadcast %28 : vector<1x64xf32> to vector<16x64xf32>
    %30 = arith.addf %27, %29 : vector<16x64xf32>
    %c0_17 = arith.constant 0 : index
    %c0_18 = arith.constant 0 : index
    %31 = vector.load %arg7[%c0_17, %c0_18] : memref<16x1xi32, #tpu.memory_space<vmem>>, vector<16x1xi32>
    %c0_19 = arith.constant 0 : index
    %c0_20 = arith.constant 0 : index
    %32 = vector.load %arg8[%c0_19, %c0_20] : memref<16x1xf32, #tpu.memory_space<vmem>>, vector<16x1xf32>
    %33 = tpu.iota {dimensions = array<i32: 1>} : vector<16x64xi32>
    %34 = vector.broadcast %31 : vector<16x1xi32> to vector<16x64xi32>
    %35 = arith.cmpi eq, %33, %34 : vector<16x64xi32>
    %36 = arith.extui %35 : vector<16x64xi1> to vector<16x64xi32>
    %37 = arith.sitofp %36 : vector<16x64xi32> to vector<16x64xf32>
    %cst_21 = arith.constant dense<0xFF800000> : vector<16xf32>
    %38 = vector.multi_reduction <maximumf>, %30, %cst_21 [1] : vector<16x64xf32> to vector<16xf32>
    %39 = vector.shape_cast %38 : vector<16xf32> to vector<16x1xf32>
    %40 = vector.broadcast %39 : vector<16x1xf32> to vector<16x64xf32>
    %41 = arith.subf %30, %40 : vector<16x64xf32>
    %42 = math.exp %41 : vector<16x64xf32>
    %cst_22 = arith.constant dense<0.000000e+00> : vector<16xf32>
    %43 = vector.multi_reduction <add>, %42, %cst_22 [1] : vector<16x64xf32> to vector<16xf32>
    %44 = vector.shape_cast %43 : vector<16xf32> to vector<16x1xf32>
    %45 = math.log %44 : vector<16x1xf32>
    %46 = arith.addf %45, %39 : vector<16x1xf32>
    %47 = arith.mulf %30, %37 : vector<16x64xf32>
    %cst_23 = arith.constant dense<0.000000e+00> : vector<16xf32>
    %48 = vector.multi_reduction <add>, %47, %cst_23 [1] : vector<16x64xf32> to vector<16xf32>
    %49 = vector.shape_cast %48 : vector<16xf32> to vector<16x1xf32>
    %50 = arith.subf %46, %49 : vector<16x1xf32>
    %51 = arith.mulf %50, %32 : vector<16x1xf32>
    %cst_24 = arith.constant dense<0.000000e+00> : vector<1xf32>
    %52 = vector.multi_reduction <add>, %51, %cst_24 [0] : vector<16x1xf32> to vector<1xf32>
    %53 = vector.shape_cast %52 : vector<1xf32> to vector<1x1xf32>
    %cst_25 = arith.constant dense<0.000000e+00> : vector<1xf32>
    %54 = vector.multi_reduction <add>, %32, %cst_25 [0] : vector<16x1xf32> to vector<1xf32>
    %55 = vector.shape_cast %54 : vector<1xf32> to vector<1x1xf32>
    %cst_26 = arith.constant 1.000000e+00 : f32
    %56 = vector.broadcast %cst_26 : f32 to vector<1x1xf32>
    %57 = arith.maximumf %55, %56 : vector<1x1xf32>
    %58 = arith.divf %53, %57 : vector<1x1xf32>
    %59 = vector.broadcast %46 : vector<16x1xf32> to vector<16x64xf32>
    %60 = arith.subf %30, %59 : vector<16x64xf32>
    %61 = vector.broadcast %44 : vector<16x1xf32> to vector<16x64xf32>
    %62 = arith.divf %42, %61 : vector<16x64xf32>
    %63 = arith.mulf %60, %62 : vector<16x64xf32>
    %cst_27 = arith.constant dense<0.000000e+00> : vector<16xf32>
    %64 = vector.multi_reduction <add>, %63, %cst_27 [1] : vector<16x64xf32> to vector<16xf32>
    %65 = vector.shape_cast %64 : vector<16xf32> to vector<16x1xf32>
    %cst_28 = arith.constant 0.000000e+00 : f32
    %66 = vector.broadcast %cst_28 : f32 to vector<16x1xf32>
    %67 = arith.subf %66, %65 : vector<16x1xf32>
    %c0_i32 = arith.constant 0 : i32
    %68 = vector.broadcast %c0_i32 : i32 to vector<16x1xi32>
    %69 = arith.cmpi ne, %31, %68 : vector<16x1xi32>
    %70 = arith.extui %69 : vector<16x1xi1> to vector<16x1xi32>
    %71 = arith.sitofp %70 : vector<16x1xi32> to vector<16x1xf32>
    %72 = arith.mulf %32, %71 : vector<16x1xf32>
    %73 = arith.mulf %67, %72 : vector<16x1xf32>
    %cst_29 = arith.constant dense<0.000000e+00> : vector<1xf32>
    %74 = vector.multi_reduction <add>, %73, %cst_29 [0] : vector<16x1xf32> to vector<1xf32>
    %75 = vector.shape_cast %74 : vector<1xf32> to vector<1x1xf32>
    %cst_30 = arith.constant dense<0.000000e+00> : vector<1xf32>
    %76 = vector.multi_reduction <add>, %72, %cst_30 [0] : vector<16x1xf32> to vector<1xf32>
    %77 = vector.shape_cast %76 : vector<1xf32> to vector<1x1xf32>
    %cst_31 = arith.constant 1.000000e+00 : f32
    %78 = vector.broadcast %cst_31 : f32 to vector<1x1xf32>
    %79 = arith.maximumf %77, %78 : vector<1x1xf32>
    %80 = arith.divf %75, %79 : vector<1x1xf32>
    %c0_32 = arith.constant 0 : index
    %c0_33 = arith.constant 0 : index
    %81 = memref.load %arg9[%c0_32, %c0_33] : memref<1x1xf32, #tpu.memory_space<smem>>
    %cst_34 = arith.constant 1.000000e+00 : f32
    %82 = arith.subf %cst_34, %81 : f32
    %83 = vector.broadcast %82 : f32 to vector<1x1xf32>
    %84 = arith.mulf %83, %58 : vector<1x1xf32>
    %85 = vector.broadcast %81 : f32 to vector<1x1xf32>
    %86 = arith.mulf %85, %80 : vector<1x1xf32>
    %87 = arith.addf %84, %86 : vector<1x1xf32>
    %c0_35 = arith.constant 0 : index
    %c0_36 = arith.constant 0 : index
    %88 = vector.load %arg10[%c0_35, %c0_36] : memref<1x1xf32, #tpu.memory_space<vmem>>, vector<1x1xf32>
    tpu.vector_store %arg10[%c0_35, %c0_36], %87 {strides = array<i32>} : memref<1x1xf32, #tpu.memory_space<vmem>>, vector<1x1xf32>,
    return
  }
}

</mosaic_0001>

<llo_original>
// kernel: spmm_forward.7
$region0: #{spmm_forward.7}
  #allocation0 [shape = 'u32[]', space=smem, size = 0x4, offset = 0x4, fixed_abs, tag = 'smem constant byte address 0x4 - core index']
  #allocation1 [shape = 'u32[144,128]{1,0:T(1,128)}', space=vmem, size = 0x12000, scoped, tag = 'internal scratch']
  %s0 = inlined_call_operand.vmem [shape: bf16[24,32], index: 0, kind: input, shape index: {}]
  %s1 = inlined_call_operand.vmem [shape: bf16[16,32], index: 1, kind: input, shape index: {}]
  %s2 = inlined_call_operand.vmem [shape: bf16[2,24], index: 2, kind: input, shape index: {}]
  %s3 = inlined_call_operand.vmem [shape: bf16[2,24], index: 3, kind: input, shape index: {}]
  %s4 = inlined_call_operand.vmem [shape: bf16[2,16], index: 4, kind: input, shape index: {}]
  %s5 = inlined_call_operand.vmem [shape: bf16[2,16], index: 5, kind: input, shape index: {}]
  %s6 = inlined_call_operand.vmem [shape: bf16[32,32], index: 6, kind: input, shape index: {}]
  %s7 = inlined_call_operand.vmem [shape: f32[1,32], index: 7, kind: input, shape index: {}]
  %s8 = inlined_call_operand.vmem [shape: bf16[32,32], index: 8, kind: input, shape index: {}]
  %s9 = inlined_call_operand.vmem [shape: f32[1,32], index: 9, kind: input, shape index: {}]
  %s10 = inlined_call_operand.vmem [shape: bf16[32,64], index: 10, kind: input, shape index: {}]
  %s11 = inlined_call_operand.vmem [shape: f32[1,64], index: 11, kind: input, shape index: {}]
  %s12 = inlined_call_operand.vmem [shape: bf16[32,64], index: 12, kind: input, shape index: {}]
  %s13 = inlined_call_operand.vmem [shape: f32[1,64], index: 13, kind: input, shape index: {}]
  %s14 = inlined_call_operand.vmem [shape: bf16[24,32], index: 14, kind: output, shape index: {0}]
  %s15 = inlined_call_operand.vmem [shape: f32[2,128], index: 15, kind: output, shape index: {1}]
  %s16 = inlined_call_operand.vmem [shape: f32[2,128], index: 16, kind: output, shape index: {2}]
  %17 = xla_tuple %s14, %s15, %s16
  %s18 = sld [smem:[#allocation0]]
  $region82: #{spmm_forward.7} parent=0
    _
  %s20 = ssub.s32 1, %s18
  %s21 = scalar_select 0, %s20, %s18
  // Predicated region
  $region2: #{spmm_forward.7} parent=0 // pred_check
    _
  $region3: #{spmm_forward.7} parent=0 // pred_check_branch
    %23 = sbr.rel (0) target = $region5
  $region4: #{spmm_forward.7} parent=0 // pred_region
    _
  $region5: #{spmm_forward.7} parent=0 // pred_fallthru
    _
  // Predicated region
  $region6: #{spmm_forward.7} parent=0 // pred_check
    _
  $region7: #{spmm_forward.7} parent=0 // pred_check_branch
    %25 = sbr.rel (0) target = $region9
  $region8: #{spmm_forward.7} parent=0 // pred_region
    _
  $region9: #{spmm_forward.7} parent=0 // pred_fallthru
    _
  // Predicated region
  $region10: #{spmm_forward.7} parent=0 // pred_check
    _
  $region11: #{spmm_forward.7} parent=0 // pred_check_branch
    %27 = sbr.rel (0) target = $region13
  $region12: #{spmm_forward.7} parent=0 // pred_region
    _
  $region13: #{spmm_forward.7} parent=0 // pred_fallthru
    _
  // Predicated region
  $region14: #{spmm_forward.7} parent=0 // pred_check
    _
  $region15: #{spmm_forward.7} parent=0 // pred_check_branch
    %29 = sbr.rel (0) target = $region17
  $region16: #{spmm_forward.7} parent=0 // pred_region
    _
  $region17: #{spmm_forward.7} parent=0 // pred_fallthru
    _
  // Predicated region
  $region18: #{spmm_forward.7} parent=0 // pred_check
    _
  $region19: #{spmm_forward.7} parent=0 // pred_check_branch
    %31 = sbr.rel (0) target = $region21
  $region20: #{spmm_forward.7} parent=0 // pred_region
    _
  $region21: #{spmm_forward.7} parent=0 // pred_fallthru
    _
  // Predicated region
  $region22: #{spmm_forward.7} parent=0 // pred_check
    _
  $region23: #{spmm_forward.7} parent=0 // pred_check_branch
    %33 = sbr.rel (0) target = $region25
  $region24: #{spmm_forward.7} parent=0 // pred_region
    _
  $region25: #{spmm_forward.7} parent=0 // pred_fallthru
    _
  // Predicated region
  $region26: #{spmm_forward.7} parent=0 // pred_check
    _
  $region27: #{spmm_forward.7} parent=0 // pred_check_branch
    %35 = sbr.rel (0) target = $region29
  $region28: #{spmm_forward.7} parent=0 // pred_region
    _
  $region29: #{spmm_forward.7} parent=0 // pred_fallthru
    _
  // Predicated region
  $region30: #{spmm_forward.7} parent=0 // pred_check
    _
  $region31: #{spmm_forward.7} parent=0 // pred_check_branch
    %37 = sbr.rel (0) target = $region33
  $region32: #{spmm_forward.7} parent=0 // pred_region
    _
  $region33: #{spmm_forward.7} parent=0 // pred_fallthru
    _
  // Predicated region
  $region34: #{spmm_forward.7} parent=0 // pred_check
    _
  $region35: #{spmm_forward.7} parent=0 // pred_check_branch
    %39 = sbr.rel (0) target = $region37
  $region36: #{spmm_forward.7} parent=0 // pred_region
    _
  $region37: #{spmm_forward.7} parent=0 // pred_fallthru
    _
  // Predicated region
  $region38: #{spmm_forward.7} parent=0 // pred_check
    _
  $region39: #{spmm_forward.7} parent=0 // pred_check_branch
    %41 = sbr.rel (0) target = $region41
  $region40: #{spmm_forward.7} parent=0 // pred_region
    _
  $region41: #{spmm_forward.7} parent=0 // pred_fallthru
    _
  // Predicated region
  $region42: #{spmm_forward.7} parent=0 // pred_check
    _
  $region43: #{spmm_forward.7} parent=0 // pred_check_branch
    %43 = sbr.rel (0) target = $region45
  $region44: #{spmm_forward.7} parent=0 // pred_region
    _
  $region45: #{spmm_forward.7} parent=0 // pred_fallthru
    _
  // Predicated region
  $region46: #{spmm_forward.7} parent=0 // pred_check
    _
  $region47: #{spmm_forward.7} parent=0 // pred_check_branch
    %45 = sbr.rel (0) target = $region49
  $region48: #{spmm_forward.7} parent=0 // pred_region
    _
  $region49: #{spmm_forward.7} parent=0 // pred_fallthru
    _
  // Predicated region
  $region50: #{spmm_forward.7} parent=0 // pred_check
    _
  $region51: #{spmm_forward.7} parent=0 // pred_check_branch
    %47 = sbr.rel (0) target = $region53
  $region52: #{spmm_forward.7} parent=0 // pred_region
    _
  $region53: #{spmm_forward.7} parent=0 // pred_fallthru
    _
  // Predicated region
  $region54: #{spmm_forward.7} parent=0 // pred_check
    _
  $region55: #{spmm_forward.7} parent=0 // pred_check_branch
    %49 = sbr.rel (0) target = $region57
  $region56: #{spmm_forward.7} parent=0 // pred_region
    _
  $region57: #{spmm_forward.7} parent=0 // pred_fallthru
    _
  %v51 = vld [vmem:[%s0] sm:$0xf]
  %v52 = vld [vmem:[%s0 + $0x4] sm:$0xf]
  %v53 = vld [vmem:[%s0 + $0x8] sm:$0xf]
  %v54 = vld [vmem:[%s6] sm:$0xf]
  %v55 = vld [vmem:[%s6 + $0x4] sm:$0xf]
  %v56 = vld [vmem:[%s6 + $0x8] sm:$0xf]
  %v57 = vld [vmem:[%s6 + $0xc] sm:$0xf]
  %v58 = vld [vmem:[%s7] sm:$0x1]
  %v60 = vlaneseq
  %v61 = vshrl.u32 %v60, 7
  %v62 = vsub.s32 0, %v61
  %v63 = vrot.slane %v58, %v62
  %v68 = vunpack.c.l.b16 %v51
  %v69 = vunpack.c.l.b16 %v52
  %v70 = vunpack.c.l.b16 %v53
  %v71 = vpack.c.b16 %v69, %v68
  %v72 = vpack.c.b16 %v70, %v70
  %v77 = vunpack.c.l.b16 %v54
  %v78 = vunpack.c.l.b16 %v55
  %v79 = vunpack.c.l.b16 %v56
  %v80 = vunpack.c.l.b16 %v57
  %v81 = vpack.c.b16 %v78, %v77
  %v82 = vpack.c.b16 %v80, %v79
  %vm85 = vcmask 261120
  %v87 = vsel %vm85, %v71, 0
  %v90 = vsel %vm85, %v72, 0
  %92 = vmatprep.subr.bf16.mxu0 0
  %93 = vmatpush1.bf16.msra.mxu0 0
  %94 = vmatprep.subr.bf16.mxu0 0
  %95 = vmatpush1.bf16.msra.mxu0 0
  %96 = vmatprep.subr.bf16.mxu0 0
  %97 = vmatpush1.bf16.msra.mxu0 0
  %98 = vmatprep.subr.bf16.mxu0 0
  %99 = vmatpush1.bf16.msra.mxu0 0
  %100 = vmatprep.subr.bf16.mxu0 0
  %101 = vmatpush1.bf16.msra.mxu0 0
  %102 = vmatprep.subr.bf16.mxu0 0
  %103 = vmatpush1.bf16.msra.mxu0 0
  %104 = vmatprep.subr.bf16.mxu0 0
  %105 = vmatpush1.bf16.msra.mxu0 %v82
  %106 = vmatprep.subr.bf16.mxu0 0
  %107 = vmatpush1.bf16.msra.mxu0 %v81
  %108 = vmatprep.subr.bf16.mxu0 0
  %109 = vmatpush2.bf16.msra.mxu0 0
  %110 = vmatprep.subr.bf16.mxu0 0
  %111 = vmatpush2.bf16.msra.mxu0 0
  %112 = vmatprep.subr.bf16.mxu0 0
  %113 = vmatpush2.bf16.msra.mxu0 0
  %114 = vmatprep.subr.bf16.mxu0 0
  %115 = vmatpush2.bf16.msra.mxu0 0
  %116 = vmatprep.subr.bf16.mxu0 0
  %117 = vmatpush2.bf16.msra.mxu0 0
  %118 = vmatprep.subr.bf16.mxu0 0
  %119 = vmatpush2.bf16.msra.mxu0 0
  %120 = vmatprep.subr.bf16.mxu0 0
  %121 = vmatpush2.bf16.msra.mxu0 0
  %122 = vmatprep.subr.bf16.mxu0 0
  %123 = vmatpush2.bf16.msra.mxu0 0
  %124 = vmatprep.mubr.bf16.mxu0 0
  %125 = vmatmul.mubr.bf16.gmra.mxu0 %v87
  %v126 = vpop.f32.mrf.mxu0
  %v127 = vadd.f32 %v63, %v126
  %v128 = vpop.f32.mrf.mxu0
  %v129 = vpop.f32.mrf.mxu0
  %v130 = vadd.f32 %v63, %v129
  %v131 = vpop.f32.mrf.mxu0
  %132 = vmatprep.mubr.bf16.mxu0 0
  %133 = vmatmul.mubr.bf16.gmra.mxu0 %v90
  %v134 = vpop.f32.mrf.mxu0
  %v135 = vadd.f32 %v63, %v134
  %v136 = vpop.f32.mrf.mxu0
  %v137 = vpop.f32.mrf.mxu0
  %v138 = vpop.f32.mrf.mxu0
  %139 = vdwg.mxu0
  %v140 = vtanh.pop %v127
  %v141 = vtanh.pop %v130
  %v142 = vtanh.pop %v135
  %v143 = vpack.c.bf16 %v141, %v140
  %v144 = vpack.c.bf16 %v142, %v142
  %v147 = vunpack.c.l.b16 %v143
  %v148 = vunpack.c.h.b16 %v143
  %v149 = vunpack.c.l.b16 %v144
  %v150 = vpack.c.b16 %v147, %v147
  %v151 = vpack.c.b16 %v148, %v148
  %v152 = vpack.c.b16 %v149, %v149
  %vm156 = vcmask 257024
  %157 = vst.msk [vmem:[%s14] sm:$0xf] %vm156, %v150
  %158 = vst.msk [vmem:[%s14 + $0x4] sm:$0xf] %vm156, %v151
  %159 = vst.msk [vmem:[%s14 + $0x8] sm:$0xf] %vm156, %v152
  %v160 = vld [vmem:[%s1] sm:$0xf]
  %v161 = vld [vmem:[%s1 + $0x4] sm:$0xf]
  %v162 = vld [vmem:[%s8] sm:$0xf]
  %v163 = vld [vmem:[%s8 + $0x4] sm:$0xf]
  %v164 = vld [vmem:[%s8 + $0x8] sm:$0xf]
  %v165 = vld [vmem:[%s8 + $0xc] sm:$0xf]
  %v166 = vld [vmem:[%s9] sm:$0x1]
  %v168 = vlaneseq
  %v169 = vshrl.u32 %v168, 7
  %v170 = vsub.s32 0, %v169
  %v171 = vrot.slane %v166, %v170
  %v175 = vunpack.c.l.b16 %v160
  %v176 = vunpack.c.l.b16 %v161
  %v177 = vpack.c.b16 %v176, %v175
  %v182 = vunpack.c.l.b16 %v162
  %v183 = vunpack.c.l.b16 %v163
  %v184 = vunpack.c.l.b16 %v164
  %v185 = vunpack.c.l.b16 %v165
  %v186 = vpack.c.b16 %v183, %v182
  %v187 = vpack.c.b16 %v185, %v184
  %v191 = vsel %vm85, %v177, 0
  %193 = vmatprep.subr.bf16.mxu0 0
  %194 = vmatpush1.bf16.msra.mxu0 0
  %195 = vmatprep.subr.bf16.mxu0 0
  %196 = vmatpush1.bf16.msra.mxu0 0
  %197 = vmatprep.subr.bf16.mxu0 0
  %198 = vmatpush1.bf16.msra.mxu0 0
  %199 = vmatprep.subr.bf16.mxu0 0
  %200 = vmatpush1.bf16.msra.mxu0 0
  %201 = vmatprep.subr.bf16.mxu0 0
  %202 = vmatpush1.bf16.msra.mxu0 0
  %203 = vmatprep.subr.bf16.mxu0 0
  %204 = vmatpush1.bf16.msra.mxu0 0
  %205 = vmatprep.subr.bf16.mxu0 0
  %206 = vmatpush1.bf16.msra.mxu0 %v187
  %207 = vmatprep.subr.bf16.mxu0 0
  %208 = vmatpush1.bf16.msra.mxu0 %v186
  %209 = vmatprep.subr.bf16.mxu0 0
  %210 = vmatpush2.bf16.msra.mxu0 0
  %211 = vmatprep.subr.bf16.mxu0 0
  %212 = vmatpush2.bf16.msra.mxu0 0
  %213 = vmatprep.subr.bf16.mxu0 0
  %214 = vmatpush2.bf16.msra.mxu0 0
  %215 = vmatprep.subr.bf16.mxu0 0
  %216 = vmatpush2.bf16.msra.mxu0 0
  %217 = vmatprep.subr.bf16.mxu0 0
  %218 = vmatpush2.bf16.msra.mxu0 0
  %219 = vmatprep.subr.bf16.mxu0 0
  %220 = vmatpush2.bf16.msra.mxu0 0
  %221 = vmatprep.subr.bf16.mxu0 0
  %222 = vmatpush2.bf16.msra.mxu0 0
  %223 = vmatprep.subr.bf16.mxu0 0
  %224 = vmatpush2.bf16.msra.mxu0 0
  %225 = vmatprep.mubr.bf16.mxu0 0
  %226 = vmatmul.mubr.bf16.gmra.mxu0 %v191
  %v227 = vpop.f32.mrf.mxu0
  %v228 = vadd.f32 %v171, %v227
  %v229 = vpop.f32.mrf.mxu0
  %v230 = vpop.f32.mrf.mxu0
  %v231 = vadd.f32 %v171, %v230
  %v232 = vpop.f32.mrf.mxu0
  %233 = vdwg.mxu0
  %v234 = vtanh.pop %v228
  %v235 = vtanh.pop %v231
  %v236 = vld [vmem:[%s2] sm:$0x1]
  %v237 = vld [vmem:[%s3] sm:$0x1]
  %v238 = vld [vmem:[%s10] sm:$0xf]
  %v239 = vld [vmem:[%s10 + $0x4] sm:$0xf]
  %v240 = vld [vmem:[%s10 + $0x8] sm:$0xf]
  %v241 = vld [vmem:[%s10 + $0xc] sm:$0xf]
  %v242 = vld [vmem:[%s11] sm:$0x1]
  %vm243 = vcmask 195584
  %v245 = vsel %vm243, %v236, 0
  %vm247 = vcmask 1043456
  %v249 = vsel %vm247, %v144, 0
  %251 = vmatprep.subr.bf16.mxu0 0
  %252 = vmatpush1.bf16.msra.mxu0 0
  %253 = vmatprep.subr.bf16.mxu0 0
  %254 = vmatpush1.bf16.msra.mxu0 0
  %255 = vmatprep.subr.bf16.mxu0 0
  %256 = vmatpush1.bf16.msra.mxu0 0
  %257 = vmatprep.subr.bf16.mxu0 0
  %258 = vmatpush1.bf16.msra.mxu0 0
  %259 = vmatprep.subr.bf16.mxu0 0
  %260 = vmatpush1.bf16.msra.mxu0 0
  %261 = vmatprep.subr.bf16.mxu0 0
  %262 = vmatpush1.bf16.msra.mxu0 0
  %263 = vmatprep.subr.bf16.mxu0 0
  %264 = vmatpush1.bf16.msra.mxu0 %v249
  %265 = vmatprep.subr.bf16.mxu0 0
  %266 = vmatpush1.bf16.msra.mxu0 %v143
  %267 = vmatprep.subr.bf16.mxu0 0
  %268 = vmatpush2.bf16.msra.mxu0 0
  %269 = vmatprep.subr.bf16.mxu0 0
  %270 = vmatpush2.bf16.msra.mxu0 0
  %271 = vmatprep.subr.bf16.mxu0 0
  %272 = vmatpush2.bf16.msra.mxu0 0
  %273 = vmatprep.subr.bf16.mxu0 0
  %274 = vmatpush2.bf16.msra.mxu0 0
  %275 = vmatprep.subr.bf16.mxu0 0
  %276 = vmatpush2.bf16.msra.mxu0 0
  %277 = vmatprep.subr.bf16.mxu0 0
  %278 = vmatpush2.bf16.msra.mxu0 0
  %279 = vmatprep.subr.bf16.mxu0 0
  %280 = vmatpush2.bf16.msra.mxu0 0
  %281 = vmatprep.subr.bf16.mxu0 0
  %282 = vmatpush2.bf16.msra.mxu0 0
  %283 = vmatprep.mubr.bf16.mxu0 0
  %284 = vmatmul.mubr.bf16.gmra.mxu0 %v245
  %v285 = vpop.f32.mrf.mxu0
  %v286 = vadd.f32 0.0, %v285
  %v287 = vpop.f32.mrf.mxu0
  %v288 = vpop.f32.mrf.mxu0
  %v289 = vpop.f32.mrf.mxu0
  %290 = vdwg.mxu0
  %v292 = vsel %vm243, %v237, 0
  %294 = vmatprep.subr.bf16.mxu0 0
  %295 = vmatpush1.bf16.msra.mxu0 0
  %296 = vmatprep.subr.bf16.mxu0 0
  %297 = vmatpush1.bf16.msra.mxu0 0
  %298 = vmatprep.subr.bf16.mxu0 0
  %299 = vmatpush1.bf16.msra.mxu0 0
  %300 = vmatprep.subr.bf16.mxu0 0
  %301 = vmatpush1.bf16.msra.mxu0 0
  %302 = vmatprep.subr.bf16.mxu0 0
  %303 = vmatpush1.bf16.msra.mxu0 0
  %304 = vmatprep.subr.bf16.mxu0 0
  %305 = vmatpush1.bf16.msra.mxu0 0
  %306 = vmatprep.subr.bf16.mxu0 0
  %307 = vmatpush1.bf16.msra.mxu0 %v249
  %308 = vmatprep.subr.bf16.mxu0 0
  %309 = vmatpush1.bf16.msra.mxu0 %v143
  %310 = vmatprep.subr.bf16.mxu0 0
  %311 = vmatpush2.bf16.msra.mxu0 0
  %312 = vmatprep.subr.bf16.mxu0 0
  %313 = vmatpush2.bf16.msra.mxu0 0
  %314 = vmatprep.subr.bf16.mxu0 0
  %315 = vmatpush2.bf16.msra.mxu0 0
  %316 = vmatprep.subr.bf16.mxu0 0
  %317 = vmatpush2.bf16.msra.mxu0 0
  %318 = vmatprep.subr.bf16.mxu0 0
  %319 = vmatpush2.bf16.msra.mxu0 0
  %320 = vmatprep.subr.bf16.mxu0 0
  %321 = vmatpush2.bf16.msra.mxu0 0
  %322 = vmatprep.subr.bf16.mxu0 0
  %323 = vmatpush2.bf16.msra.mxu0 0
  %324 = vmatprep.subr.bf16.mxu0 0
  %325 = vmatpush2.bf16.msra.mxu0 0
  %326 = vmatprep.mubr.bf16.mxu0 0
  %327 = vmatmul.mubr.bf16.gmra.mxu0 %v292
  %v328 = vpop.f32.mrf.mxu0
  %v329 = vadd.f32 0.0, %v328
  %v330 = vpop.f32.mrf.mxu0
  %v331 = vpop.f32.mrf.mxu0
  %v332 = vpop.f32.mrf.mxu0
  %333 = vdwg.mxu0
  %v334 = vpack.c.bf16 %v286, %v286
  %v336 = vlaneseq
  %v337 = vshrl.u32 %v336, 7
  %v338 = vsub.s32 0, %v337
  %v339 = vrot.slane %v242, %v338
  %v345 = vunpack.c.l.b16 %v238
  %v346 = vunpack.c.l.b16 %v239
  %v347 = vunpack.c.l.b16 %v240
  %v348 = vunpack.c.l.b16 %v241
  %v349 = vpack.c.b16 %v346, %v345
  %v350 = vpack.c.b16 %v348, %v347
  %v354 = vsel %vm85, %v334, 0
  %356 = vmatprep.subr.bf16.mxu0 0
  %357 = vmatpush1.bf16.msra.mxu0 0
  %358 = vmatprep.subr.bf16.mxu0 0
  %359 = vmatpush1.bf16.msra.mxu0 0
  %360 = vmatprep.subr.bf16.mxu0 0
  %361 = vmatpush1.bf16.msra.mxu0 0
  %362 = vmatprep.subr.bf16.mxu0 0
  %363 = vmatpush1.bf16.msra.mxu0 0
  %364 = vmatprep.subr.bf16.mxu0 0
  %365 = vmatpush1.bf16.msra.mxu0 0
  %366 = vmatprep.subr.bf16.mxu0 0
  %367 = vmatpush1.bf16.msra.mxu0 0
  %368 = vmatprep.subr.bf16.mxu0 0
  %369 = vmatpush1.bf16.msra.mxu0 %v350
  %370 = vmatprep.subr.bf16.mxu0 0
  %371 = vmatpush1.bf16.msra.mxu0 %v349
  %372 = vmatprep.subr.bf16.mxu0 0
  %373 = vmatpush2.bf16.msra.mxu0 0
  %374 = vmatprep.subr.bf16.mxu0 0
  %375 = vmatpush2.bf16.msra.mxu0 0
  %376 = vmatprep.subr.bf16.mxu0 0
  %377 = vmatpush2.bf16.msra.mxu0 0
  %378 = vmatprep.subr.bf16.mxu0 0
  %379 = vmatpush2.bf16.msra.mxu0 0
  %380 = vmatprep.subr.bf16.mxu0 0
  %381 = vmatpush2.bf16.msra.mxu0 0
  %382 = vmatprep.subr.bf16.mxu0 0
  %383 = vmatpush2.bf16.msra.mxu0 0
  %384 = vmatprep.subr.bf16.mxu0 0
  %385 = vmatpush2.bf16.msra.mxu0 0
  %386 = vmatprep.subr.bf16.mxu0 0
  %387 = vmatpush2.bf16.msra.mxu0 0
  %388 = vmatprep.mubr.bf16.mxu0 0
  %389 = vmatmul.mubr.bf16.gmra.mxu0 %v354
  %v390 = vpop.f32.mrf.mxu0
  %v391 = vadd.f32 %v339, %v390
  %v392 = vpop.f32.mrf.mxu0
  %v393 = vpop.f32.mrf.mxu0
  %v394 = vpop.f32.mrf.mxu0
  %395 = vdwg.mxu0
  %v396 = vlaneseq
  %v397 = vand.u32 %v396, 127
  %vm398 = vcmp.lt.s32.totalorder %v397, 32
  %v399 = vsel %vm398, 1, 0
  %v400 = vcvt.s32.f32 %v399
  %v401 = vmul.f32 %v391, %v391
  %v402 = vmul.f32 %v401, %v400
  %vm403 = vcmask 517120
  %v404 = vsel %vm403, %v402, 0.0
  %405 = vadd.xlane.f32.xlu0 %v404
  %v406 = vpop.xlane.xlu0 %405
  %v407 = vsub.f32 1.0, %v400
  %v408 = vmul.f32 %v401, %v407
  %v409 = vsel %vm403, %v408, 0.0
  %410 = vadd.xlane.f32.xlu0 %v409
  %v411 = vpop.xlane.xlu0 %410
  %v412 = vmax.f32 %v406, 1e-24
  %v413 = vrsqrt.pop %v412
  %v414 = vmul.f32 %v400, %v413
  %v415 = vmax.f32 %v411, 1e-24
  %v416 = vrsqrt.pop %v415
  %v417 = vmul.f32 %v407, %v416
  %v418 = vadd.f32 %v414, %v417
  %v419 = vmul.f32 %v391, %v418
  %421 = vrot.lane.b32.xlu0 %v329, 32
  %v422 = vpop.permute.xlu0 %421
  %425 = vrot.lane.b32.xlu0 %v419, 64
  %v426 = vpop.permute.xlu0 %425
  %v428 = vsel %vm85, %v286, %v422
  %vm429 = vcmask 523264
  %v430 = vsel %vm429, %v428, %v426
  %431 = vst [vmem:[%s15] sm:$0x3] %v430
  %v432 = vld [vmem:[%s4] sm:$0x1]
  %v433 = vld [vmem:[%s5] sm:$0x1]
  %v434 = vld [vmem:[%s12] sm:$0xf]
  %v435 = vld [vmem:[%s12 + $0x4] sm:$0xf]
  %v436 = vld [vmem:[%s12 + $0x8] sm:$0xf]
  %v437 = vld [vmem:[%s12 + $0xc] sm:$0xf]
  %v438 = vld [vmem:[%s13] sm:$0x1]
  %v439 = vpack.c.bf16 %v235, %v234
  %vm440 = vcmask 130048
  %v442 = vsel %vm440, %v432, 0
  %444 = vmatprep.subr.bf16.mxu0 0
  %445 = vmatpush1.bf16.msra.mxu0 0
  %446 = vmatprep.subr.bf16.mxu0 0
  %447 = vmatpush1.bf16.msra.mxu0 0
  %448 = vmatprep.subr.bf16.mxu0 0
  %449 = vmatpush1.bf16.msra.mxu0 0
  %450 = vmatprep.subr.bf16.mxu0 0
  %451 = vmatpush1.bf16.msra.mxu0 0
  %452 = vmatprep.subr.bf16.mxu0 0
  %453 = vmatpush1.bf16.msra.mxu0 0
  %454 = vmatprep.subr.bf16.mxu0 0
  %455 = vmatpush1.bf16.msra.mxu0 0
  %456 = vmatprep.subr.bf16.mxu0 0
  %457 = vmatpush1.bf16.msra.mxu0 0
  %458 = vmatprep.subr.bf16.mxu0 0
  %459 = vmatpush1.bf16.msra.mxu0 %v439
  %460 = vmatprep.subr.bf16.mxu0 0
  %461 = vmatpush2.bf16.msra.mxu0 0
  %462 = vmatprep.subr.bf16.mxu0 0
  %463 = vmatpush2.bf16.msra.mxu0 0
  %464 = vmatprep.subr.bf16.mxu0 0
  %465 = vmatpush2.bf16.msra.mxu0 0
  %466 = vmatprep.subr.bf16.mxu0 0
  %467 = vmatpush2.bf16.msra.mxu0 0
  %468 = vmatprep.subr.bf16.mxu0 0
  %469 = vmatpush2.bf16.msra.mxu0 0
  %470 = vmatprep.subr.bf16.mxu0 0
  %471 = vmatpush2.bf16.msra.mxu0 0
  %472 = vmatprep.subr.bf16.mxu0 0
  %473 = vmatpush2.bf16.msra.mxu0 0
  %474 = vmatprep.subr.bf16.mxu0 0
  %475 = vmatpush2.bf16.msra.mxu0 0
  %476 = vmatprep.mubr.bf16.mxu0 0
  %477 = vmatmul.mubr.bf16.gmra.mxu0 %v442
  %v478 = vpop.f32.mrf.mxu0
  %v479 = vadd.f32 0.0, %v478
  %v480 = vpop.f32.mrf.mxu0
  %v481 = vpop.f32.mrf.mxu0
  %v482 = vpop.f32.mrf.mxu0
  %483 = vdwg.mxu0
  %v485 = vsel %vm440, %v433, 0
  %487 = vmatprep.subr.bf16.mxu0 0
  %488 = vmatpush1.bf16.msra.mxu0 0
  %489 = vmatprep.subr.bf16.mxu0 0
  %490 = vmatpush1.bf16.msra.mxu0 0
  %491 = vmatprep.subr.bf16.mxu0 0
  %492 = vmatpush1.bf16.msra.mxu0 0
  %493 = vmatprep.subr.bf16.mxu0 0
  %494 = vmatpush1.bf16.msra.mxu0 0
  %495 = vmatprep.subr.bf16.mxu0 0
  %496 = vmatpush1.bf16.msra.mxu0 0
  %497 = vmatprep.subr.bf16.mxu0 0
  %498 = vmatpush1.bf16.msra.mxu0 0
  %499 = vmatprep.subr.bf16.mxu0 0
  %500 = vmatpush1.bf16.msra.mxu0 0
  %501 = vmatprep.subr.bf16.mxu0 0
  %502 = vmatpush1.bf16.msra.mxu0 %v439
  %503 = vmatprep.subr.bf16.mxu0 0
  %504 = vmatpush2.bf16.msra.mxu0 0
  %505 = vmatprep.subr.bf16.mxu0 0
  %506 = vmatpush2.bf16.msra.mxu0 0
  %507 = vmatprep.subr.bf16.mxu0 0
  %508 = vmatpush2.bf16.msra.mxu0 0
  %509 = vmatprep.subr.bf16.mxu0 0
  %510 = vmatpush2.bf16.msra.mxu0 0
  %511 = vmatprep.subr.bf16.mxu0 0
  %512 = vmatpush2.bf16.msra.mxu0 0
  %513 = vmatprep.subr.bf16.mxu0 0
  %514 = vmatpush2.bf16.msra.mxu0 0
  %515 = vmatprep.subr.bf16.mxu0 0
  %516 = vmatpush2.bf16.msra.mxu0 0
  %517 = vmatprep.subr.bf16.mxu0 0
  %518 = vmatpush2.bf16.msra.mxu0 0
  %519 = vmatprep.mubr.bf16.mxu0 0
  %520 = vmatmul.mubr.bf16.gmra.mxu0 %v485
  %v521 = vpop.f32.mrf.mxu0
  %v522 = vadd.f32 0.0, %v521
  %v523 = vpop.f32.mrf.mxu0
  %v524 = vpop.f32.mrf.mxu0
  %v525 = vpop.f32.mrf.mxu0
  %526 = vdwg.mxu0
  %v527 = vpack.c.bf16 %v479, %v479
  %v529 = vlaneseq
  %v530 = vshrl.u32 %v529, 7
  %v531 = vsub.s32 0, %v530
  %v532 = vrot.slane %v438, %v531
  %v538 = vunpack.c.l.b16 %v434
  %v539 = vunpack.c.l.b16 %v435
  %v540 = vunpack.c.l.b16 %v436
  %v541 = vunpack.c.l.b16 %v437
  %v542 = vpack.c.b16 %v539, %v538
  %v543 = vpack.c.b16 %v541, %v540
  %v547 = vsel %vm85, %v527, 0
  %549 = vmatprep.subr.bf16.mxu0 0
  %550 = vmatpush1.bf16.msra.mxu0 0
  %551 = vmatprep.subr.bf16.mxu0 0
  %552 = vmatpush1.bf16.msra.mxu0 0
  %553 = vmatprep.subr.bf16.mxu0 0
  %554 = vmatpush1.bf16.msra.mxu0 0
  %555 = vmatprep.subr.bf16.mxu0 0
  %556 = vmatpush1.bf16.msra.mxu0 0
  %557 = vmatprep.subr.bf16.mxu0 0
  %558 = vmatpush1.bf16.msra.mxu0 0
  %559 = vmatprep.subr.bf16.mxu0 0
  %560 = vmatpush1.bf16.msra.mxu0 0
  %561 = vmatprep.subr.bf16.mxu0 0
  %562 = vmatpush1.bf16.msra.mxu0 %v543
  %563 = vmatprep.subr.bf16.mxu0 0
  %564 = vmatpush1.bf16.msra.mxu0 %v542
  %565 = vmatprep.subr.bf16.mxu0 0
  %566 = vmatpush2.bf16.msra.mxu0 0
  %567 = vmatprep.subr.bf16.mxu0 0
  %568 = vmatpush2.bf16.msra.mxu0 0
  %569 = vmatprep.subr.bf16.mxu0 0
  %570 = vmatpush2.bf16.msra.mxu0 0
  %571 = vmatprep.subr.bf16.mxu0 0
  %572 = vmatpush2.bf16.msra.mxu0 0
  %573 = vmatprep.subr.bf16.mxu0 0
  %574 = vmatpush2.bf16.msra.mxu0 0
  %575 = vmatprep.subr.bf16.mxu0 0
  %576 = vmatpush2.bf16.msra.mxu0 0
  %577 = vmatprep.subr.bf16.mxu0 0
  %578 = vmatpush2.bf16.msra.mxu0 0
  %579 = vmatprep.subr.bf16.mxu0 0
  %580 = vmatpush2.bf16.msra.mxu0 0
  %581 = vmatprep.mubr.bf16.mxu0 0
  %582 = vmatmul.mubr.bf16.gmra.mxu0 %v547
  %v583 = vpop.f32.mrf.mxu0
  %v584 = vadd.f32 %v532, %v583
  %v585 = vpop.f32.mrf.mxu0
  %v586 = vpop.f32.mrf.mxu0
  %v587 = vpop.f32.mrf.mxu0
  %588 = vdwg.mxu0
  %v589 = vmul.f32 %v584, %v584
  %v590 = vmul.f32 %v589, %v400
  %v591 = vsel %vm403, %v590, 0.0
  %592 = vadd.xlane.f32.xlu0 %v591
  %v593 = vpop.xlane.xlu0 %592
  %v594 = vmul.f32 %v589, %v407
  %v595 = vsel %vm403, %v594, 0.0
  %596 = vadd.xlane.f32.xlu0 %v595
  %v597 = vpop.xlane.xlu0 %596
  %v598 = vmax.f32 %v593, 1e-24
  %v599 = vrsqrt.pop %v598
  %v600 = vmul.f32 %v400, %v599
  %v601 = vmax.f32 %v597, 1e-24
  %v602 = vrsqrt.pop %v601
  %v603 = vmul.f32 %v407, %v602
  %v604 = vadd.f32 %v600, %v603
  %v605 = vmul.f32 %v584, %v604
  %607 = vrot.lane.b32.xlu0 %v522, 32
  %v608 = vpop.permute.xlu0 %607
  %611 = vrot.lane.b32.xlu0 %v605, 64
  %v612 = vpop.permute.xlu0 %611
  %v614 = vsel %vm85, %v479, %v608
  %v615 = vsel %vm429, %v614, %v612
  %616 = vst [vmem:[%s16] sm:$0x3] %v615
  // Predicated region
  $region58: #{spmm_forward.7} parent=0 // pred_check
    _
  $region59: #{spmm_forward.7} parent=0 // pred_check_branch
    %618 = sbr.rel (0) target = $region61
  $region60: #{spmm_forward.7} parent=0 // pred_region
    _
  $region61: #{spmm_forward.7} parent=0 // pred_fallthru
    _
  // Predicated region
  $region62: #{spmm_forward.7} parent=0 // pred_check
    _
  $region63: #{spmm_forward.7} parent=0 // pred_check_branch
    %620 = sbr.rel (0) target = $region65
  $region64: #{spmm_forward.7} parent=0 // pred_region
    _
  $region65: #{spmm_forward.7} parent=0 // pred_fallthru
    _
  // Predicated region
  $region66: #{spmm_forward.7} parent=0 // pred_check
    _
  $region67: #{spmm_forward.7} parent=0 // pred_check_branch
    %622 = sbr.rel (0) target = $region69
  $region68: #{spmm_forward.7} parent=0 // pred_region
    _
  $region69: #{spmm_forward.7} parent=0 // pred_fallthru
    _
  // Predicated region
  $region70: #{spmm_forward.7} parent=0 // pred_check
    _
  $region71: #{spmm_forward.7} parent=0 // pred_check_branch
    %624 = sbr.rel (0) target = $region73
  $region72: #{spmm_forward.7} parent=0 // pred_region
    _
  $region73: #{spmm_forward.7} parent=0 // pred_fallthru
    _
  // Predicated region
  $region74: #{spmm_forward.7} parent=0 // pred_check
    _
  $region75: #{spmm_forward.7} parent=0 // pred_check_branch
    %626 = sbr.rel (0) target = $region77
  $region76: #{spmm_forward.7} parent=0 // pred_region
    _
  $region77: #{spmm_forward.7} parent=0 // pred_fallthru
    _
  // Predicated region
  $region78: #{spmm_forward.7} parent=0 // pred_check
    _
  $region79: #{spmm_forward.7} parent=0 // pred_check_branch
    %628 = sbr.rel (0) target = $region81
  $region80: #{spmm_forward.7} parent=0 // pred_region
    _
  $region81: #{spmm_forward.7} parent=0 // pred_fallthru
    _

// kernel: spmm_forward.8
$region0: #{spmm_forward.8}
  #allocation0 [shape = 'u32[]', space=smem, size = 0x4, offset = 0x4, fixed_abs, tag = 'smem constant byte address 0x4 - core index']
  #allocation1 [shape = 'u32[144,128]{1,0:T(1,128)}', space=vmem, size = 0x12000, scoped, tag = 'internal scratch']
  #allocation2 [shape = 'f32[1,1]{1,0:T(1,128)S(6)}', space=smem, size = 0x200, scoped, tag = 'scoped memory for spmm_forward.8']
  #allocation3 [shape = 'f32[1,1]{1,0:T(1,128)S(6)}', space=smem, size = 0x200, scoped, tag = 'scoped memory for spmm_forward.8']
  %s0 = inlined_call_operand.vmem [shape: bf16[8,32], index: 0, kind: input, shape index: {}]
  %s1 = inlined_call_operand.vmem [shape: bf16[32,10], index: 1, kind: input, shape index: {}]
  %s2 = inlined_call_operand.vmem [shape: bf16[32,10], index: 2, kind: input, shape index: {}]
  %s3 = inlined_call_operand.<no memory space> [shape: f32[1,1], index: 3, kind: input, shape index: {}]
  %s4 = inlined_call_operand.<no memory space> [shape: f32[1,1], index: 4, kind: input, shape index: {}]
  %s5 = inlined_call_operand.hbm [shape: f32[1,1], index: 5, kind: output, shape index: {0}]
  %s6 = inlined_call_operand.vmem [shape: f32[8,2], index: 6, kind: output, shape index: {1}]
  %7 = xla_tuple %s5, %s6
  %s8 = sld [smem:[#allocation0]]
  $region38: #{spmm_forward.8} parent=0
    _
  %s10 = ssub.s32 1, %s8
  %s11 = scalar_select 0, %s10, %s8
  %12 = sst [smem:[#allocation2]] %s3
  %13 = sst [smem:[#allocation3]] %s4
  $region1: #{spmm_forward.8} parent=0
    #allocation4 [shape = 'u8[512]{0}', space=vmem, size = 0x400, scoped, tag = 'output window, operand 0, single buffered']
    #allocation5 [shape = 's32[1]{0}', space=sflag, size = 0x4, scoped, tag = 'scoped memory for spmm_forward.8']
    %14 = vsyncpa [#allocation5], 0
    // Predicated region
    $region2: #{spmm_forward.8} parent=1 // pred_check
      _
    $region3: #{spmm_forward.8} parent=1 // pred_check_branch
      %16 = sbr.rel (0) target = $region5
    $region4: #{spmm_forward.8} parent=1 // pred_region
      _
    $region5: #{spmm_forward.8} parent=1 // pred_fallthru
      _
    // Predicated region
    $region6: #{spmm_forward.8} parent=1 // pred_check
      _
    $region7: #{spmm_forward.8} parent=1 // pred_check_branch
      %18 = sbr.rel (0) target = $region9
    $region8: #{spmm_forward.8} parent=1 // pred_region
      _
    $region9: #{spmm_forward.8} parent=1 // pred_fallthru
      _
    // Predicated region
    $region10: #{spmm_forward.8} parent=1 // pred_check
      _
    $region11: #{spmm_forward.8} parent=1 // pred_check_branch
      %20 = sbr.rel (0) target = $region13
    $region12: #{spmm_forward.8} parent=1 // pred_region
      _
    $region13: #{spmm_forward.8} parent=1 // pred_fallthru
      _
    // Predicated region
    $region14: #{spmm_forward.8} parent=1 // pred_check
      _
    $region15: #{spmm_forward.8} parent=1 // pred_check_branch
      %22 = sbr.rel (0) target = $region17
    $region16: #{spmm_forward.8} parent=1 // pred_region
      _
    $region17: #{spmm_forward.8} parent=1 // pred_fallthru
      _
    // Predicated region
    $region18: #{spmm_forward.8} parent=1 // pred_check
      _
    $region19: #{spmm_forward.8} parent=1 // pred_check_branch
      %24 = sbr.rel (0) target = $region21
    $region20: #{spmm_forward.8} parent=1 // pred_region
      _
    $region21: #{spmm_forward.8} parent=1 // pred_fallthru
      _
    %s26 = sld [smem:[#allocation3]]
    %s27 = sld [smem:[#allocation2]]
    %v28 = vld [vmem:[%s0] sm:$0xf]
    %v29 = vld [vmem:[%s1] sm:$0xf]
    %v30 = vld [vmem:[%s1 + $0x4] sm:$0xf]
    %v31 = vld [vmem:[%s1 + $0x8] sm:$0xf]
    %v32 = vld [vmem:[%s1 + $0xc] sm:$0xf]
    %v37 = vunpack.c.l.b16 %v29
    %v38 = vunpack.c.l.b16 %v30
    %v39 = vunpack.c.l.b16 %v31
    %v40 = vunpack.c.l.b16 %v32
    %v41 = vpack.c.b16 %v38, %v37
    %v42 = vpack.c.b16 %v40, %v39
    %vm45 = vcmask 261120
    %v47 = vsel %vm45, %v28, 0
    %49 = vmatprep.subr.bf16.mxu0 0
    %50 = vmatpush1.bf16.msra.mxu0 0
    %51 = vmatprep.subr.bf16.mxu0 0
    %52 = vmatpush1.bf16.msra.mxu0 0
    %53 = vmatprep.subr.bf16.mxu0 0
    %54 = vmatpush1.bf16.msra.mxu0 0
    %55 = vmatprep.subr.bf16.mxu0 0
    %56 = vmatpush1.bf16.msra.mxu0 0
    %57 = vmatprep.subr.bf16.mxu0 0
    %58 = vmatpush1.bf16.msra.mxu0 0
    %59 = vmatprep.subr.bf16.mxu0 0
    %60 = vmatpush1.bf16.msra.mxu0 0
    %61 = vmatprep.subr.bf16.mxu0 0
    %62 = vmatpush1.bf16.msra.mxu0 %v42
    %63 = vmatprep.subr.bf16.mxu0 0
    %64 = vmatpush1.bf16.msra.mxu0 %v41
    %65 = vmatprep.subr.bf16.mxu0 0
    %66 = vmatpush2.bf16.msra.mxu0 0
    %67 = vmatprep.subr.bf16.mxu0 0
    %68 = vmatpush2.bf16.msra.mxu0 0
    %69 = vmatprep.subr.bf16.mxu0 0
    %70 = vmatpush2.bf16.msra.mxu0 0
    %71 = vmatprep.subr.bf16.mxu0 0
    %72 = vmatpush2.bf16.msra.mxu0 0
    %73 = vmatprep.subr.bf16.mxu0 0
    %74 = vmatpush2.bf16.msra.mxu0 0
    %75 = vmatprep.subr.bf16.mxu0 0
    %76 = vmatpush2.bf16.msra.mxu0 0
    %77 = vmatprep.subr.bf16.mxu0 0
    %78 = vmatpush2.bf16.msra.mxu0 0
    %79 = vmatprep.subr.bf16.mxu0 0
    %80 = vmatpush2.bf16.msra.mxu0 0
    %81 = vmatprep.mubr.bf16.mxu0 0
    %82 = vmatmul.mubr.bf16.gmra.mxu0 %v47
    %v83 = vpop.f32.mrf.mxu0
    %v84 = vadd.f32 0.0, %v83
    %v85 = vpop.f32.mrf.mxu0
    %v86 = vpop.f32.mrf.mxu0
    %v87 = vpop.f32.mrf.mxu0
    %88 = vdwg.mxu0
    %v89 = vstv %s26
    %v90 = vmul.f32 %v84, %v89
    %v91 = vld [vmem:[%s2] sm:$0xf]
    %v92 = vld [vmem:[%s2 + $0x4] sm:$0xf]
    %v93 = vld [vmem:[%s2 + $0x8] sm:$0xf]
    %v94 = vld [vmem:[%s2 + $0xc] sm:$0xf]
    %v99 = vunpack.c.l.b16 %v91
    %v100 = vunpack.c.l.b16 %v92
    %v101 = vunpack.c.l.b16 %v93
    %v102 = vunpack.c.l.b16 %v94
    %v103 = vpack.c.b16 %v100, %v99
    %v104 = vpack.c.b16 %v102, %v101
    %107 = vmatprep.subr.bf16.mxu0 0
    %108 = vmatpush1.bf16.msra.mxu0 0
    %109 = vmatprep.subr.bf16.mxu0 0
    %110 = vmatpush1.bf16.msra.mxu0 0
    %111 = vmatprep.subr.bf16.mxu0 0
    %112 = vmatpush1.bf16.msra.mxu0 0
    %113 = vmatprep.subr.bf16.mxu0 0
    %114 = vmatpush1.bf16.msra.mxu0 0
    %115 = vmatprep.subr.bf16.mxu0 0
    %116 = vmatpush1.bf16.msra.mxu0 0
    %117 = vmatprep.subr.bf16.mxu0 0
    %118 = vmatpush1.bf16.msra.mxu0 0
    %119 = vmatprep.subr.bf16.mxu0 0
    %120 = vmatpush1.bf16.msra.mxu0 %v104
    %121 = vmatprep.subr.bf16.mxu0 0
    %122 = vmatpush1.bf16.msra.mxu0 %v103
    %123 = vmatprep.subr.bf16.mxu0 0
    %124 = vmatpush2.bf16.msra.mxu0 0
    %125 = vmatprep.subr.bf16.mxu0 0
    %126 = vmatpush2.bf16.msra.mxu0 0
    %127 = vmatprep.subr.bf16.mxu0 0
    %128 = vmatpush2.bf16.msra.mxu0 0
    %129 = vmatprep.subr.bf16.mxu0 0
    %130 = vmatpush2.bf16.msra.mxu0 0
    %131 = vmatprep.subr.bf16.mxu0 0
    %132 = vmatpush2.bf16.msra.mxu0 0
    %133 = vmatprep.subr.bf16.mxu0 0
    %134 = vmatpush2.bf16.msra.mxu0 0
    %135 = vmatprep.subr.bf16.mxu0 0
    %136 = vmatpush2.bf16.msra.mxu0 0
    %137 = vmatprep.subr.bf16.mxu0 0
    %138 = vmatpush2.bf16.msra.mxu0 0
    %139 = vmatprep.mubr.bf16.mxu0 0
    %140 = vmatmul.mubr.bf16.gmra.mxu0 %v47
    %v141 = vpop.f32.mrf.mxu0
    %v142 = vadd.f32 0.0, %v141
    %v143 = vpop.f32.mrf.mxu0
    %v144 = vpop.f32.mrf.mxu0
    %v145 = vpop.f32.mrf.mxu0
    %146 = vdwg.mxu0
    %v147 = vmul.f32 %v142, %v89
    %v148 = vlaneseq
    %v149 = vshrl.u32 %v148, 7
    %v150 = vlaneseq
    %v151 = vand.u32 %v150, 127
    %vm152 = vcmp.eq.s32.totalorder %v151, %v149
    %vm153 = vcmp.lt.s32.totalorder %v149, 2
    %vm154 = vmand %vm152, %vm153
    %v155 = vsub.s32 %v149, 2
    %vm156 = vcmp.eq.s32.totalorder %v151, %v155
    %vm157 = vcmp.ge.s32.totalorder %v149, 2
    %vm158 = vmand %vm156, %vm157
    %vm159 = vcmp.lt.s32.totalorder %v149, 4
    %vm160 = vmand %vm158, %vm159
    %vm161 = vmor %vm154, %vm160
    %v162 = vsel %vm161, 1, 0
    %v163 = vcvt.s32.f32 %v162
    %v164 = vadd.s32 %v149, 4
    %vm165 = vcmp.eq.s32.totalorder %v151, %v164
    %v166 = vsel %vm165, 1, 0
    %v167 = vcvt.s32.f32 %v166
    %vm168 = vcmask 80896
    %v169 = vsel %vm168, %v90, -inf
    %170 = vmax.xlane.f32.xlu0 %v169
    %v171 = vpop.xlane.xlu0 %170
    %v172 = vsub.f32 %v90, %v171
    %v173 = vmul.f32 %v172, 1.442695
    %v174 = vpow.pop %v173
    %v175 = vsel %vm168, %v174, 0.0
    %176 = vadd.xlane.f32.xlu0 %v175
    %v177 = vpop.xlane.xlu0 %176
    %v178 = vlog2.pop %v177
    %v179 = vmul.f32 %v178, 0.6931472
    %v180 = vsub.f32 %v172, %v179
    %v181 = vrcp.pop %v177
    %v182 = vmul.f32 %v174, %v181
    %v184 = vsel %vm168, %v180, 0
    %v187 = vsel %vm168, %v182, 0
    %189 = vmatprep.subr.mxu0 0.0
    %190 = vmatpush1.xpose.msra.mxu0 0.0
    %191 = vmatprep.subr.mxu0 0.0
    %192 = vmatpush1.xpose.msra.mxu0 0.0
    %193 = vmatprep.subr.mxu0 0.0
    %194 = vmatpush1.xpose.msra.mxu0 0.0
    %195 = vmatprep.subr.mxu0 0.0
    %196 = vmatpush1.xpose.msra.mxu0 0.0
    %197 = vmatprep.subr.mxu0 0.0
    %198 = vmatpush1.xpose.msra.mxu0 0.0
    %199 = vmatprep.subr.mxu0 0.0
    %200 = vmatpush1.xpose.msra.mxu0 0.0
    %201 = vmatprep.subr.mxu0 0.0
    %202 = vmatpush1.xpose.msra.mxu0 0.0
    %203 = vmatprep.subr.mxu0 0.0
    %204 = vmatpush1.xpose.msra.mxu0 0.0
    %205 = vmatprep.subr.mxu0 0.0
    %206 = vmatpush1.xpose.msra.mxu0 0.0
    %207 = vmatprep.subr.mxu0 0.0
    %208 = vmatpush1.xpose.msra.mxu0 0.0
    %209 = vmatprep.subr.mxu0 0.0
    %210 = vmatpush1.xpose.msra.mxu0 0.0
    %211 = vmatprep.subr.mxu0 0.0
    %212 = vmatpush1.xpose.msra.mxu0 0.0
    %213 = vmatprep.subr.mxu0 0.0
    %214 = vmatpush1.xpose.msra.mxu0 0.0
    %215 = vmatprep.subr.mxu0 0.0
    %216 = vmatpush1.xpose.msra.mxu0 0.0
    %217 = vmatprep.subr.mxu0 0.0
    %218 = vmatpush1.xpose.msra.mxu0 0.0
    %219 = vmatprep.subr.mxu0 0.0
    %220 = vmatpush1.xpose.msra.mxu0 %v187
    %221 = vmatprep.subr.mxu0 0.0
    %222 = vmatpush2.xpose.msra.mxu0 0.0
    %223 = vmatprep.subr.mxu0 0.0
    %224 = vmatpush2.xpose.msra.mxu0 0.0
    %225 = vmatprep.subr.mxu0 0.0
    %226 = vmatpush2.xpose.msra.mxu0 0.0
    %227 = vmatprep.subr.mxu0 0.0
    %228 = vmatpush2.xpose.msra.mxu0 0.0
    %229 = vmatprep.subr.mxu0 0.0
    %230 = vmatpush2.xpose.msra.mxu0 0.0
    %231 = vmatprep.subr.mxu0 0.0
    %232 = vmatpush2.xpose.msra.mxu0 0.0
    %233 = vmatprep.subr.mxu0 0.0
    %234 = vmatpush2.xpose.msra.mxu0 0.0
    %235 = vmatprep.subr.mxu0 0.0
    %236 = vmatpush2.xpose.msra.mxu0 0.0
    %237 = vmatprep.subr.mxu0 0.0
    %238 = vmatpush2.xpose.msra.mxu0 0.0
    %239 = vmatprep.subr.mxu0 0.0
    %240 = vmatpush2.xpose.msra.mxu0 0.0
    %241 = vmatprep.subr.mxu0 0.0
    %242 = vmatpush2.xpose.msra.mxu0 0.0
    %243 = vmatprep.subr.mxu0 0.0
    %244 = vmatpush2.xpose.msra.mxu0 0.0
    %245 = vmatprep.subr.mxu0 0.0
    %246 = vmatpush2.xpose.msra.mxu0 0.0
    %247 = vmatprep.subr.mxu0 0.0
    %248 = vmatpush2.xpose.msra.mxu0 0.0
    %249 = vmatprep.subr.mxu0 0.0
    %250 = vmatpush2.xpose.msra.mxu0 0.0
    %251 = vmatprep.subr.mxu0 0.0
    %252 = vmatpush2.xpose.msra.mxu0 0.0
    %253 = vmatprep.mubr.f32.mxu0 0.0
    %254 = vmatmul.mubr.f32.gmra.mxu0 %v184
    %v255 = vpop.f32.mrf.mxu0
    %v256 = vadd.f32 0.0, %v255
    %v257 = vpop.f32.mrf.mxu0
    %258 = vdwg.mxu0
    %v259 = vmul.f32 %v256, %v167
    %vm260 = vcmask 64512
    %v261 = vsel %vm260, %v259, 0.0
    %262 = vadd.xlane.f32.xlu0 %v261
    %v263 = vpop.xlane.xlu0 %262
    %v264 = vrot.slane %v263, 4
    %v265 = vadd.f32 %v263, %v264
    %v266 = vrot.slane %v265, 2
    %v267 = vadd.f32 %v265, %v266
    %v268 = vrot.slane %v267, 1
    %v269 = vadd.f32 %v267, %v268
    %v270 = vmul.f32 %v180, %v163
    %v271 = vsel %vm168, %v270, 0.0
    %272 = vadd.xlane.f32.xlu0 %v271
    %v273 = vpop.xlane.xlu0 %272
    %v274 = vrot.slane %v273, 4
    %v275 = vadd.f32 %v273, %v274
    %v276 = vrot.slane %v275, 2
    %v277 = vadd.f32 %v275, %v276
    %v278 = vrot.slane %v277, 1
    %v279 = vadd.f32 %v277, %v278
    %v280 = vstv %s27
    %v281 = vmul.f32 %v280, %v269
    %s282 = ssub.f32 1.0, %s27
    %v283 = vstv %s282
    %v284 = vmul.f32 %v283, %v279
    %v285 = vadd.f32 %v281, %v284
    %v286 = vsub.f32 0.0, %v285
    %v287 = vsel %vm168, %v147, -inf
    %288 = vmax.xlane.f32.xlu0 %v287
    %v289 = vpop.xlane.xlu0 %288
    %v290 = vsub.f32 %v147, %v289
    %v291 = vmul.f32 %v290, 1.442695
    %v292 = vpow.pop %v291
    %v293 = vsel %vm168, %v292, 0.0
    %294 = vadd.xlane.f32.xlu0 %v293
    %v295 = vpop.xlane.xlu0 %294
    %v296 = vlog2.pop %v295
    %v297 = vmul.f32 %v296, 0.6931472
    %v298 = vsub.f32 %v290, %v297
    %v299 = vrcp.pop %v295
    %v300 = vmul.f32 %v292, %v299
    %v302 = vsel %vm168, %v298, 0
    %v305 = vsel %vm168, %v300, 0
    %307 = vmatprep.subr.mxu0 0.0
    %308 = vmatpush1.xpose.msra.mxu0 0.0
    %309 = vmatprep.subr.mxu0 0.0
    %310 = vmatpush1.xpose.msra.mxu0 0.0
    %311 = vmatprep.subr.mxu0 0.0
    %312 = vmatpush1.xpose.msra.mxu0 0.0
    %313 = vmatprep.subr.mxu0 0.0
    %314 = vmatpush1.xpose.msra.mxu0 0.0
    %315 = vmatprep.subr.mxu0 0.0
    %316 = vmatpush1.xpose.msra.mxu0 0.0
    %317 = vmatprep.subr.mxu0 0.0
    %318 = vmatpush1.xpose.msra.mxu0 0.0
    %319 = vmatprep.subr.mxu0 0.0
    %320 = vmatpush1.xpose.msra.mxu0 0.0
    %321 = vmatprep.subr.mxu0 0.0
    %322 = vmatpush1.xpose.msra.mxu0 0.0
    %323 = vmatprep.subr.mxu0 0.0
    %324 = vmatpush1.xpose.msra.mxu0 0.0
    %325 = vmatprep.subr.mxu0 0.0
    %326 = vmatpush1.xpose.msra.mxu0 0.0
    %327 = vmatprep.subr.mxu0 0.0
    %328 = vmatpush1.xpose.msra.mxu0 0.0
    %329 = vmatprep.subr.mxu0 0.0
    %330 = vmatpush1.xpose.msra.mxu0 0.0
    %331 = vmatprep.subr.mxu0 0.0
    %332 = vmatpush1.xpose.msra.mxu0 0.0
    %333 = vmatprep.subr.mxu0 0.0
    %334 = vmatpush1.xpose.msra.mxu0 0.0
    %335 = vmatprep.subr.mxu0 0.0
    %336 = vmatpush1.xpose.msra.mxu0 0.0
    %337 = vmatprep.subr.mxu0 0.0
    %338 = vmatpush1.xpose.msra.mxu0 %v305
    %339 = vmatprep.subr.mxu0 0.0
    %340 = vmatpush2.xpose.msra.mxu0 0.0
    %341 = vmatprep.subr.mxu0 0.0
    %342 = vmatpush2.xpose.msra.mxu0 0.0
    %343 = vmatprep.subr.mxu0 0.0
    %344 = vmatpush2.xpose.msra.mxu0 0.0
    %345 = vmatprep.subr.mxu0 0.0
    %346 = vmatpush2.xpose.msra.mxu0 0.0
    %347 = vmatprep.subr.mxu0 0.0
    %348 = vmatpush2.xpose.msra.mxu0 0.0
    %349 = vmatprep.subr.mxu0 0.0
    %350 = vmatpush2.xpose.msra.mxu0 0.0
    %351 = vmatprep.subr.mxu0 0.0
    %352 = vmatpush2.xpose.msra.mxu0 0.0
    %353 = vmatprep.subr.mxu0 0.0
    %354 = vmatpush2.xpose.msra.mxu0 0.0
    %355 = vmatprep.subr.mxu0 0.0
    %356 = vmatpush2.xpose.msra.mxu0 0.0
    %357 = vmatprep.subr.mxu0 0.0
    %358 = vmatpush2.xpose.msra.mxu0 0.0
    %359 = vmatprep.subr.mxu0 0.0
    %360 = vmatpush2.xpose.msra.mxu0 0.0
    %361 = vmatprep.subr.mxu0 0.0
    %362 = vmatpush2.xpose.msra.mxu0 0.0
    %363 = vmatprep.subr.mxu0 0.0
    %364 = vmatpush2.xpose.msra.mxu0 0.0
    %365 = vmatprep.subr.mxu0 0.0
    %366 = vmatpush2.xpose.msra.mxu0 0.0
    %367 = vmatprep.subr.mxu0 0.0
    %368 = vmatpush2.xpose.msra.mxu0 0.0
    %369 = vmatprep.subr.mxu0 0.0
    %370 = vmatpush2.xpose.msra.mxu0 0.0
    %371 = vmatprep.mubr.f32.mxu0 0.0
    %372 = vmatmul.mubr.f32.gmra.mxu0 %v302
    %v373 = vpop.f32.mrf.mxu0
    %v374 = vadd.f32 0.0, %v373
    %v375 = vpop.f32.mrf.mxu0
    %376 = vdwg.mxu0
    %v377 = vmul.f32 %v374, %v167
    %v378 = vsel %vm260, %v377, 0.0
    %379 = vadd.xlane.f32.xlu0 %v378
    %v380 = vpop.xlane.xlu0 %379
    %v381 = vrot.slane %v380, 4
    %v382 = vadd.f32 %v380, %v381
    %v383 = vrot.slane %v382, 2
    %v384 = vadd.f32 %v382, %v383
    %v385 = vrot.slane %v384, 1
    %v386 = vadd.f32 %v384, %v385
    %v387 = vmul.f32 %v298, %v163
    %v388 = vsel %vm168, %v387, 0.0
    %389 = vadd.xlane.f32.xlu0 %v388
    %v390 = vpop.xlane.xlu0 %389
    %v391 = vrot.slane %v390, 4
    %v392 = vadd.f32 %v390, %v391
    %v393 = vrot.slane %v392, 2
    %v394 = vadd.f32 %v392, %v393
    %v395 = vrot.slane %v394, 1
    %v396 = vadd.f32 %v394, %v395
    %v397 = vmul.f32 %v280, %v386
    %v398 = vmul.f32 %v283, %v396
    %v399 = vadd.f32 %v397, %v398
    %v400 = vsub.f32 0.0, %v399
    %v401 = vadd.f32 %v286, %v400
    %v402 = vrcp.pop 4.0
    %v403 = vmul.f32 %v401, %v402
    %vm404 = vcmask 0
    %405 = vst.msk [vmem:[#allocation4] sm:$0x1] %vm404, %v403
    %vm406 = vmor %vm152, %vm156
    %v407 = vsel %vm406, 1, 0
    %v408 = vcvt.s32.f32 %v407
    %v409 = vsub.f32 1.0, %v408
    %vm410 = vcmask 15360
    %v411 = vsel %vm410, %v147, -inf
    %412 = vmax.xlane.f32.xlu0 %v411
    %v413 = vpop.xlane.xlu0 %412
    %v414 = vsub.f32 %v147, %v413
    %v415 = vmul.f32 %v414, 1.442695
    %v416 = vpow.pop %v415
    %v417 = vsel %vm410, %v416, 0.0
    %418 = vadd.xlane.f32.xlu0 %v417
    %v419 = vpop.xlane.xlu0 %418
    %v420 = vrcp.pop %v419
    %v421 = vmul.f32 %v416, %v420
    %v422 = vsel %vm410, %v90, -inf
    %423 = vmax.xlane.f32.xlu0 %v422
    %v424 = vpop.xlane.xlu0 %423
    %v425 = vsub.f32 %v90, %v424
    %v426 = vmul.f32 %v425, 1.442695
    %v427 = vpow.pop %v426
    %v428 = vsel %vm410, %v427, 0.0
    %429 = vadd.xlane.f32.xlu0 %v428
    %v430 = vpop.xlane.xlu0 %429
    %v431 = vrcp.pop %v430
    %v432 = vmul.f32 %v427, %v431
    %v433 = vsel %vm153, %v421, %v432
    %v434 = vmul.f32 %v433, %v409
    %435 = vst.msk [vmem:[%s6] sm:$0xff] %vm410, %v434
    // Predicated region
    $region22: #{spmm_forward.8} parent=1 // pred_check
      _
    $region23: #{spmm_forward.8} parent=1 // pred_check_branch
      %437 = sbr.rel (0) target = $region25
    $region24: #{spmm_forward.8} parent=1 // pred_region
      %s439 = ssub.s32 16, 16
      %440 = vsyncadd [#allocation5], %s439
      %s442 = sshll.u32 [#allocation4], 4
      %s443 = int_to_ptr.vmem [resolvable:$true] %s442
      %445 = dma.vmem_to_hbm [thread:$0]  %s443, 16, %s5, [#allocation5]
    $region25: #{spmm_forward.8} parent=1 // pred_fallthru
      _
    // Predicated region
    $region26: #{spmm_forward.8} parent=1 // pred_check
      _
    $region27: #{spmm_forward.8} parent=1 // pred_check_branch
      %447 = sbr.rel (0) target = $region29
    $region28: #{spmm_forward.8} parent=1 // pred_region
      _
    $region29: #{spmm_forward.8} parent=1 // pred_fallthru
      _
    // Predicated region
    $region30: #{spmm_forward.8} parent=1 // pred_check
      _
    $region31: #{spmm_forward.8} parent=1 // pred_check_branch
      %449 = sbr.rel (0) target = $region33
    $region32: #{spmm_forward.8} parent=1 // pred_region
      %450 = dma.done [#allocation5], 16
    $region33: #{spmm_forward.8} parent=1 // pred_fallthru
      _
    // Predicated region
    $region34: #{spmm_forward.8} parent=1 // pred_check
      _
    $region35: #{spmm_forward.8} parent=1 // pred_check_branch
      %452 = sbr.rel (0) target = $region37
    $region36: #{spmm_forward.8} parent=1 // pred_region
      _
    $region37: #{spmm_forward.8} parent=1 // pred_fallthru
      _
    %453 = vsyncpa [#allocation5], 1

// kernel: spmm_forward.9
$region0: #{spmm_forward.9}
  #allocation0 [shape = 'u32[]', space=smem, size = 0x4, offset = 0x4, fixed_abs, tag = 'smem constant byte address 0x4 - core index']
  #allocation1 [shape = 'u32[144,128]{1,0:T(1,128)}', space=vmem, size = 0x12000, scoped, tag = 'internal scratch']
  %s0 = inlined_call_operand.vmem [shape: f32[2,128], index: 0, kind: input, shape index: {}]
  %s1 = inlined_call_operand.vmem [shape: s32[8,1], index: 1, kind: input, shape index: {}]
  %s2 = inlined_call_operand.vmem [shape: s32[8,1], index: 2, kind: input, shape index: {}]
  %s3 = inlined_call_operand.vmem [shape: bf16[128,64], index: 3, kind: input, shape index: {}]
  %s4 = inlined_call_operand.vmem [shape: f32[1,64], index: 4, kind: input, shape index: {}]
  %s5 = inlined_call_operand.vmem [shape: bf16[64,2], index: 5, kind: input, shape index: {}]
  %s6 = inlined_call_operand.vmem [shape: f32[1,2], index: 6, kind: input, shape index: {}]
  %s7 = inlined_call_operand.hbm [shape: f32[1,1], index: 7, kind: output, shape index: {}]
  %s8 = sld [smem:[#allocation0]]
  $region38: #{spmm_forward.9} parent=0
    _
  %s10 = ssub.s32 1, %s8
  %s11 = scalar_select 0, %s10, %s8
  $region1: #{spmm_forward.9} parent=0
    #allocation2 [shape = 'u8[512]{0}', space=vmem, size = 0x400, scoped, tag = 'output window, operand 0, single buffered']
    #allocation3 [shape = 's32[1]{0}', space=sflag, size = 0x4, scoped, tag = 'scoped memory for spmm_forward.9']
    %12 = vsyncpa [#allocation3], 0
    // Predicated region
    $region2: #{spmm_forward.9} parent=1 // pred_check
      _
    $region3: #{spmm_forward.9} parent=1 // pred_check_branch
      %14 = sbr.rel (0) target = $region5
    $region4: #{spmm_forward.9} parent=1 // pred_region
      _
    $region5: #{spmm_forward.9} parent=1 // pred_fallthru
      _
    // Predicated region
    $region6: #{spmm_forward.9} parent=1 // pred_check
      _
    $region7: #{spmm_forward.9} parent=1 // pred_check_branch
      %16 = sbr.rel (0) target = $region9
    $region8: #{spmm_forward.9} parent=1 // pred_region
      _
    $region9: #{spmm_forward.9} parent=1 // pred_fallthru
      _
    // Predicated region
    $region10: #{spmm_forward.9} parent=1 // pred_check
      _
    $region11: #{spmm_forward.9} parent=1 // pred_check_branch
      %18 = sbr.rel (0) target = $region13
    $region12: #{spmm_forward.9} parent=1 // pred_region
      _
    $region13: #{spmm_forward.9} parent=1 // pred_fallthru
      _
    // Predicated region
    $region14: #{spmm_forward.9} parent=1 // pred_check
      _
    $region15: #{spmm_forward.9} parent=1 // pred_check_branch
      %20 = sbr.rel (0) target = $region17
    $region16: #{spmm_forward.9} parent=1 // pred_region
      _
    $region17: #{spmm_forward.9} parent=1 // pred_fallthru
      _
    // Predicated region
    $region18: #{spmm_forward.9} parent=1 // pred_check
      _
    $region19: #{spmm_forward.9} parent=1 // pred_check_branch
      %22 = sbr.rel (0) target = $region21
    $region20: #{spmm_forward.9} parent=1 // pred_region
      _
    $region21: #{spmm_forward.9} parent=1 // pred_fallthru
      _
    // Predicated region
    $region22: #{spmm_forward.9} parent=1 // pred_check
      _
    $region23: #{spmm_forward.9} parent=1 // pred_check_branch
      %24 = sbr.rel (0) target = $region25
    $region24: #{spmm_forward.9} parent=1 // pred_region
      _
    $region25: #{spmm_forward.9} parent=1 // pred_fallthru
      _
    // Predicated region
    $region26: #{spmm_forward.9} parent=1 // pred_check
      _
    $region27: #{spmm_forward.9} parent=1 // pred_check_branch
      %26 = sbr.rel (0) target = $region29
    $region28: #{spmm_forward.9} parent=1 // pred_region
      _
    $region29: #{spmm_forward.9} parent=1 // pred_fallthru
      _
    %v28 = vld [vmem:[%s0] sm:$0x3]
    %v29 = vlaneseq
    %v30 = vand.u32 %v29, 127
    %v31 = vld [vmem:[%s1] sm:$0xff]
    %32 = vset.pattern.permute.xlu0 0
    %33 = vperm.xlu0 %32, %v31
    %v34 = vpop.permute.xlu0 %33
    %vm35 = vcmp.eq.s32.totalorder %v30, %v34
    %v36 = vsel %vm35, 1, 0
    %v37 = vcvt.s32.f32 %v36
    %v38 = vld [vmem:[%s2] sm:$0xff]
    %39 = vset.pattern.permute.xlu0 0
    %40 = vperm.xlu0 %39, %v38
    %v41 = vpop.permute.xlu0 %40
    %vm42 = vcmp.eq.s32.totalorder %v30, %v41
    %v43 = vsel %vm42, 1, 0
    %v44 = vcvt.s32.f32 %v43
    %vm45 = vcmask 15360
    %v47 = vsel %vm45, %v37, 0
    %vm49 = vcmask 1041408
    %v51 = vsel %vm49, %v28, 0
    %53 = vmatprep.subr.mxu0 0.0
    %54 = vmatpush1.msra.mxu0 0.0
    %55 = vmatprep.subr.mxu0 0.0
    %56 = vmatpush1.msra.mxu0 0.0
    %57 = vmatprep.subr.mxu0 0.0
    %58 = vmatpush1.msra.mxu0 0.0
    %59 = vmatprep.subr.mxu0 0.0
    %60 = vmatpush1.msra.mxu0 0.0
    %61 = vmatprep.subr.mxu0 0.0
    %62 = vmatpush1.msra.mxu0 0.0
    %63 = vmatprep.subr.mxu0 0.0
    %64 = vmatpush1.msra.mxu0 0.0
    %65 = vmatprep.subr.mxu0 0.0
    %66 = vmatpush1.msra.mxu0 0.0
    %67 = vmatprep.subr.mxu0 0.0
    %68 = vmatpush1.msra.mxu0 0.0
    %69 = vmatprep.subr.mxu0 0.0
    %70 = vmatpush1.msra.mxu0 0.0
    %71 = vmatprep.subr.mxu0 0.0
    %72 = vmatpush1.msra.mxu0 0.0
    %73 = vmatprep.subr.mxu0 0.0
    %74 = vmatpush1.msra.mxu0 0.0
    %75 = vmatprep.subr.mxu0 0.0
    %76 = vmatpush1.msra.mxu0 0.0
    %77 = vmatprep.subr.mxu0 0.0
    %78 = vmatpush1.msra.mxu0 0.0
    %79 = vmatprep.subr.mxu0 0.0
    %80 = vmatpush1.msra.mxu0 0.0
    %81 = vmatprep.subr.mxu0 0.0
    %82 = vmatpush1.msra.mxu0 0.0
    %83 = vmatprep.subr.mxu0 0.0
    %84 = vmatpush1.msra.mxu0 %v51
    %85 = vmatprep.subr.mxu0 0.0
    %86 = vmatpush2.msra.mxu0 0.0
    %87 = vmatprep.subr.mxu0 0.0
    %88 = vmatpush2.msra.mxu0 0.0
    %89 = vmatprep.subr.mxu0 0.0
    %90 = vmatpush2.msra.mxu0 0.0
    %91 = vmatprep.subr.mxu0 0.0
    %92 = vmatpush2.msra.mxu0 0.0
    %93 = vmatprep.subr.mxu0 0.0
    %94 = vmatpush2.msra.mxu0 0.0
    %95 = vmatprep.subr.mxu0 0.0
    %96 = vmatpush2.msra.mxu0 0.0
    %97 = vmatprep.subr.mxu0 0.0
    %98 = vmatpush2.msra.mxu0 0.0
    %99 = vmatprep.subr.mxu0 0.0
    %100 = vmatpush2.msra.mxu0 0.0
    %101 = vmatprep.subr.mxu0 0.0
    %102 = vmatpush2.msra.mxu0 0.0
    %103 = vmatprep.subr.mxu0 0.0
    %104 = vmatpush2.msra.mxu0 0.0
    %105 = vmatprep.subr.mxu0 0.0
    %106 = vmatpush2.msra.mxu0 0.0
    %107 = vmatprep.subr.mxu0 0.0
    %108 = vmatpush2.msra.mxu0 0.0
    %109 = vmatprep.subr.mxu0 0.0
    %110 = vmatpush2.msra.mxu0 0.0
    %111 = vmatprep.subr.mxu0 0.0
    %112 = vmatpush2.msra.mxu0 0.0
    %113 = vmatprep.subr.mxu0 0.0
    %114 = vmatpush2.msra.mxu0 0.0
    %115 = vmatprep.subr.mxu0 0.0
    %116 = vmatpush2.msra.mxu0 0.0
    %117 = vmatprep.mubr.f32.mxu0 0.0
    %118 = vmatmul.mubr.f32.gmra.mxu0 %v47
    %v119 = vpop.f32.mrf.mxu0
    %v120 = vadd.f32 0.0, %v119
    %v121 = vpop.f32.mrf.mxu0
    %122 = vdwg.mxu0
    %v124 = vsel %vm45, %v44, 0
    %126 = vmatprep.subr.mxu0 0.0
    %127 = vmatpush1.msra.mxu0 0.0
    %128 = vmatprep.subr.mxu0 0.0
    %129 = vmatpush1.msra.mxu0 0.0
    %130 = vmatprep.subr.mxu0 0.0
    %131 = vmatpush1.msra.mxu0 0.0
    %132 = vmatprep.subr.mxu0 0.0
    %133 = vmatpush1.msra.mxu0 0.0
    %134 = vmatprep.subr.mxu0 0.0
    %135 = vmatpush1.msra.mxu0 0.0
    %136 = vmatprep.subr.mxu0 0.0
    %137 = vmatpush1.msra.mxu0 0.0
    %138 = vmatprep.subr.mxu0 0.0
    %139 = vmatpush1.msra.mxu0 0.0
    %140 = vmatprep.subr.mxu0 0.0
    %141 = vmatpush1.msra.mxu0 0.0
    %142 = vmatprep.subr.mxu0 0.0
    %143 = vmatpush1.msra.mxu0 0.0
    %144 = vmatprep.subr.mxu0 0.0
    %145 = vmatpush1.msra.mxu0 0.0
    %146 = vmatprep.subr.mxu0 0.0
    %147 = vmatpush1.msra.mxu0 0.0
    %148 = vmatprep.subr.mxu0 0.0
    %149 = vmatpush1.msra.mxu0 0.0
    %150 = vmatprep.subr.mxu0 0.0
    %151 = vmatpush1.msra.mxu0 0.0
    %152 = vmatprep.subr.mxu0 0.0
    %153 = vmatpush1.msra.mxu0 0.0
    %154 = vmatprep.subr.mxu0 0.0
    %155 = vmatpush1.msra.mxu0 0.0
    %156 = vmatprep.subr.mxu0 0.0
    %157 = vmatpush1.msra.mxu0 %v51
    %158 = vmatprep.subr.mxu0 0.0
    %159 = vmatpush2.msra.mxu0 0.0
    %160 = vmatprep.subr.mxu0 0.0
    %161 = vmatpush2.msra.mxu0 0.0
    %162 = vmatprep.subr.mxu0 0.0
    %163 = vmatpush2.msra.mxu0 0.0
    %164 = vmatprep.subr.mxu0 0.0
    %165 = vmatpush2.msra.mxu0 0.0
    %166 = vmatprep.subr.mxu0 0.0
    %167 = vmatpush2.msra.mxu0 0.0
    %168 = vmatprep.subr.mxu0 0.0
    %169 = vmatpush2.msra.mxu0 0.0
    %170 = vmatprep.subr.mxu0 0.0
    %171 = vmatpush2.msra.mxu0 0.0
    %172 = vmatprep.subr.mxu0 0.0
    %173 = vmatpush2.msra.mxu0 0.0
    %174 = vmatprep.subr.mxu0 0.0
    %175 = vmatpush2.msra.mxu0 0.0
    %176 = vmatprep.subr.mxu0 0.0
    %177 = vmatpush2.msra.mxu0 0.0
    %178 = vmatprep.subr.mxu0 0.0
    %179 = vmatpush2.msra.mxu0 0.0
    %180 = vmatprep.subr.mxu0 0.0
    %181 = vmatpush2.msra.mxu0 0.0
    %182 = vmatprep.subr.mxu0 0.0
    %183 = vmatpush2.msra.mxu0 0.0
    %184 = vmatprep.subr.mxu0 0.0
    %185 = vmatpush2.msra.mxu0 0.0
    %186 = vmatprep.subr.mxu0 0.0
    %187 = vmatpush2.msra.mxu0 0.0
    %188 = vmatprep.subr.mxu0 0.0
    %189 = vmatpush2.msra.mxu0 0.0
    %190 = vmatprep.mubr.f32.mxu0 0.0
    %191 = vmatmul.mubr.f32.gmra.mxu0 %v124
    %v192 = vpop.f32.mrf.mxu0
    %v193 = vadd.f32 0.0, %v192
    %v194 = vpop.f32.mrf.mxu0
    %195 = vdwg.mxu0
    %vm196 = vcmp.lt.s32.totalorder %v30, 32
    %vm197 = vcmp.ge.s32.totalorder %v30, 96
    %vm198 = vmor %vm196, %vm197
    %v199 = vsel %vm198, %v120, %v193
    %v200 = vpack.c.bf16 %v199, %v199
    %v201 = vld [vmem:[%s3] sm:$0xf]
    %v202 = vld [vmem:[%s3 + $0x4] sm:$0xf]
    %v203 = vld [vmem:[%s3 + $0x8] sm:$0xf]
    %v204 = vld [vmem:[%s3 + $0xc] sm:$0xf]
    %v205 = vld [vmem:[%s3 + $0x10] sm:$0xf]
    %v206 = vld [vmem:[%s3 + $0x14] sm:$0xf]
    %v207 = vld [vmem:[%s3 + $0x18] sm:$0xf]
    %v208 = vld [vmem:[%s3 + $0x1c] sm:$0xf]
    %v209 = vld [vmem:[%s3 + $0x20] sm:$0xf]
    %v210 = vld [vmem:[%s3 + $0x24] sm:$0xf]
    %v211 = vld [vmem:[%s3 + $0x28] sm:$0xf]
    %v212 = vld [vmem:[%s3 + $0x2c] sm:$0xf]
    %v213 = vld [vmem:[%s3 + $0x30] sm:$0xf]
    %v214 = vld [vmem:[%s3 + $0x34] sm:$0xf]
    %v215 = vld [vmem:[%s3 + $0x38] sm:$0xf]
    %v216 = vld [vmem:[%s3 + $0x3c] sm:$0xf]
    %v217 = vld [vmem:[%s4] sm:$0x1]
    %v219 = vlaneseq
    %v220 = vshrl.u32 %v219, 7
    %v221 = vsub.s32 0, %v220
    %v222 = vrot.slane %v217, %v221
    %v240 = vunpack.c.l.b16 %v201
    %v241 = vunpack.c.l.b16 %v202
    %v242 = vunpack.c.l.b16 %v203
    %v243 = vunpack.c.l.b16 %v204
    %v244 = vunpack.c.l.b16 %v205
    %v245 = vunpack.c.l.b16 %v206
    %v246 = vunpack.c.l.b16 %v207
    %v247 = vunpack.c.l.b16 %v208
    %v248 = vunpack.c.l.b16 %v209
    %v249 = vunpack.c.l.b16 %v210
    %v250 = vunpack.c.l.b16 %v211
    %v251 = vunpack.c.l.b16 %v212
    %v252 = vunpack.c.l.b16 %v213
    %v253 = vunpack.c.l.b16 %v214
    %v254 = vunpack.c.l.b16 %v215
    %v255 = vunpack.c.l.b16 %v216
    %v256 = vpack.c.b16 %v241, %v240
    %v257 = vpack.c.b16 %v243, %v242
    %v258 = vpack.c.b16 %v245, %v244
    %v259 = vpack.c.b16 %v247, %v246
    %v260 = vpack.c.b16 %v249, %v248
    %v261 = vpack.c.b16 %v251, %v250
    %v262 = vpack.c.b16 %v253, %v252
    %v263 = vpack.c.b16 %v255, %v254
    %272 = vmatprep.subr.bf16.mxu0 0
    %273 = vmatpush1.bf16.msra.mxu0 %v263
    %274 = vmatprep.subr.bf16.mxu0 0
    %275 = vmatpush1.bf16.msra.mxu0 %v262
    %276 = vmatprep.subr.bf16.mxu0 0
    %277 = vmatpush1.bf16.msra.mxu0 %v261
    %278 = vmatprep.subr.bf16.mxu0 0
    %279 = vmatpush1.bf16.msra.mxu0 %v260
    %280 = vmatprep.subr.bf16.mxu0 0
    %281 = vmatpush1.bf16.msra.mxu0 %v259
    %282 = vmatprep.subr.bf16.mxu0 0
    %283 = vmatpush1.bf16.msra.mxu0 %v258
    %284 = vmatprep.subr.bf16.mxu0 0
    %285 = vmatpush1.bf16.msra.mxu0 %v257
    %286 = vmatprep.subr.bf16.mxu0 0
    %287 = vmatpush1.bf16.msra.mxu0 %v256
    %288 = vmatprep.subr.bf16.mxu0 0
    %289 = vmatpush2.bf16.msra.mxu0 0
    %290 = vmatprep.subr.bf16.mxu0 0
    %291 = vmatpush2.bf16.msra.mxu0 0
    %292 = vmatprep.subr.bf16.mxu0 0
    %293 = vmatpush2.bf16.msra.mxu0 0
    %294 = vmatprep.subr.bf16.mxu0 0
    %295 = vmatpush2.bf16.msra.mxu0 0
    %296 = vmatprep.subr.bf16.mxu0 0
    %297 = vmatpush2.bf16.msra.mxu0 0
    %298 = vmatprep.subr.bf16.mxu0 0
    %299 = vmatpush2.bf16.msra.mxu0 0
    %300 = vmatprep.subr.bf16.mxu0 0
    %301 = vmatpush2.bf16.msra.mxu0 0
    %302 = vmatprep.subr.bf16.mxu0 0
    %303 = vmatpush2.bf16.msra.mxu0 0
    %304 = vmatprep.mubr.bf16.mxu0 0
    %305 = vmatmul.mubr.bf16.gmra.mxu0 %v200
    %v306 = vpop.f32.mrf.mxu0
    %v307 = vadd.f32 %v222, %v306
    %v308 = vpop.f32.mrf.mxu0
    %v309 = vpop.f32.mrf.mxu0
    %v310 = vpop.f32.mrf.mxu0
    %311 = vdwg.mxu0
    %v312 = vtanh.pop %v307
    %v313 = vpack.c.bf16 %v312, %v312
    %v314 = vld [vmem:[%s5] sm:$0xf]
    %v315 = vld [vmem:[%s5 + $0x4] sm:$0xf]
    %v316 = vld [vmem:[%s5 + $0x8] sm:$0xf]
    %v317 = vld [vmem:[%s5 + $0xc] sm:$0xf]
    %v318 = vld [vmem:[%s5 + $0x10] sm:$0xf]
    %v319 = vld [vmem:[%s5 + $0x14] sm:$0xf]
    %v320 = vld [vmem:[%s5 + $0x18] sm:$0xf]
    %v321 = vld [vmem:[%s5 + $0x1c] sm:$0xf]
    %v322 = vld [vmem:[%s6] sm:$0x1]
    %v324 = vlaneseq
    %v325 = vshrl.u32 %v324, 7
    %v326 = vsub.s32 0, %v325
    %v327 = vrot.slane %v322, %v326
    %v337 = vunpack.c.l.b16 %v314
    %v338 = vunpack.c.l.b16 %v315
    %v339 = vunpack.c.l.b16 %v316
    %v340 = vunpack.c.l.b16 %v317
    %v341 = vunpack.c.l.b16 %v318
    %v342 = vunpack.c.l.b16 %v319
    %v343 = vunpack.c.l.b16 %v320
    %v344 = vunpack.c.l.b16 %v321
    %v345 = vpack.c.b16 %v338, %v337
    %v346 = vpack.c.b16 %v340, %v339
    %v347 = vpack.c.b16 %v342, %v341
    %v348 = vpack.c.b16 %v344, %v343
    %vm353 = vcmask 523264
    %v355 = vsel %vm353, %v313, 0
    %357 = vmatprep.subr.bf16.mxu0 0
    %358 = vmatpush1.bf16.msra.mxu0 0
    %359 = vmatprep.subr.bf16.mxu0 0
    %360 = vmatpush1.bf16.msra.mxu0 0
    %361 = vmatprep.subr.bf16.mxu0 0
    %362 = vmatpush1.bf16.msra.mxu0 0
    %363 = vmatprep.subr.bf16.mxu0 0
    %364 = vmatpush1.bf16.msra.mxu0 0
    %365 = vmatprep.subr.bf16.mxu0 0
    %366 = vmatpush1.bf16.msra.mxu0 %v348
    %367 = vmatprep.subr.bf16.mxu0 0
    %368 = vmatpush1.bf16.msra.mxu0 %v347
    %369 = vmatprep.subr.bf16.mxu0 0
    %370 = vmatpush1.bf16.msra.mxu0 %v346
    %371 = vmatprep.subr.bf16.mxu0 0
    %372 = vmatpush1.bf16.msra.mxu0 %v345
    %373 = vmatprep.subr.bf16.mxu0 0
    %374 = vmatpush2.bf16.msra.mxu0 0
    %375 = vmatprep.subr.bf16.mxu0 0
    %376 = vmatpush2.bf16.msra.mxu0 0
    %377 = vmatprep.subr.bf16.mxu0 0
    %378 = vmatpush2.bf16.msra.mxu0 0
    %379 = vmatprep.subr.bf16.mxu0 0
    %380 = vmatpush2.bf16.msra.mxu0 0
    %381 = vmatprep.subr.bf16.mxu0 0
    %382 = vmatpush2.bf16.msra.mxu0 0
    %383 = vmatprep.subr.bf16.mxu0 0
    %384 = vmatpush2.bf16.msra.mxu0 0
    %385 = vmatprep.subr.bf16.mxu0 0
    %386 = vmatpush2.bf16.msra.mxu0 0
    %387 = vmatprep.subr.bf16.mxu0 0
    %388 = vmatpush2.bf16.msra.mxu0 0
    %389 = vmatprep.mubr.bf16.mxu0 0
    %390 = vmatmul.mubr.bf16.gmra.mxu0 %v355
    %v391 = vpop.f32.mrf.mxu0
    %v392 = vadd.f32 %v327, %v391
    %v393 = vpop.f32.mrf.mxu0
    %v394 = vpop.f32.mrf.mxu0
    %v395 = vpop.f32.mrf.mxu0
    %396 = vdwg.mxu0
    %v397 = vlaneseq
    %v398 = vshrl.u32 %v397, 7
    %vm399 = vcmp.lt.s32.totalorder %v398, 2
    %v400 = vsel %vm399, 1, 0
    %vm401 = vcmp.eq.s32.totalorder %v30, %v400
    %v402 = vsel %vm401, 1, 0
    %v403 = vcvt.s32.f32 %v402
    %v404 = vsel %vm45, %v392, -inf
    %405 = vmax.xlane.f32.xlu0 %v404
    %v406 = vpop.xlane.xlu0 %405
    %v407 = vsub.f32 %v392, %v406
    %v408 = vmul.f32 %v407, 1.442695
    %v409 = vpow.pop %v408
    %v410 = vsel %vm45, %v409, 0.0
    %411 = vadd.xlane.f32.xlu0 %v410
    %v412 = vpop.xlane.xlu0 %411
    %v413 = vlog2.pop %v412
    %v414 = vmul.f32 %v413, 0.6931472
    %v415 = vadd.f32 %v414, %v406
    %v416 = vmul.f32 %v392, %v403
    %v417 = vsel %vm45, %v416, 0.0
    %418 = vadd.xlane.f32.xlu0 %v417
    %v419 = vpop.xlane.xlu0 %418
    %vm420 = vcmp.lt.s32.totalorder %v398, 6
    %v421 = vsel %vm420, 1, 0
    %v422 = vcvt.s32.f32 %v421
    %v423 = vsub.f32 %v415, %v419
    %v424 = vmul.f32 %v423, %v422
    %v425 = vrot.slane %v424, 4
    %v426 = vadd.f32 %v424, %v425
    %v427 = vrot.slane %v426, 2
    %v428 = vadd.f32 %v426, %v427
    %v429 = vrot.slane %v428, 1
    %v430 = vadd.f32 %v428, %v429
    %v431 = vrcp.pop 6.0
    %v432 = vmul.f32 %v430, %v431
    %vm433 = vcmask 0
    %434 = vst.msk [vmem:[#allocation2] sm:$0x1] %vm433, %v432
    // Predicated region
    $region30: #{spmm_forward.9} parent=1 // pred_check
      _
    $region31: #{spmm_forward.9} parent=1 // pred_check_branch
      %436 = sbr.rel (0) target = $region33
    $region32: #{spmm_forward.9} parent=1 // pred_region
      %s438 = ssub.s32 16, 16
      %439 = vsyncadd [#allocation3], %s438
      %s441 = sshll.u32 [#allocation2], 4
      %s442 = int_to_ptr.vmem [resolvable:$true] %s441
      %444 = dma.vmem_to_hbm [thread:$0]  %s442, 16, %s7, [#allocation3]
    $region33: #{spmm_forward.9} parent=1 // pred_fallthru
      _
    // Predicated region
    $region34: #{spmm_forward.9} parent=1 // pred_check
      _
    $region35: #{spmm_forward.9} parent=1 // pred_check_branch
      %446 = sbr.rel (0) target = $region37
    $region36: #{spmm_forward.9} parent=1 // pred_region
      %447 = dma.done [#allocation3], 16
    $region37: #{spmm_forward.9} parent=1 // pred_fallthru
      _
    %448 = vsyncpa [#allocation3], 1

// kernel: spmm_forward.11
$region0: #{spmm_forward.11}
  #allocation0 [shape = 'u32[]', space=smem, size = 0x4, offset = 0x4, fixed_abs, tag = 'smem constant byte address 0x4 - core index']
  #allocation1 [shape = 'u32[144,128]{1,0:T(1,128)}', space=vmem, size = 0x12000, scoped, tag = 'internal scratch']
  #allocation2 [shape = 'f32[1,1]{1,0:T(1,128)S(1)}', space=vmem, size = 0x200, scoped, tag = 'scoped memory for spmm_forward.11']
  %s0 = inlined_call_operand.vmem [shape: bf16[24,32], index: 0, kind: input, shape index: {}]
  %s1 = inlined_call_operand.vmem [shape: bf16[2,32], index: 1, kind: input, shape index: {}]
  %s2 = inlined_call_operand.vmem [shape: bf16[32,32], index: 2, kind: input, shape index: {}]
  %s3 = inlined_call_operand.vmem [shape: bf16[32,32], index: 3, kind: input, shape index: {}]
  %s4 = inlined_call_operand.vmem [shape: f32[1,32], index: 4, kind: input, shape index: {}]
  %s5 = inlined_call_operand.vmem [shape: bf16[32,32], index: 5, kind: input, shape index: {}]
  %s6 = inlined_call_operand.vmem [shape: f32[1,32], index: 6, kind: input, shape index: {}]
  %s7 = inlined_call_operand.vmem [shape: f32[1,32], index: 7, kind: input, shape index: {}]
  %s8 = inlined_call_operand.vmem [shape: f32[1,32], index: 8, kind: input, shape index: {}]
  %s9 = inlined_call_operand.vmem [shape: f32[1,32], index: 9, kind: input, shape index: {}]
  %s10 = inlined_call_operand.<no memory space> [shape: f32[1,1], index: 10, kind: input, shape index: {}]
  %s11 = inlined_call_operand.vmem [shape: f32[24,1], index: 11, kind: input, shape index: {}]
  %s12 = inlined_call_operand.vmem [shape: f32[24,1], index: 12, kind: input, shape index: {}]
  %s13 = inlined_call_operand.hbm [shape: f32[1,1], index: 13, kind: output, shape index: {}]
  %s14 = sld [smem:[#allocation0]]
  $region62: #{spmm_forward.11} parent=0
    _
  %s16 = ssub.s32 1, %s14
  %s17 = scalar_select 0, %s16, %s14
  %v18 = vstv %s10
  %19 = vst [vmem:[#allocation2] sm:$0x1] %v18
  $region1: #{spmm_forward.11} parent=0
    #allocation3 [shape = 'u8[512]{0}', space=vmem, size = 0x400, scoped, tag = 'output window, operand 0, single buffered']
    #allocation4 [shape = 's32[1]{0}', space=sflag, size = 0x4, scoped, tag = 'scoped memory for spmm_forward.11']
    %20 = vsyncpa [#allocation4], 0
    // Predicated region
    $region2: #{spmm_forward.11} parent=1 // pred_check
      _
    $region3: #{spmm_forward.11} parent=1 // pred_check_branch
      %22 = sbr.rel (0) target = $region5
    $region4: #{spmm_forward.11} parent=1 // pred_region
      _
    $region5: #{spmm_forward.11} parent=1 // pred_fallthru
      _
    // Predicated region
    $region6: #{spmm_forward.11} parent=1 // pred_check
      _
    $region7: #{spmm_forward.11} parent=1 // pred_check_branch
      %24 = sbr.rel (0) target = $region9
    $region8: #{spmm_forward.11} parent=1 // pred_region
      _
    $region9: #{spmm_forward.11} parent=1 // pred_fallthru
      _
    // Predicated region
    $region10: #{spmm_forward.11} parent=1 // pred_check
      _
    $region11: #{spmm_forward.11} parent=1 // pred_check_branch
      %26 = sbr.rel (0) target = $region13
    $region12: #{spmm_forward.11} parent=1 // pred_region
      _
    $region13: #{spmm_forward.11} parent=1 // pred_fallthru
      _
    // Predicated region
    $region14: #{spmm_forward.11} parent=1 // pred_check
      _
    $region15: #{spmm_forward.11} parent=1 // pred_check_branch
      %28 = sbr.rel (0) target = $region17
    $region16: #{spmm_forward.11} parent=1 // pred_region
      _
    $region17: #{spmm_forward.11} parent=1 // pred_fallthru
      _
    // Predicated region
    $region18: #{spmm_forward.11} parent=1 // pred_check
      _
    $region19: #{spmm_forward.11} parent=1 // pred_check_branch
      %30 = sbr.rel (0) target = $region21
    $region20: #{spmm_forward.11} parent=1 // pred_region
      _
    $region21: #{spmm_forward.11} parent=1 // pred_fallthru
      _
    // Predicated region
    $region22: #{spmm_forward.11} parent=1 // pred_check
      _
    $region23: #{spmm_forward.11} parent=1 // pred_check_branch
      %32 = sbr.rel (0) target = $region25
    $region24: #{spmm_forward.11} parent=1 // pred_region
      _
    $region25: #{spmm_forward.11} parent=1 // pred_fallthru
      _
    // Predicated region
    $region26: #{spmm_forward.11} parent=1 // pred_check
      _
    $region27: #{spmm_forward.11} parent=1 // pred_check_branch
      %34 = sbr.rel (0) target = $region29
    $region28: #{spmm_forward.11} parent=1 // pred_region
      _
    $region29: #{spmm_forward.11} parent=1 // pred_fallthru
      _
    // Predicated region
    $region30: #{spmm_forward.11} parent=1 // pred_check
      _
    $region31: #{spmm_forward.11} parent=1 // pred_check_branch
      %36 = sbr.rel (0) target = $region33
    $region32: #{spmm_forward.11} parent=1 // pred_region
      _
    $region33: #{spmm_forward.11} parent=1 // pred_fallthru
      _
    // Predicated region
    $region34: #{spmm_forward.11} parent=1 // pred_check
      _
    $region35: #{spmm_forward.11} parent=1 // pred_check_branch
      %38 = sbr.rel (0) target = $region37
    $region36: #{spmm_forward.11} parent=1 // pred_region
      _
    $region37: #{spmm_forward.11} parent=1 // pred_fallthru
      _
    // Predicated region
    $region38: #{spmm_forward.11} parent=1 // pred_check
      _
    $region39: #{spmm_forward.11} parent=1 // pred_check_branch
      %40 = sbr.rel (0) target = $region41
    $region40: #{spmm_forward.11} parent=1 // pred_region
      _
    $region41: #{spmm_forward.11} parent=1 // pred_fallthru
      _
    // Predicated region
    $region42: #{spmm_forward.11} parent=1 // pred_check
      _
    $region43: #{spmm_forward.11} parent=1 // pred_check_branch
      %42 = sbr.rel (0) target = $region45
    $region44: #{spmm_forward.11} parent=1 // pred_region
      _
    $region45: #{spmm_forward.11} parent=1 // pred_fallthru
      _
    // Predicated region
    $region46: #{spmm_forward.11} parent=1 // pred_check
      _
    $region47: #{spmm_forward.11} parent=1 // pred_check_branch
      %44 = sbr.rel (0) target = $region49
    $region48: #{spmm_forward.11} parent=1 // pred_region
      _
    $region49: #{spmm_forward.11} parent=1 // pred_fallthru
      _
    // Predicated region
    $region50: #{spmm_forward.11} parent=1 // pred_check
      _
    $region51: #{spmm_forward.11} parent=1 // pred_check_branch
      %46 = sbr.rel (0) target = $region53
    $region52: #{spmm_forward.11} parent=1 // pred_region
      _
    $region53: #{spmm_forward.11} parent=1 // pred_fallthru
      _
    %v48 = vld [vmem:[%s1] sm:$0x1]
    %v49 = vld [vmem:[%s3] sm:$0xf]
    %v50 = vld [vmem:[%s3 + $0x4] sm:$0xf]
    %v51 = vld [vmem:[%s3 + $0x8] sm:$0xf]
    %v52 = vld [vmem:[%s3 + $0xc] sm:$0xf]
    %v57 = vunpack.c.l.b16 %v49
    %v58 = vunpack.c.l.b16 %v50
    %v59 = vunpack.c.l.b16 %v51
    %v60 = vunpack.c.l.b16 %v52
    %v61 = vpack.c.b16 %v58, %v57
    %v62 = vpack.c.b16 %v60, %v59
    %vm65 = vcmask 261120
    %v67 = vsel %vm65, %v48, 0
    %69 = vmatprep.subr.bf16.mxu0 0
    %70 = vmatpush1.bf16.msra.mxu0 0
    %71 = vmatprep.subr.bf16.mxu0 0
    %72 = vmatpush1.bf16.msra.mxu0 0
    %73 = vmatprep.subr.bf16.mxu0 0
    %74 = vmatpush1.bf16.msra.mxu0 0
    %75 = vmatprep.subr.bf16.mxu0 0
    %76 = vmatpush1.bf16.msra.mxu0 0
    %77 = vmatprep.subr.bf16.mxu0 0
    %78 = vmatpush1.bf16.msra.mxu0 0
    %79 = vmatprep.subr.bf16.mxu0 0
    %80 = vmatpush1.bf16.msra.mxu0 0
    %81 = vmatprep.subr.bf16.mxu0 0
    %82 = vmatpush1.bf16.msra.mxu0 %v62
    %83 = vmatprep.subr.bf16.mxu0 0
    %84 = vmatpush1.bf16.msra.mxu0 %v61
    %85 = vmatprep.subr.bf16.mxu0 0
    %86 = vmatpush2.bf16.msra.mxu0 0
    %87 = vmatprep.subr.bf16.mxu0 0
    %88 = vmatpush2.bf16.msra.mxu0 0
    %89 = vmatprep.subr.bf16.mxu0 0
    %90 = vmatpush2.bf16.msra.mxu0 0
    %91 = vmatprep.subr.bf16.mxu0 0
    %92 = vmatpush2.bf16.msra.mxu0 0
    %93 = vmatprep.subr.bf16.mxu0 0
    %94 = vmatpush2.bf16.msra.mxu0 0
    %95 = vmatprep.subr.bf16.mxu0 0
    %96 = vmatpush2.bf16.msra.mxu0 0
    %97 = vmatprep.subr.bf16.mxu0 0
    %98 = vmatpush2.bf16.msra.mxu0 0
    %99 = vmatprep.subr.bf16.mxu0 0
    %100 = vmatpush2.bf16.msra.mxu0 0
    %101 = vmatprep.mubr.bf16.mxu0 0
    %102 = vmatmul.mubr.bf16.gmra.mxu0 %v67
    %v103 = vpop.f32.mrf.mxu0
    %v104 = vadd.f32 0.0, %v103
    %v105 = vpop.f32.mrf.mxu0
    %v106 = vpop.f32.mrf.mxu0
    %v107 = vpop.f32.mrf.mxu0
    %108 = vdwg.mxu0
    %v109 = vlaneseq
    %v110 = vshrl.u32 %v109, 7
    %v111 = vadd.s32 %v110, 8
    %v112 = vadd.s32 %v110, 16
    %v113 = vlaneseq
    %v114 = vand.u32 %v113, 127
    %v115 = vmul.u32 %v114, 12
    %vm116 = vcmp.ge.s32.totalorder %v110, %v115
    %vm117 = vcmp.ge.s32.totalorder %v111, %v115
    %vm118 = vcmp.ge.s32.totalorder %v112, %v115
    %v119 = vadd.s32 %v114, 1
    %v120 = vmul.u32 %v119, 12
    %vm121 = vcmp.lt.s32.totalorder %v110, %v120
    %vm122 = vcmp.lt.s32.totalorder %v111, %v120
    %vm123 = vcmp.lt.s32.totalorder %v112, %v120
    %vm124 = vmand %vm116, %vm121
    %vm125 = vmand %vm117, %vm122
    %vm126 = vmand %vm118, %vm123
    %v127 = vsel %vm124, 1, 0
    %v128 = vsel %vm125, 1, 0
    %v129 = vsel %vm126, 1, 0
    %v130 = vcvt.s32.f32 %v127
    %v131 = vcvt.s32.f32 %v128
    %v132 = vcvt.s32.f32 %v129
    %vm133 = vcmask 15360
    %v135 = vsel %vm133, %v130, 0
    %v138 = vsel %vm133, %v131, 0
    %v141 = vsel %vm133, %v132, 0
    %vm143 = vcmask 1041408
    %v145 = vsel %vm143, %v104, 0
    %147 = vmatprep.subr.mxu0 0.0
    %148 = vmatpush1.msra.mxu0 0.0
    %149 = vmatprep.subr.mxu0 0.0
    %150 = vmatpush1.msra.mxu0 0.0
    %151 = vmatprep.subr.mxu0 0.0
    %152 = vmatpush1.msra.mxu0 0.0
    %153 = vmatprep.subr.mxu0 0.0
    %154 = vmatpush1.msra.mxu0 0.0
    %155 = vmatprep.subr.mxu0 0.0
    %156 = vmatpush1.msra.mxu0 0.0
    %157 = vmatprep.subr.mxu0 0.0
    %158 = vmatpush1.msra.mxu0 0.0
    %159 = vmatprep.subr.mxu0 0.0
    %160 = vmatpush1.msra.mxu0 0.0
    %161 = vmatprep.subr.mxu0 0.0
    %162 = vmatpush1.msra.mxu0 0.0
    %163 = vmatprep.subr.mxu0 0.0
    %164 = vmatpush1.msra.mxu0 0.0
    %165 = vmatprep.subr.mxu0 0.0
    %166 = vmatpush1.msra.mxu0 0.0
    %167 = vmatprep.subr.mxu0 0.0
    %168 = vmatpush1.msra.mxu0 0.0
    %169 = vmatprep.subr.mxu0 0.0
    %170 = vmatpush1.msra.mxu0 0.0
    %171 = vmatprep.subr.mxu0 0.0
    %172 = vmatpush1.msra.mxu0 0.0
    %173 = vmatprep.subr.mxu0 0.0
    %174 = vmatpush1.msra.mxu0 0.0
    %175 = vmatprep.subr.mxu0 0.0
    %176 = vmatpush1.msra.mxu0 0.0
    %177 = vmatprep.subr.mxu0 0.0
    %178 = vmatpush1.msra.mxu0 %v145
    %179 = vmatprep.subr.mxu0 0.0
    %180 = vmatpush2.msra.mxu0 0.0
    %181 = vmatprep.subr.mxu0 0.0
    %182 = vmatpush2.msra.mxu0 0.0
    %183 = vmatprep.subr.mxu0 0.0
    %184 = vmatpush2.msra.mxu0 0.0
    %185 = vmatprep.subr.mxu0 0.0
    %186 = vmatpush2.msra.mxu0 0.0
    %187 = vmatprep.subr.mxu0 0.0
    %188 = vmatpush2.msra.mxu0 0.0
    %189 = vmatprep.subr.mxu0 0.0
    %190 = vmatpush2.msra.mxu0 0.0
    %191 = vmatprep.subr.mxu0 0.0
    %192 = vmatpush2.msra.mxu0 0.0
    %193 = vmatprep.subr.mxu0 0.0
    %194 = vmatpush2.msra.mxu0 0.0
    %195 = vmatprep.subr.mxu0 0.0
    %196 = vmatpush2.msra.mxu0 0.0
    %197 = vmatprep.subr.mxu0 0.0
    %198 = vmatpush2.msra.mxu0 0.0
    %199 = vmatprep.subr.mxu0 0.0
    %200 = vmatpush2.msra.mxu0 0.0
    %201 = vmatprep.subr.mxu0 0.0
    %202 = vmatpush2.msra.mxu0 0.0
    %203 = vmatprep.subr.mxu0 0.0
    %204 = vmatpush2.msra.mxu0 0.0
    %205 = vmatprep.subr.mxu0 0.0
    %206 = vmatpush2.msra.mxu0 0.0
    %207 = vmatprep.subr.mxu0 0.0
    %208 = vmatpush2.msra.mxu0 0.0
    %209 = vmatprep.subr.mxu0 0.0
    %210 = vmatpush2.msra.mxu0 0.0
    %211 = vmatprep.mubr.f32.mxu0 0.0
    %212 = vmatmul.mubr.f32.gmra.mxu0 %v135
    %v213 = vpop.f32.mrf.mxu0
    %v214 = vadd.f32 0.0, %v213
    %v215 = vpop.f32.mrf.mxu0
    %216 = vmatprep.mubr.f32.mxu0 0.0
    %217 = vmatmul.mubr.f32.gmra.mxu0 %v138
    %v218 = vpop.f32.mrf.mxu0
    %v219 = vadd.f32 0.0, %v218
    %v220 = vpop.f32.mrf.mxu0
    %221 = vmatprep.mubr.f32.mxu0 0.0
    %222 = vmatmul.mubr.f32.gmra.mxu0 %v141
    %v223 = vpop.f32.mrf.mxu0
    %v224 = vadd.f32 0.0, %v223
    %v225 = vpop.f32.mrf.mxu0
    %226 = vdwg.mxu0
    %v227 = vld [vmem:[%s0] sm:$0xf]
    %v228 = vld [vmem:[%s0 + $0x4] sm:$0xf]
    %v229 = vld [vmem:[%s0 + $0x8] sm:$0xf]
    %v230 = vld [vmem:[%s2] sm:$0xf]
    %v231 = vld [vmem:[%s2 + $0x4] sm:$0xf]
    %v232 = vld [vmem:[%s2 + $0x8] sm:$0xf]
    %v233 = vld [vmem:[%s2 + $0xc] sm:$0xf]
    %v237 = vunpack.c.l.b16 %v227
    %v238 = vunpack.c.l.b16 %v228
    %v239 = vunpack.c.l.b16 %v229
    %v240 = vpack.c.b16 %v238, %v237
    %v241 = vpack.c.b16 %v239, %v239
    %v246 = vunpack.c.l.b16 %v230
    %v247 = vunpack.c.l.b16 %v231
    %v248 = vunpack.c.l.b16 %v232
    %v249 = vunpack.c.l.b16 %v233
    %v250 = vpack.c.b16 %v247, %v246
    %v251 = vpack.c.b16 %v249, %v248
    %v255 = vsel %vm65, %v240, 0
    %v258 = vsel %vm65, %v241, 0
    %260 = vmatprep.subr.bf16.mxu0 0
    %261 = vmatpush1.bf16.msra.mxu0 0
    %262 = vmatprep.subr.bf16.mxu0 0
    %263 = vmatpush1.bf16.msra.mxu0 0
    %264 = vmatprep.subr.bf16.mxu0 0
    %265 = vmatpush1.bf16.msra.mxu0 0
    %266 = vmatprep.subr.bf16.mxu0 0
    %267 = vmatpush1.bf16.msra.mxu0 0
    %268 = vmatprep.subr.bf16.mxu0 0
    %269 = vmatpush1.bf16.msra.mxu0 0
    %270 = vmatprep.subr.bf16.mxu0 0
    %271 = vmatpush1.bf16.msra.mxu0 0
    %272 = vmatprep.subr.bf16.mxu0 0
    %273 = vmatpush1.bf16.msra.mxu0 %v251
    %274 = vmatprep.subr.bf16.mxu0 0
    %275 = vmatpush1.bf16.msra.mxu0 %v250
    %276 = vmatprep.subr.bf16.mxu0 0
    %277 = vmatpush2.bf16.msra.mxu0 0
    %278 = vmatprep.subr.bf16.mxu0 0
    %279 = vmatpush2.bf16.msra.mxu0 0
    %280 = vmatprep.subr.bf16.mxu0 0
    %281 = vmatpush2.bf16.msra.mxu0 0
    %282 = vmatprep.subr.bf16.mxu0 0
    %283 = vmatpush2.bf16.msra.mxu0 0
    %284 = vmatprep.subr.bf16.mxu0 0
    %285 = vmatpush2.bf16.msra.mxu0 0
    %286 = vmatprep.subr.bf16.mxu0 0
    %287 = vmatpush2.bf16.msra.mxu0 0
    %288 = vmatprep.subr.bf16.mxu0 0
    %289 = vmatpush2.bf16.msra.mxu0 0
    %290 = vmatprep.subr.bf16.mxu0 0
    %291 = vmatpush2.bf16.msra.mxu0 0
    %292 = vmatprep.mubr.bf16.mxu0 0
    %293 = vmatmul.mubr.bf16.gmra.mxu0 %v255
    %v294 = vpop.f32.mrf.mxu0
    %v295 = vadd.f32 %v214, %v294
    %v296 = vpop.f32.mrf.mxu0
    %v297 = vpop.f32.mrf.mxu0
    %v298 = vadd.f32 %v219, %v297
    %v299 = vpop.f32.mrf.mxu0
    %300 = vmatprep.mubr.bf16.mxu0 0
    %301 = vmatmul.mubr.bf16.gmra.mxu0 %v258
    %v302 = vpop.f32.mrf.mxu0
    %v303 = vadd.f32 %v224, %v302
    %v304 = vpop.f32.mrf.mxu0
    %v305 = vpop.f32.mrf.mxu0
    %v306 = vpop.f32.mrf.mxu0
    %307 = vdwg.mxu0
    %v308 = vld [vmem:[%s4] sm:$0x1]
    %v310 = vlaneseq
    %v311 = vshrl.u32 %v310, 7
    %v312 = vsub.s32 0, %v311
    %v313 = vrot.slane %v308, %v312
    %v315 = vadd.f32 %v295, %v313
    %v316 = vadd.f32 %v298, %v313
    %v317 = vadd.f32 %v303, %v313
    %v318 = vtanh.pop %v315
    %v319 = vtanh.pop %v316
    %v320 = vtanh.pop %v317
    %v321 = vpack.c.bf16 %v319, %v318
    %v322 = vpack.c.bf16 %v320, %v320
    %v323 = vld [vmem:[%s5] sm:$0xf]
    %v324 = vld [vmem:[%s5 + $0x4] sm:$0xf]
    %v325 = vld [vmem:[%s5 + $0x8] sm:$0xf]
    %v326 = vld [vmem:[%s5 + $0xc] sm:$0xf]
    %v327 = vld [vmem:[%s6] sm:$0x1]
    %v329 = vlaneseq
    %v330 = vshrl.u32 %v329, 7
    %v331 = vsub.s32 0, %v330
    %v332 = vrot.slane %v327, %v331
    %v338 = vunpack.c.l.b16 %v323
    %v339 = vunpack.c.l.b16 %v324
    %v340 = vunpack.c.l.b16 %v325
    %v341 = vunpack.c.l.b16 %v326
    %v342 = vpack.c.b16 %v339, %v338
    %v343 = vpack.c.b16 %v341, %v340
    %v347 = vsel %vm65, %v321, 0
    %v350 = vsel %vm65, %v322, 0
    %352 = vmatprep.subr.bf16.mxu0 0
    %353 = vmatpush1.bf16.msra.mxu0 0
    %354 = vmatprep.subr.bf16.mxu0 0
    %355 = vmatpush1.bf16.msra.mxu0 0
    %356 = vmatprep.subr.bf16.mxu0 0
    %357 = vmatpush1.bf16.msra.mxu0 0
    %358 = vmatprep.subr.bf16.mxu0 0
    %359 = vmatpush1.bf16.msra.mxu0 0
    %360 = vmatprep.subr.bf16.mxu0 0
    %361 = vmatpush1.bf16.msra.mxu0 0
    %362 = vmatprep.subr.bf16.mxu0 0
    %363 = vmatpush1.bf16.msra.mxu0 0
    %364 = vmatprep.subr.bf16.mxu0 0
    %365 = vmatpush1.bf16.msra.mxu0 %v343
    %366 = vmatprep.subr.bf16.mxu0 0
    %367 = vmatpush1.bf16.msra.mxu0 %v342
    %368 = vmatprep.subr.bf16.mxu0 0
    %369 = vmatpush2.bf16.msra.mxu0 0
    %370 = vmatprep.subr.bf16.mxu0 0
    %371 = vmatpush2.bf16.msra.mxu0 0
    %372 = vmatprep.subr.bf16.mxu0 0
    %373 = vmatpush2.bf16.msra.mxu0 0
    %374 = vmatprep.subr.bf16.mxu0 0
    %375 = vmatpush2.bf16.msra.mxu0 0
    %376 = vmatprep.subr.bf16.mxu0 0
    %377 = vmatpush2.bf16.msra.mxu0 0
    %378 = vmatprep.subr.bf16.mxu0 0
    %379 = vmatpush2.bf16.msra.mxu0 0
    %380 = vmatprep.subr.bf16.mxu0 0
    %381 = vmatpush2.bf16.msra.mxu0 0
    %382 = vmatprep.subr.bf16.mxu0 0
    %383 = vmatpush2.bf16.msra.mxu0 0
    %384 = vmatprep.mubr.bf16.mxu0 0
    %385 = vmatmul.mubr.bf16.gmra.mxu0 %v347
    %v386 = vpop.f32.mrf.mxu0
    %v387 = vadd.f32 %v332, %v386
    %v388 = vpop.f32.mrf.mxu0
    %v389 = vpop.f32.mrf.mxu0
    %v390 = vadd.f32 %v332, %v389
    %v391 = vpop.f32.mrf.mxu0
    %392 = vmatprep.mubr.bf16.mxu0 0
    %393 = vmatmul.mubr.bf16.gmra.mxu0 %v350
    %v394 = vpop.f32.mrf.mxu0
    %v395 = vadd.f32 %v332, %v394
    %v396 = vpop.f32.mrf.mxu0
    %v397 = vpop.f32.mrf.mxu0
    %v398 = vpop.f32.mrf.mxu0
    %399 = vdwg.mxu0
    %v400 = vmul.f32 %v387, 0.5
    %v401 = vmul.f32 %v390, 0.5
    %v402 = vmul.f32 %v395, 0.5
    %v403 = vmul.f32 %v387, 0.70710677
    %v404 = vmul.f32 %v390, 0.70710677
    %v405 = vmul.f32 %v395, 0.70710677
    %v406 = verf.f32.pop %v403
    %v407 = verf.f32.pop %v404
    %v408 = verf.f32.pop %v405
    %v409 = vadd.f32 %v406, 1.0
    %v410 = vadd.f32 %v407, 1.0
    %v411 = vadd.f32 %v408, 1.0
    %v412 = vmul.f32 %v400, %v409
    %v413 = vmul.f32 %v401, %v410
    %v414 = vmul.f32 %v402, %v411
    %v415 = vsel %vm65, %v412, 0.0
    %416 = vadd.xlane.f32.xlu0 %v415
    %v417 = vpop.xlane.xlu0 %416
    %v418 = vsel %vm65, %v413, 0.0
    %419 = vadd.xlane.f32.xlu0 %v418
    %v420 = vpop.xlane.xlu0 %419
    %v421 = vsel %vm65, %v414, 0.0
    %422 = vadd.xlane.f32.xlu0 %v421
    %v423 = vpop.xlane.xlu0 %422
    %v424 = vrcp.pop 32.0
    %v425 = vmul.f32 %v417, %v424
    %v426 = vmul.f32 %v420, %v424
    %v427 = vmul.f32 %v423, %v424
    %v428 = vsub.f32 %v412, %v425
    %v429 = vsub.f32 %v413, %v426
    %v430 = vsub.f32 %v414, %v427
    %v431 = vmul.f32 %v428, %v428
    %v432 = vmul.f32 %v429, %v429
    %v433 = vmul.f32 %v430, %v430
    %v434 = vsel %vm65, %v431, 0.0
    %435 = vadd.xlane.f32.xlu0 %v434
    %v436 = vpop.xlane.xlu0 %435
    %v437 = vsel %vm65, %v432, 0.0
    %438 = vadd.xlane.f32.xlu0 %v437
    %v439 = vpop.xlane.xlu0 %438
    %v440 = vsel %vm65, %v433, 0.0
    %441 = vadd.xlane.f32.xlu0 %v440
    %v442 = vpop.xlane.xlu0 %441
    %v443 = vmul.f32 %v436, %v424
    %v444 = vmul.f32 %v439, %v424
    %v445 = vmul.f32 %v442, %v424
    %v446 = vadd.f32 %v443, 1e-12
    %v447 = vadd.f32 %v444, 1e-12
    %v448 = vadd.f32 %v445, 1e-12
    %v449 = vrsqrt.pop %v446
    %v450 = vrsqrt.pop %v447
    %v451 = vrsqrt.pop %v448
    %v452 = vmul.f32 %v428, %v449
    %v453 = vmul.f32 %v429, %v450
    %v454 = vmul.f32 %v430, %v451
    %v455 = vld [vmem:[%s7] sm:$0x1]
    %v457 = vlaneseq
    %v458 = vshrl.u32 %v457, 7
    %v459 = vsub.s32 0, %v458
    %v460 = vrot.slane %v455, %v459
    %v462 = vmul.f32 %v452, %v460
    %v463 = vmul.f32 %v453, %v460
    %v464 = vmul.f32 %v454, %v460
    %v465 = vld [vmem:[%s8] sm:$0x1]
    %v467 = vlaneseq
    %v468 = vshrl.u32 %v467, 7
    %v469 = vsub.s32 0, %v468
    %v470 = vrot.slane %v465, %v469
    %v472 = vadd.f32 %v462, %v470
    %v473 = vadd.f32 %v463, %v470
    %v474 = vadd.f32 %v464, %v470
    %v475 = vld [vmem:[%s9] sm:$0x1]
    %v477 = vlaneseq
    %v478 = vshrl.u32 %v477, 7
    %v479 = vsub.s32 0, %v478
    %v480 = vrot.slane %v475, %v479
    %v482 = vmul.f32 %v472, %v480
    %v483 = vmul.f32 %v473, %v480
    %v484 = vmul.f32 %v474, %v480
    %v485 = vsel %vm65, %v482, 0.0
    %486 = vadd.xlane.f32.xlu0 %v485
    %v487 = vpop.xlane.xlu0 %486
    %v488 = vsel %vm65, %v483, 0.0
    %489 = vadd.xlane.f32.xlu0 %v488
    %v490 = vpop.xlane.xlu0 %489
    %v491 = vsel %vm65, %v484, 0.0
    %492 = vadd.xlane.f32.xlu0 %v491
    %v493 = vpop.xlane.xlu0 %492
    %v494 = vld [vmem:[#allocation2] sm:$0x1]
    %v496 = vlaneseq
    %v497 = vshrl.u32 %v496, 7
    %v498 = vsub.s32 0, %v497
    %v499 = vrot.slane %v494, %v498
    %v501 = vadd.f32 %v487, %v499
    %v502 = vadd.f32 %v490, %v499
    %v503 = vadd.f32 %v493, %v499
    %v504 = vld [vmem:[%s12] sm:$0xff]
    %v505 = vld [vmem:[%s12 + $0x8] sm:$0xff]
    %v506 = vld [vmem:[%s12 + $0x10] sm:$0xff]
    %v507 = vld [vmem:[%s11] sm:$0xff]
    %v508 = vld [vmem:[%s11 + $0x8] sm:$0xff]
    %v509 = vld [vmem:[%s11 + $0x10] sm:$0xff]
    %v510 = vsub.f32 %v501, %v507
    %v511 = vsub.f32 %v502, %v508
    %v512 = vsub.f32 %v503, %v509
    %v513 = vmul.f32 %v510, %v510
    %v514 = vmul.f32 %v511, %v511
    %v515 = vmul.f32 %v512, %v512
    %v516 = vmul.f32 %v513, %v504
    %v517 = vmul.f32 %v514, %v505
    %v518 = vmul.f32 %v515, %v506
    %vm519 = vcmask 7168
    %v520 = vsel %vm519, %v516, 0.0
    %v521 = vsel %vm519, %v517, 0.0
    %v522 = vadd.f32 %v520, %v521
    %v523 = vsel %vm519, %v518, 0.0
    %v524 = vadd.f32 %v522, %v523
    %v525 = vrot.slane %v524, 4
    %v526 = vadd.f32 %v524, %v525
    %v527 = vrot.slane %v526, 2
    %v528 = vadd.f32 %v526, %v527
    %v529 = vrot.slane %v528, 1
    %v530 = vadd.f32 %v528, %v529
    %v531 = vsel %vm519, %v504, 0.0
    %v532 = vsel %vm519, %v505, 0.0
    %v533 = vadd.f32 %v531, %v532
    %v534 = vsel %vm519, %v506, 0.0
    %v535 = vadd.f32 %v533, %v534
    %v536 = vrot.slane %v535, 4
    %v537 = vadd.f32 %v535, %v536
    %v538 = vrot.slane %v537, 2
    %v539 = vadd.f32 %v537, %v538
    %v540 = vrot.slane %v539, 1
    %v541 = vadd.f32 %v539, %v540
    %v542 = vmax.f32 %v541, 1.0
    %v543 = vrcp.pop %v542
    %v544 = vmul.f32 %v530, %v543
    %vm545 = vcmask 0
    %546 = vst.msk [vmem:[#allocation3] sm:$0x1] %vm545, %v544
    // Predicated region
    $region54: #{spmm_forward.11} parent=1 // pred_check
      _
    $region55: #{spmm_forward.11} parent=1 // pred_check_branch
      %548 = sbr.rel (0) target = $region57
    $region56: #{spmm_forward.11} parent=1 // pred_region
      %s550 = ssub.s32 16, 16
      %551 = vsyncadd [#allocation4], %s550
      %s553 = sshll.u32 [#allocation3], 4
      %s554 = int_to_ptr.vmem [resolvable:$true] %s553
      %556 = dma.vmem_to_hbm [thread:$0]  %s554, 16, %s13, [#allocation4]
    $region57: #{spmm_forward.11} parent=1 // pred_fallthru
      _
    // Predicated region
    $region58: #{spmm_forward.11} parent=1 // pred_check
      _
    $region59: #{spmm_forward.11} parent=1 // pred_check_branch
      %558 = sbr.rel (0) target = $region61
    $region60: #{spmm_forward.11} parent=1 // pred_region
      %559 = dma.done [#allocation4], 16
    $region61: #{spmm_forward.11} parent=1 // pred_fallthru
      _
    %560 = vsyncpa [#allocation4], 1

// kernel: spmm_forward.10
$region0: #{spmm_forward.10}
  #allocation0 [shape = 'u32[]', space=smem, size = 0x4, offset = 0x4, fixed_abs, tag = 'smem constant byte address 0x4 - core index']
  #allocation1 [shape = 'u32[144,128]{1,0:T(1,128)}', space=vmem, size = 0x12000, scoped, tag = 'internal scratch']
  #allocation2 [shape = 'f32[1,1]{1,0:T(1,128)S(6)}', space=smem, size = 0x200, scoped, tag = 'scoped memory for spmm_forward.10']
  %s0 = inlined_call_operand.vmem [shape: bf16[16,32], index: 0, kind: input, shape index: {}]
  %s1 = inlined_call_operand.vmem [shape: bf16[2,32], index: 1, kind: input, shape index: {}]
  %s2 = inlined_call_operand.vmem [shape: bf16[32,32], index: 2, kind: input, shape index: {}]
  %s3 = inlined_call_operand.vmem [shape: bf16[32,32], index: 3, kind: input, shape index: {}]
  %s4 = inlined_call_operand.vmem [shape: f32[1,32], index: 4, kind: input, shape index: {}]
  %s5 = inlined_call_operand.vmem [shape: bf16[32,64], index: 5, kind: input, shape index: {}]
  %s6 = inlined_call_operand.vmem [shape: f32[1,64], index: 6, kind: input, shape index: {}]
  %s7 = inlined_call_operand.vmem [shape: s32[16,1], index: 7, kind: input, shape index: {}]
  %s8 = inlined_call_operand.vmem [shape: f32[16,1], index: 8, kind: input, shape index: {}]
  %s9 = inlined_call_operand.<no memory space> [shape: f32[1,1], index: 9, kind: input, shape index: {}]
  %s10 = inlined_call_operand.hbm [shape: f32[1,1], index: 10, kind: output, shape index: {}]
  %s11 = sld [smem:[#allocation0]]
  $region50: #{spmm_forward.10} parent=0
    _
  %s13 = ssub.s32 1, %s11
  %s14 = scalar_select 0, %s13, %s11
  %15 = sst [smem:[#allocation2]] %s9
  $region1: #{spmm_forward.10} parent=0
    #allocation3 [shape = 'u8[512]{0}', space=vmem, size = 0x400, scoped, tag = 'output window, operand 0, single buffered']
    #allocation4 [shape = 's32[1]{0}', space=sflag, size = 0x4, scoped, tag = 'scoped memory for spmm_forward.10']
    %16 = vsyncpa [#allocation4], 0
    // Predicated region
    $region2: #{spmm_forward.10} parent=1 // pred_check
      _
    $region3: #{spmm_forward.10} parent=1 // pred_check_branch
      %18 = sbr.rel (0) target = $region5
    $region4: #{spmm_forward.10} parent=1 // pred_region
      _
    $region5: #{spmm_forward.10} parent=1 // pred_fallthru
      _
    // Predicated region
    $region6: #{spmm_forward.10} parent=1 // pred_check
      _
    $region7: #{spmm_forward.10} parent=1 // pred_check_branch
      %20 = sbr.rel (0) target = $region9
    $region8: #{spmm_forward.10} parent=1 // pred_region
      _
    $region9: #{spmm_forward.10} parent=1 // pred_fallthru
      _
    // Predicated region
    $region10: #{spmm_forward.10} parent=1 // pred_check
      _
    $region11: #{spmm_forward.10} parent=1 // pred_check_branch
      %22 = sbr.rel (0) target = $region13
    $region12: #{spmm_forward.10} parent=1 // pred_region
      _
    $region13: #{spmm_forward.10} parent=1 // pred_fallthru
      _
    // Predicated region
    $region14: #{spmm_forward.10} parent=1 // pred_check
      _
    $region15: #{spmm_forward.10} parent=1 // pred_check_branch
      %24 = sbr.rel (0) target = $region17
    $region16: #{spmm_forward.10} parent=1 // pred_region
      _
    $region17: #{spmm_forward.10} parent=1 // pred_fallthru
      _
    // Predicated region
    $region18: #{spmm_forward.10} parent=1 // pred_check
      _
    $region19: #{spmm_forward.10} parent=1 // pred_check_branch
      %26 = sbr.rel (0) target = $region21
    $region20: #{spmm_forward.10} parent=1 // pred_region
      _
    $region21: #{spmm_forward.10} parent=1 // pred_fallthru
      _
    // Predicated region
    $region22: #{spmm_forward.10} parent=1 // pred_check
      _
    $region23: #{spmm_forward.10} parent=1 // pred_check_branch
      %28 = sbr.rel (0) target = $region25
    $region24: #{spmm_forward.10} parent=1 // pred_region
      _
    $region25: #{spmm_forward.10} parent=1 // pred_fallthru
      _
    // Predicated region
    $region26: #{spmm_forward.10} parent=1 // pred_check
      _
    $region27: #{spmm_forward.10} parent=1 // pred_check_branch
      %30 = sbr.rel (0) target = $region29
    $region28: #{spmm_forward.10} parent=1 // pred_region
      _
    $region29: #{spmm_forward.10} parent=1 // pred_fallthru
      _
    // Predicated region
    $region30: #{spmm_forward.10} parent=1 // pred_check
      _
    $region31: #{spmm_forward.10} parent=1 // pred_check_branch
      %32 = sbr.rel (0) target = $region33
    $region32: #{spmm_forward.10} parent=1 // pred_region
      _
    $region33: #{spmm_forward.10} parent=1 // pred_fallthru
      _
    // Predicated region
    $region34: #{spmm_forward.10} parent=1 // pred_check
      _
    $region35: #{spmm_forward.10} parent=1 // pred_check_branch
      %34 = sbr.rel (0) target = $region37
    $region36: #{spmm_forward.10} parent=1 // pred_region
      _
    $region37: #{spmm_forward.10} parent=1 // pred_fallthru
      _
    // Predicated region
    $region38: #{spmm_forward.10} parent=1 // pred_check
      _
    $region39: #{spmm_forward.10} parent=1 // pred_check_branch
      %36 = sbr.rel (0) target = $region41
    $region40: #{spmm_forward.10} parent=1 // pred_region
      _
    $region41: #{spmm_forward.10} parent=1 // pred_fallthru
      _
    %v38 = vld [vmem:[%s1] sm:$0x1]
    %v39 = vld [vmem:[%s3] sm:$0xf]
    %v40 = vld [vmem:[%s3 + $0x4] sm:$0xf]
    %v41 = vld [vmem:[%s3 + $0x8] sm:$0xf]
    %v42 = vld [vmem:[%s3 + $0xc] sm:$0xf]
    %v47 = vunpack.c.l.b16 %v39
    %v48 = vunpack.c.l.b16 %v40
    %v49 = vunpack.c.l.b16 %v41
    %v50 = vunpack.c.l.b16 %v42
    %v51 = vpack.c.b16 %v48, %v47
    %v52 = vpack.c.b16 %v50, %v49
    %vm55 = vcmask 261120
    %v57 = vsel %vm55, %v38, 0
    %59 = vmatprep.subr.bf16.mxu0 0
    %60 = vmatpush1.bf16.msra.mxu0 0
    %61 = vmatprep.subr.bf16.mxu0 0
    %62 = vmatpush1.bf16.msra.mxu0 0
    %63 = vmatprep.subr.bf16.mxu0 0
    %64 = vmatpush1.bf16.msra.mxu0 0
    %65 = vmatprep.subr.bf16.mxu0 0
    %66 = vmatpush1.bf16.msra.mxu0 0
    %67 = vmatprep.subr.bf16.mxu0 0
    %68 = vmatpush1.bf16.msra.mxu0 0
    %69 = vmatprep.subr.bf16.mxu0 0
    %70 = vmatpush1.bf16.msra.mxu0 0
    %71 = vmatprep.subr.bf16.mxu0 0
    %72 = vmatpush1.bf16.msra.mxu0 %v52
    %73 = vmatprep.subr.bf16.mxu0 0
    %74 = vmatpush1.bf16.msra.mxu0 %v51
    %75 = vmatprep.subr.bf16.mxu0 0
    %76 = vmatpush2.bf16.msra.mxu0 0
    %77 = vmatprep.subr.bf16.mxu0 0
    %78 = vmatpush2.bf16.msra.mxu0 0
    %79 = vmatprep.subr.bf16.mxu0 0
    %80 = vmatpush2.bf16.msra.mxu0 0
    %81 = vmatprep.subr.bf16.mxu0 0
    %82 = vmatpush2.bf16.msra.mxu0 0
    %83 = vmatprep.subr.bf16.mxu0 0
    %84 = vmatpush2.bf16.msra.mxu0 0
    %85 = vmatprep.subr.bf16.mxu0 0
    %86 = vmatpush2.bf16.msra.mxu0 0
    %87 = vmatprep.subr.bf16.mxu0 0
    %88 = vmatpush2.bf16.msra.mxu0 0
    %89 = vmatprep.subr.bf16.mxu0 0
    %90 = vmatpush2.bf16.msra.mxu0 0
    %91 = vmatprep.mubr.bf16.mxu0 0
    %92 = vmatmul.mubr.bf16.gmra.mxu0 %v57
    %v93 = vpop.f32.mrf.mxu0
    %v94 = vadd.f32 0.0, %v93
    %v95 = vpop.f32.mrf.mxu0
    %v96 = vpop.f32.mrf.mxu0
    %v97 = vpop.f32.mrf.mxu0
    %98 = vdwg.mxu0
    %v99 = vlaneseq
    %v100 = vshrl.u32 %v99, 7
    %v101 = vadd.s32 %v100, 8
    %v102 = vlaneseq
    %v103 = vand.u32 %v102, 127
    %v104 = vmul.u32 %v103, 8
    %vm105 = vcmp.ge.s32.totalorder %v100, %v104
    %vm106 = vcmp.ge.s32.totalorder %v101, %v104
    %v107 = vadd.s32 %v103, 1
    %v108 = vmul.u32 %v107, 8
    %vm109 = vcmp.lt.s32.totalorder %v100, %v108
    %vm110 = vcmp.lt.s32.totalorder %v101, %v108
    %vm111 = vmand %vm105, %vm109
    %vm112 = vmand %vm106, %vm110
    %v113 = vsel %vm111, 1, 0
    %v114 = vsel %vm112, 1, 0
    %v115 = vcvt.s32.f32 %v113
    %v116 = vcvt.s32.f32 %v114
    %vm117 = vcmask 15360
    %v119 = vsel %vm117, %v115, 0
    %v122 = vsel %vm117, %v116, 0
    %vm124 = vcmask 1041408
    %v126 = vsel %vm124, %v94, 0
    %128 = vmatprep.subr.mxu0 0.0
    %129 = vmatpush1.msra.mxu0 0.0
    %130 = vmatprep.subr.mxu0 0.0
    %131 = vmatpush1.msra.mxu0 0.0
    %132 = vmatprep.subr.mxu0 0.0
    %133 = vmatpush1.msra.mxu0 0.0
    %134 = vmatprep.subr.mxu0 0.0
    %135 = vmatpush1.msra.mxu0 0.0
    %136 = vmatprep.subr.mxu0 0.0
    %137 = vmatpush1.msra.mxu0 0.0
    %138 = vmatprep.subr.mxu0 0.0
    %139 = vmatpush1.msra.mxu0 0.0
    %140 = vmatprep.subr.mxu0 0.0
    %141 = vmatpush1.msra.mxu0 0.0
    %142 = vmatprep.subr.mxu0 0.0
    %143 = vmatpush1.msra.mxu0 0.0
    %144 = vmatprep.subr.mxu0 0.0
    %145 = vmatpush1.msra.mxu0 0.0
    %146 = vmatprep.subr.mxu0 0.0
    %147 = vmatpush1.msra.mxu0 0.0
    %148 = vmatprep.subr.mxu0 0.0
    %149 = vmatpush1.msra.mxu0 0.0
    %150 = vmatprep.subr.mxu0 0.0
    %151 = vmatpush1.msra.mxu0 0.0
    %152 = vmatprep.subr.mxu0 0.0
    %153 = vmatpush1.msra.mxu0 0.0
    %154 = vmatprep.subr.mxu0 0.0
    %155 = vmatpush1.msra.mxu0 0.0
    %156 = vmatprep.subr.mxu0 0.0
    %157 = vmatpush1.msra.mxu0 0.0
    %158 = vmatprep.subr.mxu0 0.0
    %159 = vmatpush1.msra.mxu0 %v126
    %160 = vmatprep.subr.mxu0 0.0
    %161 = vmatpush2.msra.mxu0 0.0
    %162 = vmatprep.subr.mxu0 0.0
    %163 = vmatpush2.msra.mxu0 0.0
    %164 = vmatprep.subr.mxu0 0.0
    %165 = vmatpush2.msra.mxu0 0.0
    %166 = vmatprep.subr.mxu0 0.0
    %167 = vmatpush2.msra.mxu0 0.0
    %168 = vmatprep.subr.mxu0 0.0
    %169 = vmatpush2.msra.mxu0 0.0
    %170 = vmatprep.subr.mxu0 0.0
    %171 = vmatpush2.msra.mxu0 0.0
    %172 = vmatprep.subr.mxu0 0.0
    %173 = vmatpush2.msra.mxu0 0.0
    %174 = vmatprep.subr.mxu0 0.0
    %175 = vmatpush2.msra.mxu0 0.0
    %176 = vmatprep.subr.mxu0 0.0
    %177 = vmatpush2.msra.mxu0 0.0
    %178 = vmatprep.subr.mxu0 0.0
    %179 = vmatpush2.msra.mxu0 0.0
    %180 = vmatprep.subr.mxu0 0.0
    %181 = vmatpush2.msra.mxu0 0.0
    %182 = vmatprep.subr.mxu0 0.0
    %183 = vmatpush2.msra.mxu0 0.0
    %184 = vmatprep.subr.mxu0 0.0
    %185 = vmatpush2.msra.mxu0 0.0
    %186 = vmatprep.subr.mxu0 0.0
    %187 = vmatpush2.msra.mxu0 0.0
    %188 = vmatprep.subr.mxu0 0.0
    %189 = vmatpush2.msra.mxu0 0.0
    %190 = vmatprep.subr.mxu0 0.0
    %191 = vmatpush2.msra.mxu0 0.0
    %192 = vmatprep.mubr.f32.mxu0 0.0
    %193 = vmatmul.mubr.f32.gmra.mxu0 %v119
    %v194 = vpop.f32.mrf.mxu0
    %v195 = vadd.f32 0.0, %v194
    %v196 = vpop.f32.mrf.mxu0
    %197 = vmatprep.mubr.f32.mxu0 0.0
    %198 = vmatmul.mubr.f32.gmra.mxu0 %v122
    %v199 = vpop.f32.mrf.mxu0
    %v200 = vadd.f32 0.0, %v199
    %v201 = vpop.f32.mrf.mxu0
    %202 = vdwg.mxu0
    %v203 = vld [vmem:[%s0] sm:$0xf]
    %v204 = vld [vmem:[%s0 + $0x4] sm:$0xf]
    %v205 = vld [vmem:[%s2] sm:$0xf]
    %v206 = vld [vmem:[%s2 + $0x4] sm:$0xf]
    %v207 = vld [vmem:[%s2 + $0x8] sm:$0xf]
    %v208 = vld [vmem:[%s2 + $0xc] sm:$0xf]
    %v211 = vunpack.c.l.b16 %v203
    %v212 = vunpack.c.l.b16 %v204
    %v213 = vpack.c.b16 %v212, %v211
    %v218 = vunpack.c.l.b16 %v205
    %v219 = vunpack.c.l.b16 %v206
    %v220 = vunpack.c.l.b16 %v207
    %v221 = vunpack.c.l.b16 %v208
    %v222 = vpack.c.b16 %v219, %v218
    %v223 = vpack.c.b16 %v221, %v220
    %v227 = vsel %vm55, %v213, 0
    %229 = vmatprep.subr.bf16.mxu0 0
    %230 = vmatpush1.bf16.msra.mxu0 0
    %231 = vmatprep.subr.bf16.mxu0 0
    %232 = vmatpush1.bf16.msra.mxu0 0
    %233 = vmatprep.subr.bf16.mxu0 0
    %234 = vmatpush1.bf16.msra.mxu0 0
    %235 = vmatprep.subr.bf16.mxu0 0
    %236 = vmatpush1.bf16.msra.mxu0 0
    %237 = vmatprep.subr.bf16.mxu0 0
    %238 = vmatpush1.bf16.msra.mxu0 0
    %239 = vmatprep.subr.bf16.mxu0 0
    %240 = vmatpush1.bf16.msra.mxu0 0
    %241 = vmatprep.subr.bf16.mxu0 0
    %242 = vmatpush1.bf16.msra.mxu0 %v223
    %243 = vmatprep.subr.bf16.mxu0 0
    %244 = vmatpush1.bf16.msra.mxu0 %v222
    %245 = vmatprep.subr.bf16.mxu0 0
    %246 = vmatpush2.bf16.msra.mxu0 0
    %247 = vmatprep.subr.bf16.mxu0 0
    %248 = vmatpush2.bf16.msra.mxu0 0
    %249 = vmatprep.subr.bf16.mxu0 0
    %250 = vmatpush2.bf16.msra.mxu0 0
    %251 = vmatprep.subr.bf16.mxu0 0
    %252 = vmatpush2.bf16.msra.mxu0 0
    %253 = vmatprep.subr.bf16.mxu0 0
    %254 = vmatpush2.bf16.msra.mxu0 0
    %255 = vmatprep.subr.bf16.mxu0 0
    %256 = vmatpush2.bf16.msra.mxu0 0
    %257 = vmatprep.subr.bf16.mxu0 0
    %258 = vmatpush2.bf16.msra.mxu0 0
    %259 = vmatprep.subr.bf16.mxu0 0
    %260 = vmatpush2.bf16.msra.mxu0 0
    %261 = vmatprep.mubr.bf16.mxu0 0
    %262 = vmatmul.mubr.bf16.gmra.mxu0 %v227
    %v263 = vpop.f32.mrf.mxu0
    %v264 = vadd.f32 %v195, %v263
    %v265 = vpop.f32.mrf.mxu0
    %v266 = vpop.f32.mrf.mxu0
    %v267 = vadd.f32 %v200, %v266
    %v268 = vpop.f32.mrf.mxu0
    %269 = vdwg.mxu0
    %v270 = vld [vmem:[%s4] sm:$0x1]
    %v272 = vlaneseq
    %v273 = vshrl.u32 %v272, 7
    %v274 = vsub.s32 0, %v273
    %v275 = vrot.slane %v270, %v274
    %v277 = vadd.f32 %v264, %v275
    %v278 = vadd.f32 %v267, %v275
    %v279 = vtanh.pop %v277
    %v280 = vtanh.pop %v278
    %v281 = vpack.c.bf16 %v280, %v279
    %v282 = vld [vmem:[%s5] sm:$0xf]
    %v283 = vld [vmem:[%s5 + $0x4] sm:$0xf]
    %v284 = vld [vmem:[%s5 + $0x8] sm:$0xf]
    %v285 = vld [vmem:[%s5 + $0xc] sm:$0xf]
    %v286 = vld [vmem:[%s6] sm:$0x1]
    %v288 = vlaneseq
    %v289 = vshrl.u32 %v288, 7
    %v290 = vsub.s32 0, %v289
    %v291 = vrot.slane %v286, %v290
    %v297 = vunpack.c.l.b16 %v282
    %v298 = vunpack.c.l.b16 %v283
    %v299 = vunpack.c.l.b16 %v284
    %v300 = vunpack.c.l.b16 %v285
    %v301 = vpack.c.b16 %v298, %v297
    %v302 = vpack.c.b16 %v300, %v299
    %v306 = vsel %vm55, %v281, 0
    %308 = vmatprep.subr.bf16.mxu0 0
    %309 = vmatpush1.bf16.msra.mxu0 0
    %310 = vmatprep.subr.bf16.mxu0 0
    %311 = vmatpush1.bf16.msra.mxu0 0
    %312 = vmatprep.subr.bf16.mxu0 0
    %313 = vmatpush1.bf16.msra.mxu0 0
    %314 = vmatprep.subr.bf16.mxu0 0
    %315 = vmatpush1.bf16.msra.mxu0 0
    %316 = vmatprep.subr.bf16.mxu0 0
    %317 = vmatpush1.bf16.msra.mxu0 0
    %318 = vmatprep.subr.bf16.mxu0 0
    %319 = vmatpush1.bf16.msra.mxu0 0
    %320 = vmatprep.subr.bf16.mxu0 0
    %321 = vmatpush1.bf16.msra.mxu0 %v302
    %322 = vmatprep.subr.bf16.mxu0 0
    %323 = vmatpush1.bf16.msra.mxu0 %v301
    %324 = vmatprep.subr.bf16.mxu0 0
    %325 = vmatpush2.bf16.msra.mxu0 0
    %326 = vmatprep.subr.bf16.mxu0 0
    %327 = vmatpush2.bf16.msra.mxu0 0
    %328 = vmatprep.subr.bf16.mxu0 0
    %329 = vmatpush2.bf16.msra.mxu0 0
    %330 = vmatprep.subr.bf16.mxu0 0
    %331 = vmatpush2.bf16.msra.mxu0 0
    %332 = vmatprep.subr.bf16.mxu0 0
    %333 = vmatpush2.bf16.msra.mxu0 0
    %334 = vmatprep.subr.bf16.mxu0 0
    %335 = vmatpush2.bf16.msra.mxu0 0
    %336 = vmatprep.subr.bf16.mxu0 0
    %337 = vmatpush2.bf16.msra.mxu0 0
    %338 = vmatprep.subr.bf16.mxu0 0
    %339 = vmatpush2.bf16.msra.mxu0 0
    %340 = vmatprep.mubr.bf16.mxu0 0
    %341 = vmatmul.mubr.bf16.gmra.mxu0 %v306
    %v342 = vpop.f32.mrf.mxu0
    %v343 = vadd.f32 %v291, %v342
    %v344 = vpop.f32.mrf.mxu0
    %v345 = vpop.f32.mrf.mxu0
    %v346 = vadd.f32 %v291, %v345
    %v347 = vpop.f32.mrf.mxu0
    %348 = vdwg.mxu0
    %v349 = vld [vmem:[%s7] sm:$0xff]
    %v350 = vld [vmem:[%s7 + $0x8] sm:$0xff]
    %v351 = vld [vmem:[%s8] sm:$0xff]
    %v352 = vld [vmem:[%s8 + $0x8] sm:$0xff]
    %353 = vset.pattern.permute.xlu0 0
    %354 = vperm.xlu0 %353, %v349
    %v355 = vpop.permute.xlu0 %354
    %356 = vset.pattern.permute.xlu0 0
    %357 = vperm.xlu0 %356, %v350
    %v358 = vpop.permute.xlu0 %357
    %vm359 = vcmp.eq.s32.totalorder %v103, %v355
    %vm360 = vcmp.eq.s32.totalorder %v103, %v358
    %v361 = vsel %vm359, 1, 0
    %v362 = vsel %vm360, 1, 0
    %v363 = vcvt.s32.f32 %v361
    %v364 = vcvt.s32.f32 %v362
    %vm365 = vcmask 523264
    %v366 = vsel %vm365, %v343, -inf
    %367 = vmax.xlane.f32.xlu0 %v366
    %v368 = vpop.xlane.xlu0 %367
    %v369 = vsel %vm365, %v346, -inf
    %370 = vmax.xlane.f32.xlu0 %v369
    %v371 = vpop.xlane.xlu0 %370
    %v372 = vsub.f32 %v343, %v368
    %v373 = vsub.f32 %v346, %v371
    %v374 = vmul.f32 %v372, 1.442695
    %v375 = vpow.pop %v374
    %v376 = vmul.f32 %v373, 1.442695
    %v377 = vpow.pop %v376
    %v378 = vsel %vm365, %v375, 0.0
    %379 = vadd.xlane.f32.xlu0 %v378
    %v380 = vpop.xlane.xlu0 %379
    %v381 = vsel %vm365, %v377, 0.0
    %382 = vadd.xlane.f32.xlu0 %v381
    %v383 = vpop.xlane.xlu0 %382
    %v384 = vlog2.pop %v380
    %v385 = vmul.f32 %v384, 0.6931472
    %v386 = vlog2.pop %v383
    %v387 = vmul.f32 %v386, 0.6931472
    %v388 = vadd.f32 %v385, %v368
    %v389 = vadd.f32 %v387, %v371
    %v390 = vmul.f32 %v343, %v363
    %v391 = vmul.f32 %v346, %v364
    %v392 = vsel %vm365, %v390, 0.0
    %393 = vadd.xlane.f32.xlu0 %v392
    %v394 = vpop.xlane.xlu0 %393
    %v395 = vsel %vm365, %v391, 0.0
    %396 = vadd.xlane.f32.xlu0 %v395
    %v397 = vpop.xlane.xlu0 %396
    %v398 = vsub.f32 %v388, %v394
    %v399 = vsub.f32 %v389, %v397
    %v400 = vmul.f32 %v398, %v351
    %v401 = vmul.f32 %v399, %v352
    %vm402 = vcmask 7168
    %v403 = vsel %vm402, %v400, 0.0
    %v404 = vsel %vm402, %v401, 0.0
    %v405 = vadd.f32 %v403, %v404
    %v406 = vrot.slane %v405, 4
    %v407 = vadd.f32 %v405, %v406
    %v408 = vrot.slane %v407, 2
    %v409 = vadd.f32 %v407, %v408
    %v410 = vrot.slane %v409, 1
    %v411 = vadd.f32 %v409, %v410
    %v412 = vsel %vm402, %v351, 0.0
    %v413 = vsel %vm402, %v352, 0.0
    %v414 = vadd.f32 %v412, %v413
    %v415 = vrot.slane %v414, 4
    %v416 = vadd.f32 %v414, %v415
    %v417 = vrot.slane %v416, 2
    %v418 = vadd.f32 %v416, %v417
    %v419 = vrot.slane %v418, 1
    %v420 = vadd.f32 %v418, %v419
    %v421 = vmax.f32 %v420, 1.0
    %v422 = vrcp.pop %v421
    %v423 = vmul.f32 %v411, %v422
    %v424 = vsub.f32 %v343, %v388
    %v425 = vsub.f32 %v346, %v389
    %v426 = vrcp.pop %v380
    %v427 = vmul.f32 %v375, %v426
    %v428 = vrcp.pop %v383
    %v429 = vmul.f32 %v377, %v428
    %v430 = vmul.f32 %v424, %v427
    %v431 = vmul.f32 %v425, %v429
    %v432 = vsel %vm365, %v430, 0.0
    %433 = vadd.xlane.f32.xlu0 %v432
    %v434 = vpop.xlane.xlu0 %433
    %v435 = vsel %vm365, %v431, 0.0
    %436 = vadd.xlane.f32.xlu0 %v435
    %v437 = vpop.xlane.xlu0 %436
    %v438 = vsub.f32 0.0, %v434
    %v439 = vsub.f32 0.0, %v437
    %vm440 = vcmp.ne.s32.totalorder %v349, 0
    %vm441 = vcmp.ne.s32.totalorder %v350, 0
    %v442 = vsel %vm440, 1, 0
    %v443 = vsel %vm441, 1, 0
    %v444 = vcvt.s32.f32 %v442
    %v445 = vcvt.s32.f32 %v443
    %v446 = vmul.f32 %v351, %v444
    %v447 = vmul.f32 %v352, %v445
    %v448 = vmul.f32 %v438, %v446
    %v449 = vmul.f32 %v439, %v447
    %v450 = vsel %vm402, %v448, 0.0
    %v451 = vsel %vm402, %v449, 0.0
    %v452 = vadd.f32 %v450, %v451
    %v453 = vrot.slane %v452, 4
    %v454 = vadd.f32 %v452, %v453
    %v455 = vrot.slane %v454, 2
    %v456 = vadd.f32 %v454, %v455
    %v457 = vrot.slane %v456, 1
    %v458 = vadd.f32 %v456, %v457
    %v459 = vsel %vm402, %v446, 0.0
    %v460 = vsel %vm402, %v447, 0.0
    %v461 = vadd.f32 %v459, %v460
    %v462 = vrot.slane %v461, 4
    %v463 = vadd.f32 %v461, %v462
    %v464 = vrot.slane %v463, 2
    %v465 = vadd.f32 %v463, %v464
    %v466 = vrot.slane %v465, 1
    %v467 = vadd.f32 %v465, %v466
    %v468 = vmax.f32 %v467, 1.0
    %v469 = vrcp.pop %v468
    %v470 = vmul.f32 %v458, %v469
    %s471 = sld [smem:[#allocation2]]
    %s472 = ssub.f32 1.0, %s471
    %v473 = vstv %s472
    %v474 = vmul.f32 %v473, %v423
    %v475 = vstv %s471
    %v476 = vmul.f32 %v475, %v470
    %v477 = vadd.f32 %v474, %v476
    %vm478 = vcmask 0
    %479 = vst.msk [vmem:[#allocation3] sm:$0x1] %vm478, %v477
    // Predicated region
    $region42: #{spmm_forward.10} parent=1 // pred_check
      _
    $region43: #{spmm_forward.10} parent=1 // pred_check_branch
      %481 = sbr.rel (0) target = $region45
    $region44: #{spmm_forward.10} parent=1 // pred_region
      %s483 = ssub.s32 16, 16
      %484 = vsyncadd [#allocation4], %s483
      %s486 = sshll.u32 [#allocation3], 4
      %s487 = int_to_ptr.vmem [resolvable:$true] %s486
      %489 = dma.vmem_to_hbm [thread:$0]  %s487, 16, %s10, [#allocation4]
    $region45: #{spmm_forward.10} parent=1 // pred_fallthru
      _
    // Predicated region
    $region46: #{spmm_forward.10} parent=1 // pred_check
      _
    $region47: #{spmm_forward.10} parent=1 // pred_check_branch
      %491 = sbr.rel (0) target = $region49
    $region48: #{spmm_forward.10} parent=1 // pred_region
      %492 = dma.done [#allocation4], 16
    $region49: #{spmm_forward.10} parent=1 // pred_fallthru
      _
    %493 = vsyncpa [#allocation4], 1

</llo_original>
